<compile_context>
chip_gen: v7x
topology: tpu7x:2x2x1
jax: 0.10.0
libtpu: 0.0.40
codegen_flags: <defaults>
</compile_context>

<pallas_src>
import functools

import jax
import jax.numpy as jnp
from jax.experimental import pallas as pl
from jax.experimental.pallas import tpu as pltpu

N_LAYERS_RNN = 3


def _round_up(x, m):
    return ((x + m - 1) // m) * m


def _bigru_kernel(tmax_ref, len_ref, x_ref,
                  wih0_ref, wihL_ref, whh_ref, bihc_ref, bhhn_ref,
                  wfc1_ref, bfc1_ref, wfc2_ref, bfc2_ref,
                  out_ref,
                  seq_buf, gi_buf, h_scr,
                  *, T, Bt, Din0, Hp, n_layers):
    """One batch tile: 3-layer bidirectional GRU recurrence + FC head.

    Shapes (all padded / lane aligned):
      tmax_ref : (1,) int32 SMEM          max(lengths) -> recurrence bound
      len_ref  : (Bt, 1) int32            per-element lengths
      x_ref    : (T, Bt, Din0)            time-major layer-0 input
      wih0_ref : (Din0, 6Hp)              layer-0 input->gates (fwd|bwd fused)
      wihL_ref : (L-1, 2Hp, 6Hp)          layers>=1 input->gates (fwd|bwd fused)
      whh_ref  : (L, 2, Hp, 3Hp)          hidden->gates, gate order [r, z, n]
      bihc_ref : (L, 1, 6Hp)              bih (+ bhh pre-added for r,z)
      bhhn_ref : (L, 2, 1, Hp)            bhh for the n gate (kept separate)
      seq_buf  : (T, Bt, 2Hp)             layer output sequence (reused in place)
      gi_buf   : (T, Bt, 6Hp)             hoisted fused input-gate projections
      h_scr    : (2, Bt, Hp)              current hidden state [fwd, bwd]
    """
    H3 = 3 * Hp
    H6 = 6 * Hp
    lengths = len_ref[...]                       # (Bt, 1) int32
    t_hi = tmax_ref[0]                           # dynamic recurrence bound

    def run_layer(layer, in_ref, din, write_out):
        # ---- hoisted, fused fwd+bwd input projection: one big MXU matmul ----
        x_flat = in_ref[...].reshape(T * Bt, din)
        wih = wih0_ref[...] if layer == 0 else wihL_ref[layer - 1]
        gi = (jnp.dot(x_flat, wih, preferred_element_type=jnp.float32)
              + bihc_ref[layer])                                  # (T*Bt, 6Hp)
        gi_buf[...] = gi.reshape(T, Bt, H6)

        # zero initial hidden for this layer (both directions)
        h_scr[...] = jnp.zeros_like(h_scr)

        # hoist the n-gate bias broadcasts out of the time loop
        bhhn_f = jnp.broadcast_to(bhhn_ref[layer, 0], (Bt, Hp))
        bhhn_b = jnp.broadcast_to(bhhn_ref[layer, 1], (Bt, Hp))

        def gru_update(gi_t, gh_t, h, bhhn):
            # sigmoid(x) == 0.5*(tanh(x/2)+1): one EUP op on the critical path
            rz = 0.5 * (jnp.tanh(0.5 * (gi_t[:, 0:2 * Hp] + gh_t[:, 0:2 * Hp]))
                        + 1.0)
            r = rz[:, 0:Hp]
            z = rz[:, Hp:2 * Hp]
            n = jnp.tanh(gi_t[:, 2 * Hp:H3] + r * (gh_t[:, 2 * Hp:H3] + bhhn))
            return (1.0 - z) * n + z * h

        # ---- interleaved fwd/bwd recurrence: two independent chains / step ----
        @pl.loop(0, t_hi)
        def _(i):
            t_f = i
            t_b = t_hi - 1 - i
            h_f = h_scr[0]
            h_b = h_scr[1]
            gi_f = gi_buf[t_f, :, 0:H3]
            gi_b = gi_buf[t_b, :, H3:H6]
            gh_f = jnp.dot(h_f, whh_ref[layer, 0],
                           preferred_element_type=jnp.float32)
            gh_b = jnp.dot(h_b, whh_ref[layer, 1],
                           preferred_element_type=jnp.float32)
            hf_new = gru_update(gi_f, gh_f, h_f, bhhn_f)
            hb_new = gru_update(gi_b, gh_b, h_b, bhhn_b)
            # packed-sequence masking: no update past each element's length
            hf_new = jnp.where(t_f < lengths, hf_new, h_f)
            hb_new = jnp.where(t_b < lengths, hb_new, h_b)
            h_scr[0] = hf_new
            h_scr[1] = hb_new
            if write_out:
                seq_buf[t_f, :, 0:Hp] = hf_new
                seq_buf[t_b, :, Hp:2 * Hp] = hb_new

    # Layer 0 reads the pipelined x block; layers >= 1 run IN PLACE on seq_buf
    # (the input sequence is only read by the hoisted gi matmul above, so the
    #  recurrence is free to overwrite it).  The last layer's output sequence is
    #  never needed, only its final hidden states.
    run_layer(0, x_ref, Din0, write_out=True)
    for l in range(1, n_layers):
        run_layer(l, seq_buf, 2 * Hp, write_out=(l < n_layers - 1))

    # Dropout is identity at inference.  Head: lc2(relu(lc1(cat(ht_f, ht_b)))).
    ht_f = h_scr[0]
    ht_b = h_scr[1]
    h1 = (jnp.dot(ht_f, wfc1_ref[0:Hp, :], preferred_element_type=jnp.float32)
          + jnp.dot(ht_b, wfc1_ref[Hp:2 * Hp, :],
                    preferred_element_type=jnp.float32)
          + bfc1_ref[...])
    h1 = jnp.maximum(h1, 0.0)
    out_ref[...] = (jnp.dot(h1, wfc2_ref[...], preferred_element_type=jnp.float32)
                    + bfc2_ref[...])


def bigru_classifier_forward(landmarks, lengths, params):
    """landmarks: (B, T, E) batch_first float32; lengths: (B,) int."""
    B, T, E = landmarks.shape
    gru_layers, (w1, b1), (w2, b2) = params
    H = gru_layers[0][0][1].shape[1]          # w_hh: (3H, H)
    C = w2.shape[0]
    NL = len(gru_layers)
    f32 = jnp.float32

    Hp = _round_up(H, 128)                    # lane-aligned per-gate width
    Din0 = _round_up(E, 128)                  # layer-0 input width only
    Hf = _round_up(H, 128)                    # lane-aligned FC hidden width
    Cp = _round_up(C, 128)                    # lane-dense output width
    Bt = min(_round_up(B, 8), 64)             # <=64: VMEM headroom + >=2 grid steps
    Bp = _round_up(B, Bt)                     # for B>64 (v7x megacore split)
    H3, H6 = 3 * Hp, 6 * Hp

    # ---- pack / pad / pre-transpose weights (one-time, wrapper side) ----
    # Fused gate columns: [fwd r | fwd z | fwd n | bwd r | bwd z | bwd n], each Hp.
    wih0 = jnp.zeros((Din0, H6), f32)
    wihL = jnp.zeros((max(NL - 1, 1), 2 * Hp, H6), f32)
    whh_all = jnp.zeros((NL, 2, Hp, H3), f32)
    bihc_all = jnp.zeros((NL, 1, H6), f32)    # bih (+ bhh pre-added for r,z)
    bhhn_all = jnp.zeros((NL, 2, 1, Hp), f32)  # bhh for the n gate
    for l in range(NL):
        for d in range(2):
            w_ih, w_hh, b_ih, b_hh = gru_layers[l][d]
            base = d * H3
            for g in range(3):
                col = base + g * Hp
                wg = w_ih[g * H:(g + 1) * H, :]                  # (H, in_dim)
                if l == 0:
                    wih0 = wih0.at[:E, col:col + H].set(wg.T)
                else:
                    # bidirectional input: fwd half -> rows [0:H], bwd -> [Hp:Hp+H]
                    wihL = wihL.at[l - 1, :H, col:col + H].set(wg[:, :H].T)
                    wihL = wihL.at[l - 1, Hp:Hp + H, col:col + H].set(wg[:, H:].T)
                whh_all = whh_all.at[l, d, :H, g * Hp:g * Hp + H].set(
                    w_hh[g * H:(g + 1) * H, :].T)
            bihc_all = bihc_all.at[l, 0, base:base + H].set(b_ih[:H] + b_hh[:H])
            bihc_all = bihc_all.at[l, 0, base + Hp:base + Hp + H].set(
                b_ih[H:2 * H] + b_hh[H:2 * H])
            bihc_all = bihc_all.at[l, 0, base + 2 * Hp:base + 2 * Hp + H].set(
                b_ih[2 * H:])
            bhhn_all = bhhn_all.at[l, d, 0, :H].set(b_hh[2 * H:])

    wfc1 = jnp.zeros((2 * Hp, Hf), f32)
    wfc1 = wfc1.at[:H, :H].set(w1[:, :H].T)               # forward hidden rows
    wfc1 = wfc1.at[Hp:Hp + H, :H].set(w1[:, H:].T)        # backward hidden rows
    bfc1 = jnp.zeros((1, Hf), f32).at[0, :H].set(b1)
    wfc2 = jnp.zeros((Hf, Cp), f32).at[:H, :C].set(w2.T)
    bfc2 = jnp.zeros((1, Cp), f32).at[0, :C].set(b2)

    # ---- pad activations: time-major, batch -> Bp, features -> Din0 ----
    x_tm = jnp.transpose(landmarks.astype(f32), (1, 0, 2))        # (T, B, E)
    x_p = jnp.zeros((T, Bp, Din0), f32).at[:, :B, :E].set(x_tm)
    len_i = lengths.astype(jnp.int32)
    len_p = jnp.zeros((Bp, 1), jnp.int32).at[:B, 0].set(len_i)
    tmax = jnp.minimum(jnp.max(len_i), T).astype(jnp.int32).reshape(1)

    kernel = functools.partial(_bigru_kernel, T=T, Bt=Bt, Din0=Din0, Hp=Hp,
                               n_layers=NL)

    def _full(arr):
        nd = arr.ndim
        return pl.BlockSpec(arr.shape, lambda b, tm, _nd=nd: (0,) * _nd)

    weights = (wih0, wihL, whh_all, bihc_all, bhhn_all, wfc1, bfc1, wfc2, bfc2)

    # ---- VMEM budget from the actual footprint (not a fixed 32 MiB) ----
    w_bytes = sum(int(w.size) * 4 for w in weights)
    io_bytes = 2 * 4 * (T * Bt * Din0 + Bt + Bt * Cp)       # double-buffered blocks
    scratch_bytes = 4 * (T * Bt * 2 * Hp + T * Bt * H6 + 2 * Bt * Hp)
    vmem_need = w_bytes + io_bytes + scratch_bytes
    # 2x headroom for compiler temporaries (hoisted projection intermediates),
    # capped below v5e/v6e physical VMEM.  TODO(synk): query pltpu.get_tpu_info()
    # and T-chunk the sequence buffers when 2*vmem_need exceeds the device limit.
    vmem_limit = int(min(100 * 2 ** 20, max(2 * vmem_need, 16 * 2 ** 20)))

    grid_spec = pltpu.PrefetchScalarGridSpec(
        num_scalar_prefetch=1,                # tmax -> SMEM, bounds the recurrence
        grid=(Bp // Bt,),
        in_specs=[pl.BlockSpec((Bt, 1), lambda b, tm: (b, 0)),
                  pl.BlockSpec((T, Bt, Din0), lambda b, tm: (0, b, 0))]
                 + [_full(w) for w in weights],
        out_specs=pl.BlockSpec((Bt, Cp), lambda b, tm: (b, 0)),
        scratch_shapes=[
            pltpu.VMEM((T, Bt, 2 * Hp), f32),     # layer I/O sequence (in-place)
            pltpu.VMEM((T, Bt, H6), f32),         # hoisted fused gate projections
            pltpu.VMEM((2, Bt, Hp), f32),         # [fwd, bwd] hidden state
        ])

    out = pl.pallas_call(
        kernel,
        out_shape=jax.ShapeDtypeStruct((Bp, Cp), f32),
        grid_spec=grid_spec,
        compiler_params=pltpu.CompilerParams(
            dimension_semantics=("parallel",),    # batch tiles -> 2 TCs on v7x
            vmem_limit_bytes=vmem_limit),
    )(tmax, len_p, x_p, *weights)
    return out[:B, :C]


def init_params(key, embedding_dim, hidden_dim, target_size):
    """Deterministic init with PyTorch shapes: bidirectional 3-layer GRU + 2 FC."""
    H = hidden_dim
    bound = 1.0 / float(H) ** 0.5
    keys = jax.random.split(key, N_LAYERS_RNN * 2 * 4 + 4)

    def u(k, shape, b):
        return jax.random.uniform(k, shape, jnp.float32, minval=-b, maxval=b)

    ki = 0
    gru_layers = []
    for l in range(N_LAYERS_RNN):
        in_dim = embedding_dim if l == 0 else 2 * H
        dirs = []
        for _d in range(2):
            w_ih = u(keys[ki], (3 * H, in_dim), bound); ki += 1
            w_hh = u(keys[ki], (3 * H, H), bound); ki += 1
            b_ih = u(keys[ki], (3 * H,), bound); ki += 1
            b_hh = u(keys[ki], (3 * H,), bound); ki += 1
            dirs.append((w_ih, w_hh, b_ih, b_hh))
        gru_layers.append(tuple(dirs))
    fcb1 = 1.0 / float(2 * H) ** 0.5
    w1 = u(keys[ki], (H, 2 * H), fcb1); ki += 1               # lc1.weight
    b1 = u(keys[ki], (H,), fcb1); ki += 1                     # lc1.bias
    fcb2 = 1.0 / float(H) ** 0.5
    w2 = u(keys[ki], (target_size, H), fcb2); ki += 1         # lc2.weight
    b2 = u(keys[ki], (target_size,), fcb2); ki += 1           # lc2.bias
    return tuple(gru_layers), (w1, b1), (w2, b2)


def reference_forward(landmarks, lengths, params):
    """Pure-JAX reference: packed-sequence bidirectional 3-layer GRU + FC head."""
    gru_layers, (w1, b1), (w2, b2) = params
    B, T, _ = landmarks.shape
    H = gru_layers[0][0][1].shape[1]
    lens = lengths.astype(jnp.int32).reshape(B, 1)

    def cell(x_t, h, w_ih, w_hh, b_ih, b_hh):
        gi = x_t @ w_ih.T + b_ih
        gh = h @ w_hh.T + b_hh
        r = jax.nn.sigmoid(gi[:, :H] + gh[:, :H])
        z = jax.nn.sigmoid(gi[:, H:2 * H] + gh[:, H:2 * H])
        n = jnp.tanh(gi[:, 2 * H:] + r * gh[:, 2 * H:])
        return (1.0 - z) * n + z * h

    layer_in = landmarks                                   # (B, T, in_dim)
    ht_f = ht_b = jnp.zeros((B, H), jnp.float32)
    for l in range(N_LAYERS_RNN):
        wif, whf, bif, bhf = gru_layers[l][0]
        wib, whb, bib, bhb = gru_layers[l][1]
        hf = jnp.zeros((B, H), jnp.float32)
        outs_f = []
        for t in range(T):
            hn = cell(layer_in[:, t], hf, wif, whf, bif, bhf)
            hf = jnp.where(t < lens, hn, hf)
            outs_f.append(hf)
        hb = jnp.zeros((B, H), jnp.float32)
        outs_b = [None] * T
        for t in range(T - 1, -1, -1):
            hn = cell(layer_in[:, t], hb, wib, whb, bib, bhb)
            hb = jnp.where(t < lens, hn, hb)
            outs_b[t] = hb
        layer_in = jnp.stack(
            [jnp.concatenate([outs_f[t], outs_b[t]], axis=1) for t in range(T)],
            axis=1)                                        # (B, T, 2H)
        ht_f, ht_b = hf, hb
    ht = jnp.concatenate([ht_f, ht_b], axis=1)             # cat(ht[-2], ht[-1])
    h1 = jax.nn.relu(ht @ w1.T + b1)
    return h1 @ w2.T + b2


if __name__ == "__main__":
    B, T, E, H, C = 2, 8, 16, 32, 1

    key = jax.random.PRNGKey(0)
    kx, kp = jax.random.split(key)
    landmarks = jax.random.normal(kx, (B, T, E), jnp.float32)   # (batch, seq, emb)
    lengths = jnp.array([8, 5], dtype=jnp.int32)                # sorted descending

    params = init_params(kp, E, H, C)

    logits = bigru_classifier_forward(landmarks, lengths, params)
    logits = jax.block_until_ready(logits)

    ref = reference_forward(landmarks, lengths, params)
    assert logits.shape == (B, C)
    assert jnp.allclose(logits, ref, atol=5e-4, rtol=5e-4), (logits, ref)

    print("KERNEL_OK")
</pallas_src>

<mosaic_0001>
module attributes {stable_mosaic.version = 11 : i64} {
  func.func @_bigru_kernel(%arg0: i32, %arg1: memref<1xi32, #tpu.memory_space<smem>>, %arg2: memref<8x1xi32, #tpu.memory_space<vmem>>, %arg3: memref<8x8x128xf32, #tpu.memory_space<vmem>>, %arg4: memref<128x768xf32, #tpu.memory_space<vmem>>, %arg5: memref<2x256x768xf32, #tpu.memory_space<vmem>>, %arg6: memref<3x2x128x384xf32, #tpu.memory_space<vmem>>, %arg7: memref<3x1x768xf32, #tpu.memory_space<vmem>>, %arg8: memref<3x2x1x128xf32, #tpu.memory_space<vmem>>, %arg9: memref<256x128xf32, #tpu.memory_space<vmem>>, %arg10: memref<1x128xf32, #tpu.memory_space<vmem>>, %arg11: memref<128x128xf32, #tpu.memory_space<vmem>>, %arg12: memref<1x128xf32, #tpu.memory_space<vmem>>, %arg13: memref<8x128xf32, #tpu.memory_space<vmem>>, %arg14: memref<8x8x256xf32, #tpu.memory_space<vmem>>, %arg15: memref<8x8x768xf32, #tpu.memory_space<vmem>>, %arg16: memref<2x8x128xf32, #tpu.memory_space<vmem>>) attributes {dimension_semantics = [#tpu.dimension_semantics<parallel>], iteration_bounds = array<i64: 1>, scalar_prefetch = 1 : i64, scratch_operands = 3 : i64, tpu.core_type = #tpu.core_type<tc>, window_params = [{transform_indices = @transform_0, window_bounds = array<i64: 8, 1>}, {transform_indices = @transform_1, window_bounds = array<i64: 8, 8, 128>}, {pipeline_mode = #tpu.pipeline_mode<synchronous>, transform_indices = @transform_2, window_bounds = array<i64: 128, 768>}, {pipeline_mode = #tpu.pipeline_mode<synchronous>, transform_indices = @transform_3, window_bounds = array<i64: 2, 256, 768>}, {pipeline_mode = #tpu.pipeline_mode<synchronous>, transform_indices = @transform_4, window_bounds = array<i64: 3, 2, 128, 384>}, {pipeline_mode = #tpu.pipeline_mode<synchronous>, transform_indices = @transform_5, window_bounds = array<i64: 3, 1, 768>}, {pipeline_mode = #tpu.pipeline_mode<synchronous>, transform_indices = @transform_6, window_bounds = array<i64: 3, 2, 1, 128>}, {pipeline_mode = #tpu.pipeline_mode<synchronous>, transform_indices = @transform_7, window_bounds = array<i64: 256, 128>}, {pipeline_mode = #tpu.pipeline_mode<synchronous>, transform_indices = @transform_8, window_bounds = array<i64: 1, 128>}, {pipeline_mode = #tpu.pipeline_mode<synchronous>, transform_indices = @transform_9, window_bounds = array<i64: 128, 128>}, {pipeline_mode = #tpu.pipeline_mode<synchronous>, transform_indices = @transform_10, window_bounds = array<i64: 1, 128>}, {transform_indices = @transform_11, window_bounds = array<i64: 8, 128>}]} {
    %c0 = arith.constant 0 : index
    %c0_0 = arith.constant 0 : index
    %0 = vector.load %arg2[%c0, %c0_0] : memref<8x1xi32, #tpu.memory_space<vmem>>, vector<8x1xi32>
    %c0_1 = arith.constant 0 : index
    %1 = memref.load %arg1[%c0_1] : memref<1xi32, #tpu.memory_space<smem>>
    %c0_2 = arith.constant 0 : index
    %c0_3 = arith.constant 0 : index
    %c0_4 = arith.constant 0 : index
    %2 = vector.load %arg3[%c0_2, %c0_3, %c0_4] : memref<8x8x128xf32, #tpu.memory_space<vmem>>, vector<8x8x128xf32>
    %3 = vector.shape_cast %2 : vector<8x8x128xf32> to vector<64x128xf32>
    %c0_5 = arith.constant 0 : index
    %c0_6 = arith.constant 0 : index
    %4 = vector.load %arg4[%c0_5, %c0_6] : memref<128x768xf32, #tpu.memory_space<vmem>>, vector<128x768xf32>
    %cst = arith.constant dense<0.000000e+00> : vector<64x768xf32>
    %5 = tpu.matmul %3, %4, %cst {dimension_numbers = #tpu.dot_dimension_numbers<[1], [0], [0], [1], [0, 0, 1, 1], [], []>} : vector<64x128xf32>, vector<128x768xf32>, vector<64x768xf32> -> vector<64x768xf32>
    %c0_7 = arith.constant 0 : index
    %c0_8 = arith.constant 0 : index
    %c0_9 = arith.constant 0 : index
    %6 = vector.load %arg7[%c0_7, %c0_8, %c0_9] : memref<3x1x768xf32, #tpu.memory_space<vmem>>, vector<1x1x768xf32>
    %7 = vector.shape_cast %6 : vector<1x1x768xf32> to vector<1x768xf32>
    %8 = vector.broadcast %7 : vector<1x768xf32> to vector<64x768xf32>
    %9 = arith.addf %5, %8 : vector<64x768xf32>
    %10 = vector.shape_cast %9 : vector<64x768xf32> to vector<8x8x768xf32>
    %c0_10 = arith.constant 0 : index
    %c0_11 = arith.constant 0 : index
    %c0_12 = arith.constant 0 : index
    %11 = vector.load %arg15[%c0_10, %c0_11, %c0_12] : memref<8x8x768xf32, #tpu.memory_space<vmem>>, vector<8x8x768xf32>
    tpu.vector_store %arg15[%c0_10, %c0_11, %c0_12], %10 {strides = array<i32>} : memref<8x8x768xf32, #tpu.memory_space<vmem>>, vector<8x8x768xf32>,
    %cst_13 = arith.constant 0.000000e+00 : f32
    %12 = vector.broadcast %cst_13 : f32 to vector<2x8x128xf32>
    %c0_14 = arith.constant 0 : index
    %c0_15 = arith.constant 0 : index
    %c0_16 = arith.constant 0 : index
    %13 = vector.load %arg16[%c0_14, %c0_15, %c0_16] : memref<2x8x128xf32, #tpu.memory_space<vmem>>, vector<2x8x128xf32>
    tpu.vector_store %arg16[%c0_14, %c0_15, %c0_16], %12 {strides = array<i32>} : memref<2x8x128xf32, #tpu.memory_space<vmem>>, vector<2x8x128xf32>,
    %c0_17 = arith.constant 0 : index
    %c0_18 = arith.constant 0 : index
    %c0_19 = arith.constant 0 : index
    %c0_20 = arith.constant 0 : index
    %14 = vector.load %arg8[%c0_17, %c0_18, %c0_19, %c0_20] : memref<3x2x1x128xf32, #tpu.memory_space<vmem>>, vector<1x1x1x128xf32>
    %15 = vector.shape_cast %14 : vector<1x1x1x128xf32> to vector<1x128xf32>
    %16 = vector.shape_cast %15 : vector<1x128xf32> to vector<1x128xf32>
    %17 = vector.broadcast %16 : vector<1x128xf32> to vector<8x128xf32>
    %c0_21 = arith.constant 0 : index
    %c1 = arith.constant 1 : index
    %c0_22 = arith.constant 0 : index
    %c0_23 = arith.constant 0 : index
    %18 = vector.load %arg8[%c0_21, %c1, %c0_22, %c0_23] : memref<3x2x1x128xf32, #tpu.memory_space<vmem>>, vector<1x1x1x128xf32>
    %19 = vector.shape_cast %18 : vector<1x1x1x128xf32> to vector<1x128xf32>
    %20 = vector.shape_cast %19 : vector<1x128xf32> to vector<1x128xf32>
    %21 = vector.broadcast %20 : vector<1x128xf32> to vector<8x128xf32>
    %c0_i32 = arith.constant 0 : i32
    %22 = arith.subi %1, %c0_i32 : i32
    %c1_i32 = arith.constant 1 : i32
    %c1_i32_24 = arith.constant 1 : i32
    %23 = arith.subi %c1_i32, %c1_i32_24 : i32
    %24 = arith.addi %22, %23 : i32
    %c1_i32_25 = arith.constant 1 : i32
    %25 = arith.divsi %24, %c1_i32_25 : i32
    %c1_i32_26 = arith.constant 1 : i32
    %c0_i32_27 = arith.constant 0 : i32
    %c0_i32_28 = arith.constant 0 : i32
    %26 = arith.subi %25, %c0_i32_28 : i32
    %27 = arith.addi %c0_i32_28, %26 : i32
    %c1_i32_29 = arith.constant 1 : i32
    scf.for %arg17 = %c0_i32_28 to %27 step %c1_i32_29  : i32 {
      %102 = arith.muli %arg17, %c1_i32_26 : i32
      %103 = arith.addi %c0_i32_27, %102 : i32
      %c1_i32_116 = arith.constant 1 : i32
      %104 = arith.subi %1, %c1_i32_116 : i32
      %105 = arith.subi %104, %103 : i32
      %c0_117 = arith.constant 0 : index
      %c0_118 = arith.constant 0 : index
      %c0_119 = arith.constant 0 : index
      %106 = vector.load %arg16[%c0_117, %c0_118, %c0_119] : memref<2x8x128xf32, #tpu.memory_space<vmem>>, vector<1x8x128xf32>
      %107 = vector.shape_cast %106 : vector<1x8x128xf32> to vector<8x128xf32>
      %c1_120 = arith.constant 1 : index
      %c0_121 = arith.constant 0 : index
      %c0_122 = arith.constant 0 : index
      %108 = vector.load %arg16[%c1_120, %c0_121, %c0_122] : memref<2x8x128xf32, #tpu.memory_space<vmem>>, vector<1x8x128xf32>
      %109 = vector.shape_cast %108 : vector<1x8x128xf32> to vector<8x128xf32>
      %110 = arith.index_cast %103 : i32 to index
      %c0_123 = arith.constant 0 : index
      %c0_124 = arith.constant 0 : index
      %111 = vector.load %arg15[%110, %c0_123, %c0_124] : memref<8x8x768xf32, #tpu.memory_space<vmem>>, vector<1x8x384xf32>
      %112 = vector.shape_cast %111 : vector<1x8x384xf32> to vector<8x384xf32>
      %113 = arith.index_cast %105 : i32 to index
      %c0_125 = arith.constant 0 : index
      %c384 = arith.constant 384 : index
      %114 = vector.load %arg15[%113, %c0_125, %c384] : memref<8x8x768xf32, #tpu.memory_space<vmem>>, vector<1x8x384xf32>
      %115 = vector.shape_cast %114 : vector<1x8x384xf32> to vector<8x384xf32>
      %c0_126 = arith.constant 0 : index
      %c0_127 = arith.constant 0 : index
      %c0_128 = arith.constant 0 : index
      %c0_129 = arith.constant 0 : index
      %116 = vector.load %arg6[%c0_126, %c0_127, %c0_128, %c0_129] : memref<3x2x128x384xf32, #tpu.memory_space<vmem>>, vector<1x1x128x384xf32>
      %117 = vector.shape_cast %116 : vector<1x1x128x384xf32> to vector<128x384xf32>
      %cst_130 = arith.constant dense<0.000000e+00> : vector<8x384xf32>
      %118 = tpu.matmul %107, %117, %cst_130 {dimension_numbers = #tpu.dot_dimension_numbers<[1], [0], [0], [1], [0, 0, 1, 1], [], []>} : vector<8x128xf32>, vector<128x384xf32>, vector<8x384xf32> -> vector<8x384xf32>
      %c0_131 = arith.constant 0 : index
      %c1_132 = arith.constant 1 : index
      %c0_133 = arith.constant 0 : index
      %c0_134 = arith.constant 0 : index
      %119 = vector.load %arg6[%c0_131, %c1_132, %c0_133, %c0_134] : memref<3x2x128x384xf32, #tpu.memory_space<vmem>>, vector<1x1x128x384xf32>
      %120 = vector.shape_cast %119 : vector<1x1x128x384xf32> to vector<128x384xf32>
      %cst_135 = arith.constant dense<0.000000e+00> : vector<8x384xf32>
      %121 = tpu.matmul %109, %120, %cst_135 {dimension_numbers = #tpu.dot_dimension_numbers<[1], [0], [0], [1], [0, 0, 1, 1], [], []>} : vector<8x128xf32>, vector<128x384xf32>, vector<8x384xf32> -> vector<8x384xf32>
      %122 = vector.extract_strided_slice %112 {offsets = [0, 0], sizes = [8, 256], strides = [1, 1]} : vector<8x384xf32> to vector<8x256xf32>
      %123 = vector.extract_strided_slice %118 {offsets = [0, 0], sizes = [8, 256], strides = [1, 1]} : vector<8x384xf32> to vector<8x256xf32>
      %124 = arith.addf %122, %123 : vector<8x256xf32>
      %cst_136 = arith.constant 5.000000e-01 : f32
      %125 = vector.broadcast %cst_136 : f32 to vector<8x256xf32>
      %126 = arith.mulf %125, %124 : vector<8x256xf32>
      %127 = math.tanh %126 : vector<8x256xf32>
      %cst_137 = arith.constant 1.000000e+00 : f32
      %128 = vector.broadcast %cst_137 : f32 to vector<8x256xf32>
      %129 = arith.addf %127, %128 : vector<8x256xf32>
      %cst_138 = arith.constant 5.000000e-01 : f32
      %130 = vector.broadcast %cst_138 : f32 to vector<8x256xf32>
      %131 = arith.mulf %130, %129 : vector<8x256xf32>
      %132 = vector.extract_strided_slice %131 {offsets = [0, 0], sizes = [8, 128], strides = [1, 1]} : vector<8x256xf32> to vector<8x128xf32>
      %133 = vector.extract_strided_slice %131 {offsets = [0, 128], sizes = [8, 128], strides = [1, 1]} : vector<8x256xf32> to vector<8x128xf32>
      %134 = vector.extract_strided_slice %112 {offsets = [0, 256], sizes = [8, 128], strides = [1, 1]} : vector<8x384xf32> to vector<8x128xf32>
      %135 = vector.extract_strided_slice %118 {offsets = [0, 256], sizes = [8, 128], strides = [1, 1]} : vector<8x384xf32> to vector<8x128xf32>
      %136 = arith.addf %135, %17 : vector<8x128xf32>
      %137 = arith.mulf %132, %136 : vector<8x128xf32>
      %138 = arith.addf %134, %137 : vector<8x128xf32>
      %139 = math.tanh %138 : vector<8x128xf32>
      %cst_139 = arith.constant 1.000000e+00 : f32
      %140 = vector.broadcast %cst_139 : f32 to vector<8x128xf32>
      %141 = arith.subf %140, %133 : vector<8x128xf32>
      %142 = arith.mulf %141, %139 : vector<8x128xf32>
      %143 = arith.mulf %133, %107 : vector<8x128xf32>
      %144 = arith.addf %142, %143 : vector<8x128xf32>
      %145 = vector.extract_strided_slice %115 {offsets = [0, 0], sizes = [8, 256], strides = [1, 1]} : vector<8x384xf32> to vector<8x256xf32>
      %146 = vector.extract_strided_slice %121 {offsets = [0, 0], sizes = [8, 256], strides = [1, 1]} : vector<8x384xf32> to vector<8x256xf32>
      %147 = arith.addf %145, %146 : vector<8x256xf32>
      %cst_140 = arith.constant 5.000000e-01 : f32
      %148 = vector.broadcast %cst_140 : f32 to vector<8x256xf32>
      %149 = arith.mulf %148, %147 : vector<8x256xf32>
      %150 = math.tanh %149 : vector<8x256xf32>
      %cst_141 = arith.constant 1.000000e+00 : f32
      %151 = vector.broadcast %cst_141 : f32 to vector<8x256xf32>
      %152 = arith.addf %150, %151 : vector<8x256xf32>
      %cst_142 = arith.constant 5.000000e-01 : f32
      %153 = vector.broadcast %cst_142 : f32 to vector<8x256xf32>
      %154 = arith.mulf %153, %152 : vector<8x256xf32>
      %155 = vector.extract_strided_slice %154 {offsets = [0, 0], sizes = [8, 128], strides = [1, 1]} : vector<8x256xf32> to vector<8x128xf32>
      %156 = vector.extract_strided_slice %154 {offsets = [0, 128], sizes = [8, 128], strides = [1, 1]} : vector<8x256xf32> to vector<8x128xf32>
      %157 = vector.extract_strided_slice %115 {offsets = [0, 256], sizes = [8, 128], strides = [1, 1]} : vector<8x384xf32> to vector<8x128xf32>
      %158 = vector.extract_strided_slice %121 {offsets = [0, 256], sizes = [8, 128], strides = [1, 1]} : vector<8x384xf32> to vector<8x128xf32>
      %159 = arith.addf %158, %21 : vector<8x128xf32>
      %160 = arith.mulf %155, %159 : vector<8x128xf32>
      %161 = arith.addf %157, %160 : vector<8x128xf32>
      %162 = math.tanh %161 : vector<8x128xf32>
      %cst_143 = arith.constant 1.000000e+00 : f32
      %163 = vector.broadcast %cst_143 : f32 to vector<8x128xf32>
      %164 = arith.subf %163, %156 : vector<8x128xf32>
      %165 = arith.mulf %164, %162 : vector<8x128xf32>
      %166 = arith.mulf %156, %109 : vector<8x128xf32>
      %167 = arith.addf %165, %166 : vector<8x128xf32>
      %168 = vector.broadcast %103 : i32 to vector<8x1xi32>
      %169 = arith.cmpi slt, %168, %0 : vector<8x1xi32>
      %170 = vector.shape_cast %169 : vector<8x1xi1> to vector<8x1xi1>
      %171 = vector.broadcast %170 : vector<8x1xi1> to vector<8x128xi1>
      %172 = arith.select %171, %144, %107 : vector<8x128xi1>, vector<8x128xf32>
      %173 = vector.broadcast %105 : i32 to vector<8x1xi32>
      %174 = arith.cmpi slt, %173, %0 : vector<8x1xi32>
      %175 = vector.shape_cast %174 : vector<8x1xi1> to vector<8x1xi1>
      %176 = vector.broadcast %175 : vector<8x1xi1> to vector<8x128xi1>
      %177 = arith.select %176, %167, %109 : vector<8x128xi1>, vector<8x128xf32>
      %c0_144 = arith.constant 0 : index
      %c0_145 = arith.constant 0 : index
      %c0_146 = arith.constant 0 : index
      %178 = vector.load %arg16[%c0_144, %c0_145, %c0_146] : memref<2x8x128xf32, #tpu.memory_space<vmem>>, vector<1x8x128xf32>
      %179 = vector.shape_cast %178 : vector<1x8x128xf32> to vector<8x128xf32>
      %180 = vector.shape_cast %172 : vector<8x128xf32> to vector<1x8x128xf32>
      tpu.vector_store %arg16[%c0_144, %c0_145, %c0_146], %180 {strides = array<i32>} : memref<2x8x128xf32, #tpu.memory_space<vmem>>, vector<1x8x128xf32>,
      %c1_147 = arith.constant 1 : index
      %c0_148 = arith.constant 0 : index
      %c0_149 = arith.constant 0 : index
      %181 = vector.load %arg16[%c1_147, %c0_148, %c0_149] : memref<2x8x128xf32, #tpu.memory_space<vmem>>, vector<1x8x128xf32>
      %182 = vector.shape_cast %181 : vector<1x8x128xf32> to vector<8x128xf32>
      %183 = vector.shape_cast %177 : vector<8x128xf32> to vector<1x8x128xf32>
      tpu.vector_store %arg16[%c1_147, %c0_148, %c0_149], %183 {strides = array<i32>} : memref<2x8x128xf32, #tpu.memory_space<vmem>>, vector<1x8x128xf32>,
      %184 = arith.index_cast %103 : i32 to index
      %c0_150 = arith.constant 0 : index
      %c0_151 = arith.constant 0 : index
      %185 = vector.load %arg14[%184, %c0_150, %c0_151] : memref<8x8x256xf32, #tpu.memory_space<vmem>>, vector<1x8x128xf32>
      %186 = vector.shape_cast %185 : vector<1x8x128xf32> to vector<8x128xf32>
      %187 = vector.shape_cast %172 : vector<8x128xf32> to vector<1x8x128xf32>
      tpu.vector_store %arg14[%184, %c0_150, %c0_151], %187 {strides = array<i32>} : memref<8x8x256xf32, #tpu.memory_space<vmem>>, vector<1x8x128xf32>,
      %188 = arith.index_cast %105 : i32 to index
      %c0_152 = arith.constant 0 : index
      %c128_153 = arith.constant 128 : index
      %189 = vector.load %arg14[%188, %c0_152, %c128_153] : memref<8x8x256xf32, #tpu.memory_space<vmem>>, vector<1x8x128xf32>
      %190 = vector.shape_cast %189 : vector<1x8x128xf32> to vector<8x128xf32>
      %191 = vector.shape_cast %177 : vector<8x128xf32> to vector<1x8x128xf32>
      tpu.vector_store %arg14[%188, %c0_152, %c128_153], %191 {strides = array<i32>} : memref<8x8x256xf32, #tpu.memory_space<vmem>>, vector<1x8x128xf32>,
    }
    %c0_30 = arith.constant 0 : index
    %c0_31 = arith.constant 0 : index
    %c0_32 = arith.constant 0 : index
    %28 = vector.load %arg14[%c0_30, %c0_31, %c0_32] : memref<8x8x256xf32, #tpu.memory_space<vmem>>, vector<8x8x256xf32>
    %29 = vector.shape_cast %28 : vector<8x8x256xf32> to vector<64x256xf32>
    %c0_33 = arith.constant 0 : index
    %c0_34 = arith.constant 0 : index
    %c0_35 = arith.constant 0 : index
    %30 = vector.load %arg5[%c0_33, %c0_34, %c0_35] : memref<2x256x768xf32, #tpu.memory_space<vmem>>, vector<1x256x768xf32>
    %31 = vector.shape_cast %30 : vector<1x256x768xf32> to vector<256x768xf32>
    %cst_36 = arith.constant dense<0.000000e+00> : vector<64x768xf32>
    %32 = tpu.matmul %29, %31, %cst_36 {dimension_numbers = #tpu.dot_dimension_numbers<[1], [0], [0], [1], [0, 0, 1, 1], [], []>} : vector<64x256xf32>, vector<256x768xf32>, vector<64x768xf32> -> vector<64x768xf32>
    %c1_37 = arith.constant 1 : index
    %c0_38 = arith.constant 0 : index
    %c0_39 = arith.constant 0 : index
    %33 = vector.load %arg7[%c1_37, %c0_38, %c0_39] : memref<3x1x768xf32, #tpu.memory_space<vmem>>, vector<1x1x768xf32>
    %34 = vector.shape_cast %33 : vector<1x1x768xf32> to vector<1x768xf32>
    %35 = vector.broadcast %34 : vector<1x768xf32> to vector<64x768xf32>
    %36 = arith.addf %32, %35 : vector<64x768xf32>
    %37 = vector.shape_cast %36 : vector<64x768xf32> to vector<8x8x768xf32>
    %c0_40 = arith.constant 0 : index
    %c0_41 = arith.constant 0 : index
    %c0_42 = arith.constant 0 : index
    %38 = vector.load %arg15[%c0_40, %c0_41, %c0_42] : memref<8x8x768xf32, #tpu.memory_space<vmem>>, vector<8x8x768xf32>
    tpu.vector_store %arg15[%c0_40, %c0_41, %c0_42], %37 {strides = array<i32>} : memref<8x8x768xf32, #tpu.memory_space<vmem>>, vector<8x8x768xf32>,
    %cst_43 = arith.constant 0.000000e+00 : f32
    %39 = vector.broadcast %cst_43 : f32 to vector<2x8x128xf32>
    %c0_44 = arith.constant 0 : index
    %c0_45 = arith.constant 0 : index
    %c0_46 = arith.constant 0 : index
    %40 = vector.load %arg16[%c0_44, %c0_45, %c0_46] : memref<2x8x128xf32, #tpu.memory_space<vmem>>, vector<2x8x128xf32>
    tpu.vector_store %arg16[%c0_44, %c0_45, %c0_46], %39 {strides = array<i32>} : memref<2x8x128xf32, #tpu.memory_space<vmem>>, vector<2x8x128xf32>,
    %c1_47 = arith.constant 1 : index
    %c0_48 = arith.constant 0 : index
    %c0_49 = arith.constant 0 : index
    %c0_50 = arith.constant 0 : index
    %41 = vector.load %arg8[%c1_47, %c0_48, %c0_49, %c0_50] : memref<3x2x1x128xf32, #tpu.memory_space<vmem>>, vector<1x1x1x128xf32>
    %42 = vector.shape_cast %41 : vector<1x1x1x128xf32> to vector<1x128xf32>
    %43 = vector.shape_cast %42 : vector<1x128xf32> to vector<1x128xf32>
    %44 = vector.broadcast %43 : vector<1x128xf32> to vector<8x128xf32>
    %c1_51 = arith.constant 1 : index
    %c1_52 = arith.constant 1 : index
    %c0_53 = arith.constant 0 : index
    %c0_54 = arith.constant 0 : index
    %45 = vector.load %arg8[%c1_51, %c1_52, %c0_53, %c0_54] : memref<3x2x1x128xf32, #tpu.memory_space<vmem>>, vector<1x1x1x128xf32>
    %46 = vector.shape_cast %45 : vector<1x1x1x128xf32> to vector<1x128xf32>
    %47 = vector.shape_cast %46 : vector<1x128xf32> to vector<1x128xf32>
    %48 = vector.broadcast %47 : vector<1x128xf32> to vector<8x128xf32>
    %c0_i32_55 = arith.constant 0 : i32
    %49 = arith.subi %1, %c0_i32_55 : i32
    %c1_i32_56 = arith.constant 1 : i32
    %c1_i32_57 = arith.constant 1 : i32
    %50 = arith.subi %c1_i32_56, %c1_i32_57 : i32
    %51 = arith.addi %49, %50 : i32
    %c1_i32_58 = arith.constant 1 : i32
    %52 = arith.divsi %51, %c1_i32_58 : i32
    %c1_i32_59 = arith.constant 1 : i32
    %c0_i32_60 = arith.constant 0 : i32
    %c0_i32_61 = arith.constant 0 : i32
    %53 = arith.subi %52, %c0_i32_61 : i32
    %54 = arith.addi %c0_i32_61, %53 : i32
    %c1_i32_62 = arith.constant 1 : i32
    scf.for %arg17 = %c0_i32_61 to %54 step %c1_i32_62  : i32 {
      %102 = arith.muli %arg17, %c1_i32_59 : i32
      %103 = arith.addi %c0_i32_60, %102 : i32
      %c1_i32_116 = arith.constant 1 : i32
      %104 = arith.subi %1, %c1_i32_116 : i32
      %105 = arith.subi %104, %103 : i32
      %c0_117 = arith.constant 0 : index
      %c0_118 = arith.constant 0 : index
      %c0_119 = arith.constant 0 : index
      %106 = vector.load %arg16[%c0_117, %c0_118, %c0_119] : memref<2x8x128xf32, #tpu.memory_space<vmem>>, vector<1x8x128xf32>
      %107 = vector.shape_cast %106 : vector<1x8x128xf32> to vector<8x128xf32>
      %c1_120 = arith.constant 1 : index
      %c0_121 = arith.constant 0 : index
      %c0_122 = arith.constant 0 : index
      %108 = vector.load %arg16[%c1_120, %c0_121, %c0_122] : memref<2x8x128xf32, #tpu.memory_space<vmem>>, vector<1x8x128xf32>
      %109 = vector.shape_cast %108 : vector<1x8x128xf32> to vector<8x128xf32>
      %110 = arith.index_cast %103 : i32 to index
      %c0_123 = arith.constant 0 : index
      %c0_124 = arith.constant 0 : index
      %111 = vector.load %arg15[%110, %c0_123, %c0_124] : memref<8x8x768xf32, #tpu.memory_space<vmem>>, vector<1x8x384xf32>
      %112 = vector.shape_cast %111 : vector<1x8x384xf32> to vector<8x384xf32>
      %113 = arith.index_cast %105 : i32 to index
      %c0_125 = arith.constant 0 : index
      %c384 = arith.constant 384 : index
      %114 = vector.load %arg15[%113, %c0_125, %c384] : memref<8x8x768xf32, #tpu.memory_space<vmem>>, vector<1x8x384xf32>
      %115 = vector.shape_cast %114 : vector<1x8x384xf32> to vector<8x384xf32>
      %c1_126 = arith.constant 1 : index
      %c0_127 = arith.constant 0 : index
      %c0_128 = arith.constant 0 : index
      %c0_129 = arith.constant 0 : index
      %116 = vector.load %arg6[%c1_126, %c0_127, %c0_128, %c0_129] : memref<3x2x128x384xf32, #tpu.memory_space<vmem>>, vector<1x1x128x384xf32>
      %117 = vector.shape_cast %116 : vector<1x1x128x384xf32> to vector<128x384xf32>
      %cst_130 = arith.constant dense<0.000000e+00> : vector<8x384xf32>
      %118 = tpu.matmul %107, %117, %cst_130 {dimension_numbers = #tpu.dot_dimension_numbers<[1], [0], [0], [1], [0, 0, 1, 1], [], []>} : vector<8x128xf32>, vector<128x384xf32>, vector<8x384xf32> -> vector<8x384xf32>
      %c1_131 = arith.constant 1 : index
      %c1_132 = arith.constant 1 : index
      %c0_133 = arith.constant 0 : index
      %c0_134 = arith.constant 0 : index
      %119 = vector.load %arg6[%c1_131, %c1_132, %c0_133, %c0_134] : memref<3x2x128x384xf32, #tpu.memory_space<vmem>>, vector<1x1x128x384xf32>
      %120 = vector.shape_cast %119 : vector<1x1x128x384xf32> to vector<128x384xf32>
      %cst_135 = arith.constant dense<0.000000e+00> : vector<8x384xf32>
      %121 = tpu.matmul %109, %120, %cst_135 {dimension_numbers = #tpu.dot_dimension_numbers<[1], [0], [0], [1], [0, 0, 1, 1], [], []>} : vector<8x128xf32>, vector<128x384xf32>, vector<8x384xf32> -> vector<8x384xf32>
      %122 = vector.extract_strided_slice %112 {offsets = [0, 0], sizes = [8, 256], strides = [1, 1]} : vector<8x384xf32> to vector<8x256xf32>
      %123 = vector.extract_strided_slice %118 {offsets = [0, 0], sizes = [8, 256], strides = [1, 1]} : vector<8x384xf32> to vector<8x256xf32>
      %124 = arith.addf %122, %123 : vector<8x256xf32>
      %cst_136 = arith.constant 5.000000e-01 : f32
      %125 = vector.broadcast %cst_136 : f32 to vector<8x256xf32>
      %126 = arith.mulf %125, %124 : vector<8x256xf32>
      %127 = math.tanh %126 : vector<8x256xf32>
      %cst_137 = arith.constant 1.000000e+00 : f32
      %128 = vector.broadcast %cst_137 : f32 to vector<8x256xf32>
      %129 = arith.addf %127, %128 : vector<8x256xf32>
      %cst_138 = arith.constant 5.000000e-01 : f32
      %130 = vector.broadcast %cst_138 : f32 to vector<8x256xf32>
      %131 = arith.mulf %130, %129 : vector<8x256xf32>
      %132 = vector.extract_strided_slice %131 {offsets = [0, 0], sizes = [8, 128], strides = [1, 1]} : vector<8x256xf32> to vector<8x128xf32>
      %133 = vector.extract_strided_slice %131 {offsets = [0, 128], sizes = [8, 128], strides = [1, 1]} : vector<8x256xf32> to vector<8x128xf32>
      %134 = vector.extract_strided_slice %112 {offsets = [0, 256], sizes = [8, 128], strides = [1, 1]} : vector<8x384xf32> to vector<8x128xf32>
      %135 = vector.extract_strided_slice %118 {offsets = [0, 256], sizes = [8, 128], strides = [1, 1]} : vector<8x384xf32> to vector<8x128xf32>
      %136 = arith.addf %135, %44 : vector<8x128xf32>
      %137 = arith.mulf %132, %136 : vector<8x128xf32>
      %138 = arith.addf %134, %137 : vector<8x128xf32>
      %139 = math.tanh %138 : vector<8x128xf32>
      %cst_139 = arith.constant 1.000000e+00 : f32
      %140 = vector.broadcast %cst_139 : f32 to vector<8x128xf32>
      %141 = arith.subf %140, %133 : vector<8x128xf32>
      %142 = arith.mulf %141, %139 : vector<8x128xf32>
      %143 = arith.mulf %133, %107 : vector<8x128xf32>
      %144 = arith.addf %142, %143 : vector<8x128xf32>
      %145 = vector.extract_strided_slice %115 {offsets = [0, 0], sizes = [8, 256], strides = [1, 1]} : vector<8x384xf32> to vector<8x256xf32>
      %146 = vector.extract_strided_slice %121 {offsets = [0, 0], sizes = [8, 256], strides = [1, 1]} : vector<8x384xf32> to vector<8x256xf32>
      %147 = arith.addf %145, %146 : vector<8x256xf32>
      %cst_140 = arith.constant 5.000000e-01 : f32
      %148 = vector.broadcast %cst_140 : f32 to vector<8x256xf32>
      %149 = arith.mulf %148, %147 : vector<8x256xf32>
      %150 = math.tanh %149 : vector<8x256xf32>
      %cst_141 = arith.constant 1.000000e+00 : f32
      %151 = vector.broadcast %cst_141 : f32 to vector<8x256xf32>
      %152 = arith.addf %150, %151 : vector<8x256xf32>
      %cst_142 = arith.constant 5.000000e-01 : f32
      %153 = vector.broadcast %cst_142 : f32 to vector<8x256xf32>
      %154 = arith.mulf %153, %152 : vector<8x256xf32>
      %155 = vector.extract_strided_slice %154 {offsets = [0, 0], sizes = [8, 128], strides = [1, 1]} : vector<8x256xf32> to vector<8x128xf32>
      %156 = vector.extract_strided_slice %154 {offsets = [0, 128], sizes = [8, 128], strides = [1, 1]} : vector<8x256xf32> to vector<8x128xf32>
      %157 = vector.extract_strided_slice %115 {offsets = [0, 256], sizes = [8, 128], strides = [1, 1]} : vector<8x384xf32> to vector<8x128xf32>
      %158 = vector.extract_strided_slice %121 {offsets = [0, 256], sizes = [8, 128], strides = [1, 1]} : vector<8x384xf32> to vector<8x128xf32>
      %159 = arith.addf %158, %48 : vector<8x128xf32>
      %160 = arith.mulf %155, %159 : vector<8x128xf32>
      %161 = arith.addf %157, %160 : vector<8x128xf32>
      %162 = math.tanh %161 : vector<8x128xf32>
      %cst_143 = arith.constant 1.000000e+00 : f32
      %163 = vector.broadcast %cst_143 : f32 to vector<8x128xf32>
      %164 = arith.subf %163, %156 : vector<8x128xf32>
      %165 = arith.mulf %164, %162 : vector<8x128xf32>
      %166 = arith.mulf %156, %109 : vector<8x128xf32>
      %167 = arith.addf %165, %166 : vector<8x128xf32>
      %168 = vector.broadcast %103 : i32 to vector<8x1xi32>
      %169 = arith.cmpi slt, %168, %0 : vector<8x1xi32>
      %170 = vector.shape_cast %169 : vector<8x1xi1> to vector<8x1xi1>
      %171 = vector.broadcast %170 : vector<8x1xi1> to vector<8x128xi1>
      %172 = arith.select %171, %144, %107 : vector<8x128xi1>, vector<8x128xf32>
      %173 = vector.broadcast %105 : i32 to vector<8x1xi32>
      %174 = arith.cmpi slt, %173, %0 : vector<8x1xi32>
      %175 = vector.shape_cast %174 : vector<8x1xi1> to vector<8x1xi1>
      %176 = vector.broadcast %175 : vector<8x1xi1> to vector<8x128xi1>
      %177 = arith.select %176, %167, %109 : vector<8x128xi1>, vector<8x128xf32>
      %c0_144 = arith.constant 0 : index
      %c0_145 = arith.constant 0 : index
      %c0_146 = arith.constant 0 : index
      %178 = vector.load %arg16[%c0_144, %c0_145, %c0_146] : memref<2x8x128xf32, #tpu.memory_space<vmem>>, vector<1x8x128xf32>
      %179 = vector.shape_cast %178 : vector<1x8x128xf32> to vector<8x128xf32>
      %180 = vector.shape_cast %172 : vector<8x128xf32> to vector<1x8x128xf32>
      tpu.vector_store %arg16[%c0_144, %c0_145, %c0_146], %180 {strides = array<i32>} : memref<2x8x128xf32, #tpu.memory_space<vmem>>, vector<1x8x128xf32>,
      %c1_147 = arith.constant 1 : index
      %c0_148 = arith.constant 0 : index
      %c0_149 = arith.constant 0 : index
      %181 = vector.load %arg16[%c1_147, %c0_148, %c0_149] : memref<2x8x128xf32, #tpu.memory_space<vmem>>, vector<1x8x128xf32>
      %182 = vector.shape_cast %181 : vector<1x8x128xf32> to vector<8x128xf32>
      %183 = vector.shape_cast %177 : vector<8x128xf32> to vector<1x8x128xf32>
      tpu.vector_store %arg16[%c1_147, %c0_148, %c0_149], %183 {strides = array<i32>} : memref<2x8x128xf32, #tpu.memory_space<vmem>>, vector<1x8x128xf32>,
      %184 = arith.index_cast %103 : i32 to index
      %c0_150 = arith.constant 0 : index
      %c0_151 = arith.constant 0 : index
      %185 = vector.load %arg14[%184, %c0_150, %c0_151] : memref<8x8x256xf32, #tpu.memory_space<vmem>>, vector<1x8x128xf32>
      %186 = vector.shape_cast %185 : vector<1x8x128xf32> to vector<8x128xf32>
      %187 = vector.shape_cast %172 : vector<8x128xf32> to vector<1x8x128xf32>
      tpu.vector_store %arg14[%184, %c0_150, %c0_151], %187 {strides = array<i32>} : memref<8x8x256xf32, #tpu.memory_space<vmem>>, vector<1x8x128xf32>,
      %188 = arith.index_cast %105 : i32 to index
      %c0_152 = arith.constant 0 : index
      %c128_153 = arith.constant 128 : index
      %189 = vector.load %arg14[%188, %c0_152, %c128_153] : memref<8x8x256xf32, #tpu.memory_space<vmem>>, vector<1x8x128xf32>
      %190 = vector.shape_cast %189 : vector<1x8x128xf32> to vector<8x128xf32>
      %191 = vector.shape_cast %177 : vector<8x128xf32> to vector<1x8x128xf32>
      tpu.vector_store %arg14[%188, %c0_152, %c128_153], %191 {strides = array<i32>} : memref<8x8x256xf32, #tpu.memory_space<vmem>>, vector<1x8x128xf32>,
    }
    %c0_63 = arith.constant 0 : index
    %c0_64 = arith.constant 0 : index
    %c0_65 = arith.constant 0 : index
    %55 = vector.load %arg14[%c0_63, %c0_64, %c0_65] : memref<8x8x256xf32, #tpu.memory_space<vmem>>, vector<8x8x256xf32>
    %56 = vector.shape_cast %55 : vector<8x8x256xf32> to vector<64x256xf32>
    %c1_66 = arith.constant 1 : index
    %c0_67 = arith.constant 0 : index
    %c0_68 = arith.constant 0 : index
    %57 = vector.load %arg5[%c1_66, %c0_67, %c0_68] : memref<2x256x768xf32, #tpu.memory_space<vmem>>, vector<1x256x768xf32>
    %58 = vector.shape_cast %57 : vector<1x256x768xf32> to vector<256x768xf32>
    %cst_69 = arith.constant dense<0.000000e+00> : vector<64x768xf32>
    %59 = tpu.matmul %56, %58, %cst_69 {dimension_numbers = #tpu.dot_dimension_numbers<[1], [0], [0], [1], [0, 0, 1, 1], [], []>} : vector<64x256xf32>, vector<256x768xf32>, vector<64x768xf32> -> vector<64x768xf32>
    %c2 = arith.constant 2 : index
    %c0_70 = arith.constant 0 : index
    %c0_71 = arith.constant 0 : index
    %60 = vector.load %arg7[%c2, %c0_70, %c0_71] : memref<3x1x768xf32, #tpu.memory_space<vmem>>, vector<1x1x768xf32>
    %61 = vector.shape_cast %60 : vector<1x1x768xf32> to vector<1x768xf32>
    %62 = vector.broadcast %61 : vector<1x768xf32> to vector<64x768xf32>
    %63 = arith.addf %59, %62 : vector<64x768xf32>
    %64 = vector.shape_cast %63 : vector<64x768xf32> to vector<8x8x768xf32>
    %c0_72 = arith.constant 0 : index
    %c0_73 = arith.constant 0 : index
    %c0_74 = arith.constant 0 : index
    %65 = vector.load %arg15[%c0_72, %c0_73, %c0_74] : memref<8x8x768xf32, #tpu.memory_space<vmem>>, vector<8x8x768xf32>
    tpu.vector_store %arg15[%c0_72, %c0_73, %c0_74], %64 {strides = array<i32>} : memref<8x8x768xf32, #tpu.memory_space<vmem>>, vector<8x8x768xf32>,
    %cst_75 = arith.constant 0.000000e+00 : f32
    %66 = vector.broadcast %cst_75 : f32 to vector<2x8x128xf32>
    %c0_76 = arith.constant 0 : index
    %c0_77 = arith.constant 0 : index
    %c0_78 = arith.constant 0 : index
    %67 = vector.load %arg16[%c0_76, %c0_77, %c0_78] : memref<2x8x128xf32, #tpu.memory_space<vmem>>, vector<2x8x128xf32>
    tpu.vector_store %arg16[%c0_76, %c0_77, %c0_78], %66 {strides = array<i32>} : memref<2x8x128xf32, #tpu.memory_space<vmem>>, vector<2x8x128xf32>,
    %c2_79 = arith.constant 2 : index
    %c0_80 = arith.constant 0 : index
    %c0_81 = arith.constant 0 : index
    %c0_82 = arith.constant 0 : index
    %68 = vector.load %arg8[%c2_79, %c0_80, %c0_81, %c0_82] : memref<3x2x1x128xf32, #tpu.memory_space<vmem>>, vector<1x1x1x128xf32>
    %69 = vector.shape_cast %68 : vector<1x1x1x128xf32> to vector<1x128xf32>
    %70 = vector.shape_cast %69 : vector<1x128xf32> to vector<1x128xf32>
    %71 = vector.broadcast %70 : vector<1x128xf32> to vector<8x128xf32>
    %c2_83 = arith.constant 2 : index
    %c1_84 = arith.constant 1 : index
    %c0_85 = arith.constant 0 : index
    %c0_86 = arith.constant 0 : index
    %72 = vector.load %arg8[%c2_83, %c1_84, %c0_85, %c0_86] : memref<3x2x1x128xf32, #tpu.memory_space<vmem>>, vector<1x1x1x128xf32>
    %73 = vector.shape_cast %72 : vector<1x1x1x128xf32> to vector<1x128xf32>
    %74 = vector.shape_cast %73 : vector<1x128xf32> to vector<1x128xf32>
    %75 = vector.broadcast %74 : vector<1x128xf32> to vector<8x128xf32>
    %c0_i32_87 = arith.constant 0 : i32
    %76 = arith.subi %1, %c0_i32_87 : i32
    %c1_i32_88 = arith.constant 1 : i32
    %c1_i32_89 = arith.constant 1 : i32
    %77 = arith.subi %c1_i32_88, %c1_i32_89 : i32
    %78 = arith.addi %76, %77 : i32
    %c1_i32_90 = arith.constant 1 : i32
    %79 = arith.divsi %78, %c1_i32_90 : i32
    %c1_i32_91 = arith.constant 1 : i32
    %c0_i32_92 = arith.constant 0 : i32
    %c0_i32_93 = arith.constant 0 : i32
    %80 = arith.subi %79, %c0_i32_93 : i32
    %81 = arith.addi %c0_i32_93, %80 : i32
    %c1_i32_94 = arith.constant 1 : i32
    scf.for %arg17 = %c0_i32_93 to %81 step %c1_i32_94  : i32 {
      %102 = arith.muli %arg17, %c1_i32_91 : i32
      %103 = arith.addi %c0_i32_92, %102 : i32
      %c1_i32_116 = arith.constant 1 : i32
      %104 = arith.subi %1, %c1_i32_116 : i32
      %105 = arith.subi %104, %103 : i32
      %c0_117 = arith.constant 0 : index
      %c0_118 = arith.constant 0 : index
      %c0_119 = arith.constant 0 : index
      %106 = vector.load %arg16[%c0_117, %c0_118, %c0_119] : memref<2x8x128xf32, #tpu.memory_space<vmem>>, vector<1x8x128xf32>
      %107 = vector.shape_cast %106 : vector<1x8x128xf32> to vector<8x128xf32>
      %c1_120 = arith.constant 1 : index
      %c0_121 = arith.constant 0 : index
      %c0_122 = arith.constant 0 : index
      %108 = vector.load %arg16[%c1_120, %c0_121, %c0_122] : memref<2x8x128xf32, #tpu.memory_space<vmem>>, vector<1x8x128xf32>
      %109 = vector.shape_cast %108 : vector<1x8x128xf32> to vector<8x128xf32>
      %110 = arith.index_cast %103 : i32 to index
      %c0_123 = arith.constant 0 : index
      %c0_124 = arith.constant 0 : index
      %111 = vector.load %arg15[%110, %c0_123, %c0_124] : memref<8x8x768xf32, #tpu.memory_space<vmem>>, vector<1x8x384xf32>
      %112 = vector.shape_cast %111 : vector<1x8x384xf32> to vector<8x384xf32>
      %113 = arith.index_cast %105 : i32 to index
      %c0_125 = arith.constant 0 : index
      %c384 = arith.constant 384 : index
      %114 = vector.load %arg15[%113, %c0_125, %c384] : memref<8x8x768xf32, #tpu.memory_space<vmem>>, vector<1x8x384xf32>
      %115 = vector.shape_cast %114 : vector<1x8x384xf32> to vector<8x384xf32>
      %c2_126 = arith.constant 2 : index
      %c0_127 = arith.constant 0 : index
      %c0_128 = arith.constant 0 : index
      %c0_129 = arith.constant 0 : index
      %116 = vector.load %arg6[%c2_126, %c0_127, %c0_128, %c0_129] : memref<3x2x128x384xf32, #tpu.memory_space<vmem>>, vector<1x1x128x384xf32>
      %117 = vector.shape_cast %116 : vector<1x1x128x384xf32> to vector<128x384xf32>
      %cst_130 = arith.constant dense<0.000000e+00> : vector<8x384xf32>
      %118 = tpu.matmul %107, %117, %cst_130 {dimension_numbers = #tpu.dot_dimension_numbers<[1], [0], [0], [1], [0, 0, 1, 1], [], []>} : vector<8x128xf32>, vector<128x384xf32>, vector<8x384xf32> -> vector<8x384xf32>
      %c2_131 = arith.constant 2 : index
      %c1_132 = arith.constant 1 : index
      %c0_133 = arith.constant 0 : index
      %c0_134 = arith.constant 0 : index
      %119 = vector.load %arg6[%c2_131, %c1_132, %c0_133, %c0_134] : memref<3x2x128x384xf32, #tpu.memory_space<vmem>>, vector<1x1x128x384xf32>
      %120 = vector.shape_cast %119 : vector<1x1x128x384xf32> to vector<128x384xf32>
      %cst_135 = arith.constant dense<0.000000e+00> : vector<8x384xf32>
      %121 = tpu.matmul %109, %120, %cst_135 {dimension_numbers = #tpu.dot_dimension_numbers<[1], [0], [0], [1], [0, 0, 1, 1], [], []>} : vector<8x128xf32>, vector<128x384xf32>, vector<8x384xf32> -> vector<8x384xf32>
      %122 = vector.extract_strided_slice %112 {offsets = [0, 0], sizes = [8, 256], strides = [1, 1]} : vector<8x384xf32> to vector<8x256xf32>
      %123 = vector.extract_strided_slice %118 {offsets = [0, 0], sizes = [8, 256], strides = [1, 1]} : vector<8x384xf32> to vector<8x256xf32>
      %124 = arith.addf %122, %123 : vector<8x256xf32>
      %cst_136 = arith.constant 5.000000e-01 : f32
      %125 = vector.broadcast %cst_136 : f32 to vector<8x256xf32>
      %126 = arith.mulf %125, %124 : vector<8x256xf32>
      %127 = math.tanh %126 : vector<8x256xf32>
      %cst_137 = arith.constant 1.000000e+00 : f32
      %128 = vector.broadcast %cst_137 : f32 to vector<8x256xf32>
      %129 = arith.addf %127, %128 : vector<8x256xf32>
      %cst_138 = arith.constant 5.000000e-01 : f32
      %130 = vector.broadcast %cst_138 : f32 to vector<8x256xf32>
      %131 = arith.mulf %130, %129 : vector<8x256xf32>
      %132 = vector.extract_strided_slice %131 {offsets = [0, 0], sizes = [8, 128], strides = [1, 1]} : vector<8x256xf32> to vector<8x128xf32>
      %133 = vector.extract_strided_slice %131 {offsets = [0, 128], sizes = [8, 128], strides = [1, 1]} : vector<8x256xf32> to vector<8x128xf32>
      %134 = vector.extract_strided_slice %112 {offsets = [0, 256], sizes = [8, 128], strides = [1, 1]} : vector<8x384xf32> to vector<8x128xf32>
      %135 = vector.extract_strided_slice %118 {offsets = [0, 256], sizes = [8, 128], strides = [1, 1]} : vector<8x384xf32> to vector<8x128xf32>
      %136 = arith.addf %135, %71 : vector<8x128xf32>
      %137 = arith.mulf %132, %136 : vector<8x128xf32>
      %138 = arith.addf %134, %137 : vector<8x128xf32>
      %139 = math.tanh %138 : vector<8x128xf32>
      %cst_139 = arith.constant 1.000000e+00 : f32
      %140 = vector.broadcast %cst_139 : f32 to vector<8x128xf32>
      %141 = arith.subf %140, %133 : vector<8x128xf32>
      %142 = arith.mulf %141, %139 : vector<8x128xf32>
      %143 = arith.mulf %133, %107 : vector<8x128xf32>
      %144 = arith.addf %142, %143 : vector<8x128xf32>
      %145 = vector.extract_strided_slice %115 {offsets = [0, 0], sizes = [8, 256], strides = [1, 1]} : vector<8x384xf32> to vector<8x256xf32>
      %146 = vector.extract_strided_slice %121 {offsets = [0, 0], sizes = [8, 256], strides = [1, 1]} : vector<8x384xf32> to vector<8x256xf32>
      %147 = arith.addf %145, %146 : vector<8x256xf32>
      %cst_140 = arith.constant 5.000000e-01 : f32
      %148 = vector.broadcast %cst_140 : f32 to vector<8x256xf32>
      %149 = arith.mulf %148, %147 : vector<8x256xf32>
      %150 = math.tanh %149 : vector<8x256xf32>
      %cst_141 = arith.constant 1.000000e+00 : f32
      %151 = vector.broadcast %cst_141 : f32 to vector<8x256xf32>
      %152 = arith.addf %150, %151 : vector<8x256xf32>
      %cst_142 = arith.constant 5.000000e-01 : f32
      %153 = vector.broadcast %cst_142 : f32 to vector<8x256xf32>
      %154 = arith.mulf %153, %152 : vector<8x256xf32>
      %155 = vector.extract_strided_slice %154 {offsets = [0, 0], sizes = [8, 128], strides = [1, 1]} : vector<8x256xf32> to vector<8x128xf32>
      %156 = vector.extract_strided_slice %154 {offsets = [0, 128], sizes = [8, 128], strides = [1, 1]} : vector<8x256xf32> to vector<8x128xf32>
      %157 = vector.extract_strided_slice %115 {offsets = [0, 256], sizes = [8, 128], strides = [1, 1]} : vector<8x384xf32> to vector<8x128xf32>
      %158 = vector.extract_strided_slice %121 {offsets = [0, 256], sizes = [8, 128], strides = [1, 1]} : vector<8x384xf32> to vector<8x128xf32>
      %159 = arith.addf %158, %75 : vector<8x128xf32>
      %160 = arith.mulf %155, %159 : vector<8x128xf32>
      %161 = arith.addf %157, %160 : vector<8x128xf32>
      %162 = math.tanh %161 : vector<8x128xf32>
      %cst_143 = arith.constant 1.000000e+00 : f32
      %163 = vector.broadcast %cst_143 : f32 to vector<8x128xf32>
      %164 = arith.subf %163, %156 : vector<8x128xf32>
      %165 = arith.mulf %164, %162 : vector<8x128xf32>
      %166 = arith.mulf %156, %109 : vector<8x128xf32>
      %167 = arith.addf %165, %166 : vector<8x128xf32>
      %168 = vector.broadcast %103 : i32 to vector<8x1xi32>
      %169 = arith.cmpi slt, %168, %0 : vector<8x1xi32>
      %170 = vector.shape_cast %169 : vector<8x1xi1> to vector<8x1xi1>
      %171 = vector.broadcast %170 : vector<8x1xi1> to vector<8x128xi1>
      %172 = arith.select %171, %144, %107 : vector<8x128xi1>, vector<8x128xf32>
      %173 = vector.broadcast %105 : i32 to vector<8x1xi32>
      %174 = arith.cmpi slt, %173, %0 : vector<8x1xi32>
      %175 = vector.shape_cast %174 : vector<8x1xi1> to vector<8x1xi1>
      %176 = vector.broadcast %175 : vector<8x1xi1> to vector<8x128xi1>
      %177 = arith.select %176, %167, %109 : vector<8x128xi1>, vector<8x128xf32>
      %c0_144 = arith.constant 0 : index
      %c0_145 = arith.constant 0 : index
      %c0_146 = arith.constant 0 : index
      %178 = vector.load %arg16[%c0_144, %c0_145, %c0_146] : memref<2x8x128xf32, #tpu.memory_space<vmem>>, vector<1x8x128xf32>
      %179 = vector.shape_cast %178 : vector<1x8x128xf32> to vector<8x128xf32>
      %180 = vector.shape_cast %172 : vector<8x128xf32> to vector<1x8x128xf32>
      tpu.vector_store %arg16[%c0_144, %c0_145, %c0_146], %180 {strides = array<i32>} : memref<2x8x128xf32, #tpu.memory_space<vmem>>, vector<1x8x128xf32>,
      %c1_147 = arith.constant 1 : index
      %c0_148 = arith.constant 0 : index
      %c0_149 = arith.constant 0 : index
      %181 = vector.load %arg16[%c1_147, %c0_148, %c0_149] : memref<2x8x128xf32, #tpu.memory_space<vmem>>, vector<1x8x128xf32>
      %182 = vector.shape_cast %181 : vector<1x8x128xf32> to vector<8x128xf32>
      %183 = vector.shape_cast %177 : vector<8x128xf32> to vector<1x8x128xf32>
      tpu.vector_store %arg16[%c1_147, %c0_148, %c0_149], %183 {strides = array<i32>} : memref<2x8x128xf32, #tpu.memory_space<vmem>>, vector<1x8x128xf32>,
    }
    %c0_95 = arith.constant 0 : index
    %c0_96 = arith.constant 0 : index
    %c0_97 = arith.constant 0 : index
    %82 = vector.load %arg16[%c0_95, %c0_96, %c0_97] : memref<2x8x128xf32, #tpu.memory_space<vmem>>, vector<1x8x128xf32>
    %83 = vector.shape_cast %82 : vector<1x8x128xf32> to vector<8x128xf32>
    %c1_98 = arith.constant 1 : index
    %c0_99 = arith.constant 0 : index
    %c0_100 = arith.constant 0 : index
    %84 = vector.load %arg16[%c1_98, %c0_99, %c0_100] : memref<2x8x128xf32, #tpu.memory_space<vmem>>, vector<1x8x128xf32>
    %85 = vector.shape_cast %84 : vector<1x8x128xf32> to vector<8x128xf32>
    %c0_101 = arith.constant 0 : index
    %c0_102 = arith.constant 0 : index
    %86 = vector.load %arg9[%c0_101, %c0_102] : memref<256x128xf32, #tpu.memory_space<vmem>>, vector<128x128xf32>
    %cst_103 = arith.constant dense<0.000000e+00> : vector<8x128xf32>
    %87 = tpu.matmul %83, %86, %cst_103 {dimension_numbers = #tpu.dot_dimension_numbers<[1], [0], [0], [1], [0, 0, 1, 1], [], []>} : vector<8x128xf32>, vector<128x128xf32>, vector<8x128xf32> -> vector<8x128xf32>
    %c128 = arith.constant 128 : index
    %c0_104 = arith.constant 0 : index
    %88 = vector.load %arg9[%c128, %c0_104] : memref<256x128xf32, #tpu.memory_space<vmem>>, vector<128x128xf32>
    %cst_105 = arith.constant dense<0.000000e+00> : vector<8x128xf32>
    %89 = tpu.matmul %85, %88, %cst_105 {dimension_numbers = #tpu.dot_dimension_numbers<[1], [0], [0], [1], [0, 0, 1, 1], [], []>} : vector<8x128xf32>, vector<128x128xf32>, vector<8x128xf32> -> vector<8x128xf32>
    %90 = arith.addf %87, %89 : vector<8x128xf32>
    %c0_106 = arith.constant 0 : index
    %c0_107 = arith.constant 0 : index
    %91 = vector.load %arg10[%c0_106, %c0_107] : memref<1x128xf32, #tpu.memory_space<vmem>>, vector<1x128xf32>
    %92 = vector.broadcast %91 : vector<1x128xf32> to vector<8x128xf32>
    %93 = arith.addf %90, %92 : vector<8x128xf32>
    %cst_108 = arith.constant 0.000000e+00 : f32
    %94 = vector.broadcast %cst_108 : f32 to vector<8x128xf32>
    %95 = arith.maximumf %93, %94 : vector<8x128xf32>
    %c0_109 = arith.constant 0 : index
    %c0_110 = arith.constant 0 : index
    %96 = vector.load %arg11[%c0_109, %c0_110] : memref<128x128xf32, #tpu.memory_space<vmem>>, vector<128x128xf32>
    %cst_111 = arith.constant dense<0.000000e+00> : vector<8x128xf32>
    %97 = tpu.matmul %95, %96, %cst_111 {dimension_numbers = #tpu.dot_dimension_numbers<[1], [0], [0], [1], [0, 0, 1, 1], [], []>} : vector<8x128xf32>, vector<128x128xf32>, vector<8x128xf32> -> vector<8x128xf32>
    %c0_112 = arith.constant 0 : index
    %c0_113 = arith.constant 0 : index
    %98 = vector.load %arg12[%c0_112, %c0_113] : memref<1x128xf32, #tpu.memory_space<vmem>>, vector<1x128xf32>
    %99 = vector.broadcast %98 : vector<1x128xf32> to vector<8x128xf32>
    %100 = arith.addf %97, %99 : vector<8x128xf32>
    %c0_114 = arith.constant 0 : index
    %c0_115 = arith.constant 0 : index
    %101 = vector.load %arg13[%c0_114, %c0_115] : memref<8x128xf32, #tpu.memory_space<vmem>>, vector<8x128xf32>
    tpu.vector_store %arg13[%c0_114, %c0_115], %100 {strides = array<i32>} : memref<8x128xf32, #tpu.memory_space<vmem>>, vector<8x128xf32>,
    return
  }
  func.func @transform_0(%arg0: i32, %arg1: memref<1xi32, #tpu.memory_space<smem>>) -> (i32, i32) {
    %c0_i32 = arith.constant 0 : i32
    %c0_i32_0 = arith.constant 0 : i32
    return %arg0, %c0_i32 : i32, i32
  }
  func.func @transform_1(%arg0: i32, %arg1: memref<1xi32, #tpu.memory_space<smem>>) -> (i32, i32, i32) {
    %c0_i32 = arith.constant 0 : i32
    %c0_i32_0 = arith.constant 0 : i32
    %c0_i32_1 = arith.constant 0 : i32
    return %c0_i32, %arg0, %c0_i32_0 : i32, i32, i32
  }
  func.func @transform_2(%arg0: i32, %arg1: memref<1xi32, #tpu.memory_space<smem>>) -> (i32, i32) {
    %c0_i32 = arith.constant 0 : i32
    %c0_i32_0 = arith.constant 0 : i32
    %c0_i32_1 = arith.constant 0 : i32
    return %c0_i32, %c0_i32_0 : i32, i32
  }
  func.func @transform_3(%arg0: i32, %arg1: memref<1xi32, #tpu.memory_space<smem>>) -> (i32, i32, i32) {
    %c0_i32 = arith.constant 0 : i32
    %c0_i32_0 = arith.constant 0 : i32
    %c0_i32_1 = arith.constant 0 : i32
    %c0_i32_2 = arith.constant 0 : i32
    return %c0_i32, %c0_i32_0, %c0_i32_1 : i32, i32, i32
  }
  func.func @transform_4(%arg0: i32, %arg1: memref<1xi32, #tpu.memory_space<smem>>) -> (i32, i32, i32, i32) {
    %c0_i32 = arith.constant 0 : i32
    %c0_i32_0 = arith.constant 0 : i32
    %c0_i32_1 = arith.constant 0 : i32
    %c0_i32_2 = arith.constant 0 : i32
    %c0_i32_3 = arith.constant 0 : i32
    return %c0_i32, %c0_i32_0, %c0_i32_1, %c0_i32_2 : i32, i32, i32, i32
  }
  func.func @transform_5(%arg0: i32, %arg1: memref<1xi32, #tpu.memory_space<smem>>) -> (i32, i32, i32) {
    %c0_i32 = arith.constant 0 : i32
    %c0_i32_0 = arith.constant 0 : i32
    %c0_i32_1 = arith.constant 0 : i32
    %c0_i32_2 = arith.constant 0 : i32
    return %c0_i32, %c0_i32_0, %c0_i32_1 : i32, i32, i32
  }
  func.func @transform_6(%arg0: i32, %arg1: memref<1xi32, #tpu.memory_space<smem>>) -> (i32, i32, i32, i32) {
    %c0_i32 = arith.constant 0 : i32
    %c0_i32_0 = arith.constant 0 : i32
    %c0_i32_1 = arith.constant 0 : i32
    %c0_i32_2 = arith.constant 0 : i32
    %c0_i32_3 = arith.constant 0 : i32
    return %c0_i32, %c0_i32_0, %c0_i32_1, %c0_i32_2 : i32, i32, i32, i32
  }
  func.func @transform_7(%arg0: i32, %arg1: memref<1xi32, #tpu.memory_space<smem>>) -> (i32, i32) {
    %c0_i32 = arith.constant 0 : i32
    %c0_i32_0 = arith.constant 0 : i32
    %c0_i32_1 = arith.constant 0 : i32
    return %c0_i32, %c0_i32_0 : i32, i32
  }
  func.func @transform_8(%arg0: i32, %arg1: memref<1xi32, #tpu.memory_space<smem>>) -> (i32, i32) {
    %c0_i32 = arith.constant 0 : i32
    %c0_i32_0 = arith.constant 0 : i32
    %c0_i32_1 = arith.constant 0 : i32
    return %c0_i32, %c0_i32_0 : i32, i32
  }
  func.func @transform_9(%arg0: i32, %arg1: memref<1xi32, #tpu.memory_space<smem>>) -> (i32, i32) {
    %c0_i32 = arith.constant 0 : i32
    %c0_i32_0 = arith.constant 0 : i32
    %c0_i32_1 = arith.constant 0 : i32
    return %c0_i32, %c0_i32_0 : i32, i32
  }
  func.func @transform_10(%arg0: i32, %arg1: memref<1xi32, #tpu.memory_space<smem>>) -> (i32, i32) {
    %c0_i32 = arith.constant 0 : i32
    %c0_i32_0 = arith.constant 0 : i32
    %c0_i32_1 = arith.constant 0 : i32
    return %c0_i32, %c0_i32_0 : i32, i32
  }
  func.func @transform_11(%arg0: i32, %arg1: memref<1xi32, #tpu.memory_space<smem>>) -> (i32, i32) {
    %c0_i32 = arith.constant 0 : i32
    %c0_i32_0 = arith.constant 0 : i32
    return %arg0, %c0_i32 : i32, i32
  }
}

</mosaic_0001>

<llo_original>
// kernel: tpu_custom_call.1
$region0: #{tpu_custom_call.1}
  #allocation0 [shape = 'u32[]', space=smem, size = 0x4, offset = 0x4, fixed_abs, tag = 'smem constant byte address 0x4 - core index']
  #allocation1 [shape = 'u32[144,128]{1,0:T(1,128)}', space=vmem, size = 0x12000, scoped, tag = 'internal scratch']
  #allocation2 [shape = 'f32[8,8,256]{2,1,0:T(8,128)}', space=vmem, size = 0x10000, scoped, tag = 'scratch operand']
  #allocation3 [shape = 'f32[8,8,768]{2,1,0:T(8,128)}', space=vmem, size = 0x30000, scoped, tag = 'scratch operand']
  #allocation4 [shape = 'f32[2,8,128]{2,1,0:T(8,128)}', space=vmem, size = 0x2000, scoped, tag = 'scratch operand']
  #allocation5 [shape = 's32[1]{0}', space=sflag, size = 0x4, scoped, tag = 'scoped memory for tpu_custom_call.1']
  #allocation6 [shape = 's32[1]{0:T(128)S(6)}', space=smem, size = 0x200, scoped, tag = 'prefetched SMEM operand 0']
  %s0 = inlined_call_operand.<no memory space> [shape: s32[1], index: 0, kind: input, shape index: {}]
  %s1 = inlined_call_operand.vmem [shape: s32[8,1], index: 1, kind: input, shape index: {}]
  %s2 = inlined_call_operand.hbm [shape: f32[8,8,128], index: 2, kind: input, shape index: {}]
  %s3 = inlined_call_operand.hbm [shape: f32[128,768], index: 3, kind: input, shape index: {}]
  %s4 = inlined_call_operand.hbm [shape: f32[2,256,768], index: 4, kind: input, shape index: {}]
  %s5 = inlined_call_operand.hbm [shape: f32[3,2,128,384], index: 5, kind: input, shape index: {}]
  %s6 = inlined_call_operand.hbm [shape: f32[3,1,768], index: 6, kind: input, shape index: {}]
  %s7 = inlined_call_operand.hbm [shape: f32[3,2,1,128], index: 7, kind: input, shape index: {}]
  %s8 = inlined_call_operand.hbm [shape: f32[256,128], index: 8, kind: input, shape index: {}]
  %s9 = inlined_call_operand.hbm [shape: f32[1,128], index: 9, kind: input, shape index: {}]
  %s10 = inlined_call_operand.hbm [shape: f32[128,128], index: 10, kind: input, shape index: {}]
  %s11 = inlined_call_operand.hbm [shape: f32[1,128], index: 11, kind: input, shape index: {}]
  %s12 = inlined_call_operand.hbm [shape: f32[8,128], index: 12, kind: output, shape index: {}]
  %s13 = sld [smem:[#allocation0]]
  $region115: #{tpu_custom_call.1} parent=0
    _
  %s15 = ssub.s32 1, %s13
  %s16 = scalar_select 0, %s15, %s13
  %17 = sst [smem:[#allocation6]] %s0
  $region1: #{tpu_custom_call.1} parent=0
    #allocation7 [shape = 'u8[32768]{0}', space=vmem, size = 0x8000, scoped, tag = 'input window, operand 2, single buffered']
    #allocation8 [shape = 's32[1]{0}', space=sflag, size = 0x4, scoped, tag = 'scoped memory for tpu_custom_call.1']
    #allocation9 [shape = 's32[1]{0}', space=sflag, size = 0x4, scoped, tag = 'scoped memory for tpu_custom_call.1']
    #allocation10 [shape = 'u8[393216]{0}', space=vmem, size = 0x60000, scoped, tag = 'input window, operand 3, single buffered']
    #allocation11 [shape = 's32[1]{0}', space=sflag, size = 0x4, scoped, tag = 'scoped memory for tpu_custom_call.1']
    #allocation12 [shape = 'u8[1572864]{0}', space=vmem, size = 0x180000, scoped, tag = 'input window, operand 4, single buffered']
    #allocation13 [shape = 'u8[1179648]{0}', space=vmem, size = 0x120000, scoped, tag = 'input window, operand 5, single buffered']
    #allocation14 [shape = 's32[1]{0}', space=sflag, size = 0x4, scoped, tag = 'scoped memory for tpu_custom_call.1']
    #allocation15 [shape = 'u8[9216]{0}', space=vmem, size = 0x2400, scoped, tag = 'input window, operand 6, single buffered']
    #allocation16 [shape = 'u8[3072]{0}', space=vmem, size = 0xc00, scoped, tag = 'input window, operand 7, single buffered']
    #allocation17 [shape = 's32[1]{0}', space=sflag, size = 0x4, scoped, tag = 'scoped memory for tpu_custom_call.1']
    #allocation18 [shape = 'u8[131072]{0}', space=vmem, size = 0x20000, scoped, tag = 'input window, operand 8, single buffered']
    #allocation19 [shape = 'u8[512]{0}', space=vmem, size = 0x400, scoped, tag = 'input window, operand 9, single buffered']
    #allocation20 [shape = 's32[1]{0}', space=sflag, size = 0x4, scoped, tag = 'scoped memory for tpu_custom_call.1']
    #allocation21 [shape = 'u8[65536]{0}', space=vmem, size = 0x10000, scoped, tag = 'input window, operand 10, single buffered']
    #allocation22 [shape = 'u8[512]{0}', space=vmem, size = 0x400, scoped, tag = 'input window, operand 11, single buffered']
    #allocation23 [shape = 's32[1]{0}', space=sflag, size = 0x4, scoped, tag = 'scoped memory for tpu_custom_call.1']
    #allocation24 [shape = 'u8[4096]{0}', space=vmem, size = 0x1000, scoped, tag = 'output window, operand 0, single buffered']
    %18 = vsyncpa [#allocation8], 0
    %19 = vsyncpa [#allocation11], 0
    %20 = vsyncpa [#allocation14], 0
    %21 = vsyncpa [#allocation17], 0
    %22 = vsyncpa [#allocation20], 0
    %23 = vsyncpa [#allocation23], 0
    %24 = vsyncpa [#allocation9], 0
    // Predicated region
    $region2: #{tpu_custom_call.1} parent=1 // pred_check
      _
    $region3: #{tpu_custom_call.1} parent=1 // pred_check_branch
      %26 = sbr.rel (0) target = $region5
    $region4: #{tpu_custom_call.1} parent=1 // pred_region
      _
    $region5: #{tpu_custom_call.1} parent=1 // pred_fallthru
      _
    // Predicated region
    $region6: #{tpu_custom_call.1} parent=1 // pred_check
      _
    $region7: #{tpu_custom_call.1} parent=1 // pred_check_branch
      %28 = sbr.rel (0) target = $region9
    $region8: #{tpu_custom_call.1} parent=1 // pred_region
      %s30 = ssub.s32 1024, 1024
      %31 = vsyncadd [#allocation8], %s30
      %s32 = sshll.u32 [#allocation7], 4
      %s33 = int_to_ptr.vmem [resolvable:$true] %s32
      %38 = dma.hbm_to_vmem [thread:$0]  %s2, 1024, %s33, [#allocation8], 128, 128, 8
    $region9: #{tpu_custom_call.1} parent=1 // pred_fallthru
      _
    // Predicated region
    $region10: #{tpu_custom_call.1} parent=1 // pred_check
      _
    $region11: #{tpu_custom_call.1} parent=1 // pred_check_branch
      %40 = sbr.rel (0) target = $region13
    $region12: #{tpu_custom_call.1} parent=1 // pred_region
      %s42 = ssub.s32 12288, 12288
      %43 = vsyncadd [#allocation11], %s42
      %s44 = sshll.u32 [#allocation10], 4
      %s45 = int_to_ptr.vmem [resolvable:$true] %s44
      %50 = dma.hbm_to_vmem [thread:$0]  %s3, 12288, %s45, [#allocation11], 768, 768, 48
    $region13: #{tpu_custom_call.1} parent=1 // pred_fallthru
      _
    // Predicated region
    $region14: #{tpu_custom_call.1} parent=1 // pred_check
      _
    $region15: #{tpu_custom_call.1} parent=1 // pred_check_branch
      %52 = sbr.rel (0) target = $region17
    $region16: #{tpu_custom_call.1} parent=1 // pred_region
      %s54 = ssub.s32 49152, 49152
      %55 = vsyncadd [#allocation11], %s54
      %s56 = sshll.u32 [#allocation12], 4
      %s57 = int_to_ptr.vmem [resolvable:$true] %s56
      %62 = dma.hbm_to_vmem [thread:$0]  %s4, 49152, %s57, [#allocation11], 768, 768, 48
    $region17: #{tpu_custom_call.1} parent=1 // pred_fallthru
      _
    // Predicated region
    $region18: #{tpu_custom_call.1} parent=1 // pred_check
      _
    $region19: #{tpu_custom_call.1} parent=1 // pred_check_branch
      %64 = sbr.rel (0) target = $region21
    $region20: #{tpu_custom_call.1} parent=1 // pred_region
      %s66 = ssub.s32 36864, 36864
      %67 = vsyncadd [#allocation14], %s66
      %s68 = sshll.u32 [#allocation13], 4
      %s69 = int_to_ptr.vmem [resolvable:$true] %s68
      %74 = dma.hbm_to_vmem [thread:$0]  %s5, 36864, %s69, [#allocation14], 384, 384, 24
    $region21: #{tpu_custom_call.1} parent=1 // pred_fallthru
      _
    // Predicated region
    $region22: #{tpu_custom_call.1} parent=1 // pred_check
      _
    $region23: #{tpu_custom_call.1} parent=1 // pred_check_branch
      %76 = sbr.rel (0) target = $region25
    $region24: #{tpu_custom_call.1} parent=1 // pred_region
      %s78 = ssub.s32 288, 288
      %79 = vsyncadd [#allocation14], %s78
      %s80 = sshll.u32 [#allocation15], 4
      %s81 = int_to_ptr.vmem [resolvable:$true] %s80
      %86 = dma.hbm_to_vmem [thread:$0]  %s6, 288, %s81, [#allocation14], 96, 96, 6
    $region25: #{tpu_custom_call.1} parent=1 // pred_fallthru
      _
    // Predicated region
    $region26: #{tpu_custom_call.1} parent=1 // pred_check
      _
    $region27: #{tpu_custom_call.1} parent=1 // pred_check_branch
      %88 = sbr.rel (0) target = $region29
    $region28: #{tpu_custom_call.1} parent=1 // pred_region
      %s90 = ssub.s32 96, 96
      %91 = vsyncadd [#allocation17], %s90
      %s92 = sshll.u32 [#allocation16], 4
      %s93 = int_to_ptr.vmem [resolvable:$true] %s92
      %98 = dma.hbm_to_vmem [thread:$0]  %s7, 96, %s93, [#allocation17], 16, 16, 1
    $region29: #{tpu_custom_call.1} parent=1 // pred_fallthru
      _
    // Predicated region
    $region30: #{tpu_custom_call.1} parent=1 // pred_check
      _
    $region31: #{tpu_custom_call.1} parent=1 // pred_check_branch
      %100 = sbr.rel (0) target = $region33
    $region32: #{tpu_custom_call.1} parent=1 // pred_region
      %s102 = ssub.s32 4096, 4096
      %103 = vsyncadd [#allocation17], %s102
      %s104 = sshll.u32 [#allocation18], 4
      %s105 = int_to_ptr.vmem [resolvable:$true] %s104
      %110 = dma.hbm_to_vmem [thread:$0]  %s8, 4096, %s105, [#allocation17], 128, 128, 8
    $region33: #{tpu_custom_call.1} parent=1 // pred_fallthru
      _
    // Predicated region
    $region34: #{tpu_custom_call.1} parent=1 // pred_check
      _
    $region35: #{tpu_custom_call.1} parent=1 // pred_check_branch
      %112 = sbr.rel (0) target = $region37
    $region36: #{tpu_custom_call.1} parent=1 // pred_region
      %s114 = ssub.s32 16, 16
      %115 = vsyncadd [#allocation20], %s114
      %s117 = sshll.u32 [#allocation19], 4
      %s118 = int_to_ptr.vmem [resolvable:$true] %s117
      %120 = dma.hbm_to_vmem [thread:$0]  %s9, 16, %s118, [#allocation20]
    $region37: #{tpu_custom_call.1} parent=1 // pred_fallthru
      _
    // Predicated region
    $region38: #{tpu_custom_call.1} parent=1 // pred_check
      _
    $region39: #{tpu_custom_call.1} parent=1 // pred_check_branch
      %122 = sbr.rel (0) target = $region41
    $region40: #{tpu_custom_call.1} parent=1 // pred_region
      %s124 = ssub.s32 2048, 2048
      %125 = vsyncadd [#allocation20], %s124
      %s126 = sshll.u32 [#allocation21], 4
      %s127 = int_to_ptr.vmem [resolvable:$true] %s126
      %132 = dma.hbm_to_vmem [thread:$0]  %s10, 2048, %s127, [#allocation20], 128, 128, 8
    $region41: #{tpu_custom_call.1} parent=1 // pred_fallthru
      _
    // Predicated region
    $region42: #{tpu_custom_call.1} parent=1 // pred_check
      _
    $region43: #{tpu_custom_call.1} parent=1 // pred_check_branch
      %134 = sbr.rel (0) target = $region45
    $region44: #{tpu_custom_call.1} parent=1 // pred_region
      %s136 = ssub.s32 16, 16
      %137 = vsyncadd [#allocation23], %s136
      %s139 = sshll.u32 [#allocation22], 4
      %s140 = int_to_ptr.vmem [resolvable:$true] %s139
      %142 = dma.hbm_to_vmem [thread:$0]  %s11, 16, %s140, [#allocation23]
    $region45: #{tpu_custom_call.1} parent=1 // pred_fallthru
      _
    // Predicated region
    $region46: #{tpu_custom_call.1} parent=1 // pred_check
      _
    $region47: #{tpu_custom_call.1} parent=1 // pred_check_branch
      %144 = sbr.rel (0) target = $region49
    $region48: #{tpu_custom_call.1} parent=1 // pred_region
      %145 = dma.done [#allocation8], 1024
    $region49: #{tpu_custom_call.1} parent=1 // pred_fallthru
      _
    // Predicated region
    $region50: #{tpu_custom_call.1} parent=1 // pred_check
      _
    $region51: #{tpu_custom_call.1} parent=1 // pred_check_branch
      %147 = sbr.rel (0) target = $region53
    $region52: #{tpu_custom_call.1} parent=1 // pred_region
      %148 = dma.done [#allocation11], 12288
    $region53: #{tpu_custom_call.1} parent=1 // pred_fallthru
      _
    // Predicated region
    $region54: #{tpu_custom_call.1} parent=1 // pred_check
      _
    $region55: #{tpu_custom_call.1} parent=1 // pred_check_branch
      %150 = sbr.rel (0) target = $region57
    $region56: #{tpu_custom_call.1} parent=1 // pred_region
      %151 = dma.done [#allocation11], 49152
    $region57: #{tpu_custom_call.1} parent=1 // pred_fallthru
      _
    // Predicated region
    $region58: #{tpu_custom_call.1} parent=1 // pred_check
      _
    $region59: #{tpu_custom_call.1} parent=1 // pred_check_branch
      %153 = sbr.rel (0) target = $region61
    $region60: #{tpu_custom_call.1} parent=1 // pred_region
      %154 = dma.done [#allocation14], 36864
    $region61: #{tpu_custom_call.1} parent=1 // pred_fallthru
      _
    // Predicated region
    $region62: #{tpu_custom_call.1} parent=1 // pred_check
      _
    $region63: #{tpu_custom_call.1} parent=1 // pred_check_branch
      %156 = sbr.rel (0) target = $region65
    $region64: #{tpu_custom_call.1} parent=1 // pred_region
      %157 = dma.done [#allocation14], 288
    $region65: #{tpu_custom_call.1} parent=1 // pred_fallthru
      _
    // Predicated region
    $region66: #{tpu_custom_call.1} parent=1 // pred_check
      _
    $region67: #{tpu_custom_call.1} parent=1 // pred_check_branch
      %159 = sbr.rel (0) target = $region69
    $region68: #{tpu_custom_call.1} parent=1 // pred_region
      %160 = dma.done [#allocation17], 96
    $region69: #{tpu_custom_call.1} parent=1 // pred_fallthru
      _
    // Predicated region
    $region70: #{tpu_custom_call.1} parent=1 // pred_check
      _
    $region71: #{tpu_custom_call.1} parent=1 // pred_check_branch
      %162 = sbr.rel (0) target = $region73
    $region72: #{tpu_custom_call.1} parent=1 // pred_region
      %163 = dma.done [#allocation17], 4096
    $region73: #{tpu_custom_call.1} parent=1 // pred_fallthru
      _
    // Predicated region
    $region74: #{tpu_custom_call.1} parent=1 // pred_check
      _
    $region75: #{tpu_custom_call.1} parent=1 // pred_check_branch
      %165 = sbr.rel (0) target = $region77
    $region76: #{tpu_custom_call.1} parent=1 // pred_region
      %166 = dma.done [#allocation20], 16
    $region77: #{tpu_custom_call.1} parent=1 // pred_fallthru
      _
    // Predicated region
    $region78: #{tpu_custom_call.1} parent=1 // pred_check
      _
    $region79: #{tpu_custom_call.1} parent=1 // pred_check_branch
      %168 = sbr.rel (0) target = $region81
    $region80: #{tpu_custom_call.1} parent=1 // pred_region
      %169 = dma.done [#allocation20], 2048
    $region81: #{tpu_custom_call.1} parent=1 // pred_fallthru
      _
    // Predicated region
    $region82: #{tpu_custom_call.1} parent=1 // pred_check
      _
    $region83: #{tpu_custom_call.1} parent=1 // pred_check_branch
      %171 = sbr.rel (0) target = $region85
    $region84: #{tpu_custom_call.1} parent=1 // pred_region
      %172 = dma.done [#allocation23], 16
    $region85: #{tpu_custom_call.1} parent=1 // pred_fallthru
      _
    %v173 = vld [vmem:[%s1] sm:$0xff]
    %s174 = sld [smem:[#allocation6]]
    %v175 = vld [vmem:[#allocation7] sm:$0xff]
    %v176 = vld [vmem:[#allocation7 + $0x8] sm:$0xff]
    %v177 = vld [vmem:[#allocation7 + $0x10] sm:$0xff]
    %v178 = vld [vmem:[#allocation7 + $0x18] sm:$0xff]
    %v179 = vld [vmem:[#allocation7 + $0x20] sm:$0xff]
    %v180 = vld [vmem:[#allocation7 + $0x28] sm:$0xff]
    %v181 = vld [vmem:[#allocation7 + $0x30] sm:$0xff]
    %v182 = vld [vmem:[#allocation7 + $0x38] sm:$0xff]
    %v183 = vld [vmem:[#allocation10] sm:$0xff]
    %v184 = vld [vmem:[#allocation10 + $0x8] sm:$0xff]
    %v185 = vld [vmem:[#allocation10 + $0x10] sm:$0xff]
    %v186 = vld [vmem:[#allocation10 + $0x18] sm:$0xff]
    %v187 = vld [vmem:[#allocation10 + $0x20] sm:$0xff]
    %v188 = vld [vmem:[#allocation10 + $0x28] sm:$0xff]
    %v189 = vld [vmem:[#allocation10 + $0x30] sm:$0xff]
    %v190 = vld [vmem:[#allocation10 + $0x38] sm:$0xff]
    %v191 = vld [vmem:[#allocation10 + $0x40] sm:$0xff]
    %v192 = vld [vmem:[#allocation10 + $0x48] sm:$0xff]
    %v193 = vld [vmem:[#allocation10 + $0x50] sm:$0xff]
    %v194 = vld [vmem:[#allocation10 + $0x58] sm:$0xff]
    %v195 = vld [vmem:[#allocation10 + $0x60] sm:$0xff]
    %v196 = vld [vmem:[#allocation10 + $0x68] sm:$0xff]
    %v197 = vld [vmem:[#allocation10 + $0x70] sm:$0xff]
    %v198 = vld [vmem:[#allocation10 + $0x78] sm:$0xff]
    %v199 = vld [vmem:[#allocation10 + $0x80] sm:$0xff]
    %v200 = vld [vmem:[#allocation10 + $0x88] sm:$0xff]
    %v201 = vld [vmem:[#allocation10 + $0x90] sm:$0xff]
    %v202 = vld [vmem:[#allocation10 + $0x98] sm:$0xff]
    %v203 = vld [vmem:[#allocation10 + $0xa0] sm:$0xff]
    %v204 = vld [vmem:[#allocation10 + $0xa8] sm:$0xff]
    %v205 = vld [vmem:[#allocation10 + $0xb0] sm:$0xff]
    %v206 = vld [vmem:[#allocation10 + $0xb8] sm:$0xff]
    %v207 = vld [vmem:[#allocation10 + $0xc0] sm:$0xff]
    %v208 = vld [vmem:[#allocation10 + $0xc8] sm:$0xff]
    %v209 = vld [vmem:[#allocation10 + $0xd0] sm:$0xff]
    %v210 = vld [vmem:[#allocation10 + $0xd8] sm:$0xff]
    %v211 = vld [vmem:[#allocation10 + $0xe0] sm:$0xff]
    %v212 = vld [vmem:[#allocation10 + $0xe8] sm:$0xff]
    %v213 = vld [vmem:[#allocation10 + $0xf0] sm:$0xff]
    %v214 = vld [vmem:[#allocation10 + $0xf8] sm:$0xff]
    %v215 = vld [vmem:[#allocation10 + $0x100] sm:$0xff]
    %v216 = vld [vmem:[#allocation10 + $0x108] sm:$0xff]
    %v217 = vld [vmem:[#allocation10 + $0x110] sm:$0xff]
    %v218 = vld [vmem:[#allocation10 + $0x118] sm:$0xff]
    %v219 = vld [vmem:[#allocation10 + $0x120] sm:$0xff]
    %v220 = vld [vmem:[#allocation10 + $0x128] sm:$0xff]
    %v221 = vld [vmem:[#allocation10 + $0x130] sm:$0xff]
    %v222 = vld [vmem:[#allocation10 + $0x138] sm:$0xff]
    %v223 = vld [vmem:[#allocation10 + $0x140] sm:$0xff]
    %v224 = vld [vmem:[#allocation10 + $0x148] sm:$0xff]
    %v225 = vld [vmem:[#allocation10 + $0x150] sm:$0xff]
    %v226 = vld [vmem:[#allocation10 + $0x158] sm:$0xff]
    %v227 = vld [vmem:[#allocation10 + $0x160] sm:$0xff]
    %v228 = vld [vmem:[#allocation10 + $0x168] sm:$0xff]
    %v229 = vld [vmem:[#allocation10 + $0x170] sm:$0xff]
    %v230 = vld [vmem:[#allocation10 + $0x178] sm:$0xff]
    %v231 = vld [vmem:[#allocation10 + $0x180] sm:$0xff]
    %v232 = vld [vmem:[#allocation10 + $0x188] sm:$0xff]
    %v233 = vld [vmem:[#allocation10 + $0x190] sm:$0xff]
    %v234 = vld [vmem:[#allocation10 + $0x198] sm:$0xff]
    %v235 = vld [vmem:[#allocation10 + $0x1a0] sm:$0xff]
    %v236 = vld [vmem:[#allocation10 + $0x1a8] sm:$0xff]
    %v237 = vld [vmem:[#allocation10 + $0x1b0] sm:$0xff]
    %v238 = vld [vmem:[#allocation10 + $0x1b8] sm:$0xff]
    %v239 = vld [vmem:[#allocation10 + $0x1c0] sm:$0xff]
    %v240 = vld [vmem:[#allocation10 + $0x1c8] sm:$0xff]
    %v241 = vld [vmem:[#allocation10 + $0x1d0] sm:$0xff]
    %v242 = vld [vmem:[#allocation10 + $0x1d8] sm:$0xff]
    %v243 = vld [vmem:[#allocation10 + $0x1e0] sm:$0xff]
    %v244 = vld [vmem:[#allocation10 + $0x1e8] sm:$0xff]
    %v245 = vld [vmem:[#allocation10 + $0x1f0] sm:$0xff]
    %v246 = vld [vmem:[#allocation10 + $0x1f8] sm:$0xff]
    %v247 = vld [vmem:[#allocation10 + $0x200] sm:$0xff]
    %v248 = vld [vmem:[#allocation10 + $0x208] sm:$0xff]
    %v249 = vld [vmem:[#allocation10 + $0x210] sm:$0xff]
    %v250 = vld [vmem:[#allocation10 + $0x218] sm:$0xff]
    %v251 = vld [vmem:[#allocation10 + $0x220] sm:$0xff]
    %v252 = vld [vmem:[#allocation10 + $0x228] sm:$0xff]
    %v253 = vld [vmem:[#allocation10 + $0x230] sm:$0xff]
    %v254 = vld [vmem:[#allocation10 + $0x238] sm:$0xff]
    %v255 = vld [vmem:[#allocation10 + $0x240] sm:$0xff]
    %v256 = vld [vmem:[#allocation10 + $0x248] sm:$0xff]
    %v257 = vld [vmem:[#allocation10 + $0x250] sm:$0xff]
    %v258 = vld [vmem:[#allocation10 + $0x258] sm:$0xff]
    %v259 = vld [vmem:[#allocation10 + $0x260] sm:$0xff]
    %v260 = vld [vmem:[#allocation10 + $0x268] sm:$0xff]
    %v261 = vld [vmem:[#allocation10 + $0x270] sm:$0xff]
    %v262 = vld [vmem:[#allocation10 + $0x278] sm:$0xff]
    %v263 = vld [vmem:[#allocation10 + $0x280] sm:$0xff]
    %v264 = vld [vmem:[#allocation10 + $0x288] sm:$0xff]
    %v265 = vld [vmem:[#allocation10 + $0x290] sm:$0xff]
    %v266 = vld [vmem:[#allocation10 + $0x298] sm:$0xff]
    %v267 = vld [vmem:[#allocation10 + $0x2a0] sm:$0xff]
    %v268 = vld [vmem:[#allocation10 + $0x2a8] sm:$0xff]
    %v269 = vld [vmem:[#allocation10 + $0x2b0] sm:$0xff]
    %v270 = vld [vmem:[#allocation10 + $0x2b8] sm:$0xff]
    %v271 = vld [vmem:[#allocation10 + $0x2c0] sm:$0xff]
    %v272 = vld [vmem:[#allocation10 + $0x2c8] sm:$0xff]
    %v273 = vld [vmem:[#allocation10 + $0x2d0] sm:$0xff]
    %v274 = vld [vmem:[#allocation10 + $0x2d8] sm:$0xff]
    %v275 = vld [vmem:[#allocation10 + $0x2e0] sm:$0xff]
    %v276 = vld [vmem:[#allocation10 + $0x2e8] sm:$0xff]
    %v277 = vld [vmem:[#allocation10 + $0x2f0] sm:$0xff]
    %v278 = vld [vmem:[#allocation10 + $0x2f8] sm:$0xff]
    %v279 = vld [vmem:[#allocation15] sm:$0x3f]
    %v281 = vlaneseq
    %v282 = vshrl.u32 %v281, 7
    %v283 = vsub.s32 0, %v282
    %v284 = vrot.slane %v279, %v283
    %v285 = vlaneseq
    %v286 = vshrl.u32 %v285, 7
    %v287 = vsub.s32 1, %v286
    %v288 = vrot.slane %v279, %v287
    %v289 = vlaneseq
    %v290 = vshrl.u32 %v289, 7
    %v291 = vsub.s32 2, %v290
    %v292 = vrot.slane %v279, %v291
    %v293 = vlaneseq
    %v294 = vshrl.u32 %v293, 7
    %v295 = vsub.s32 3, %v294
    %v296 = vrot.slane %v279, %v295
    %v297 = vlaneseq
    %v298 = vshrl.u32 %v297, 7
    %v299 = vsub.s32 4, %v298
    %v300 = vrot.slane %v279, %v299
    %v301 = vlaneseq
    %v302 = vshrl.u32 %v301, 7
    %v303 = vsub.s32 5, %v302
    %v304 = vrot.slane %v279, %v303
    %311 = vmatprep.subr.mxu0 %v184
    %312 = vmatpush1.msra.mxu0 %v183
    %313 = vmatprep.subr.mxu0 %v190
    %314 = vmatpush1.msra.mxu0 %v189
    %315 = vmatprep.subr.mxu0 %v196
    %316 = vmatpush1.msra.mxu0 %v195
    %317 = vmatprep.subr.mxu0 %v202
    %318 = vmatpush1.msra.mxu0 %v201
    %319 = vmatprep.subr.mxu0 %v208
    %320 = vmatpush1.msra.mxu0 %v207
    %321 = vmatprep.subr.mxu0 %v214
    %322 = vmatpush1.msra.mxu0 %v213
    %323 = vmatprep.subr.mxu0 %v220
    %324 = vmatpush1.msra.mxu0 %v219
    %325 = vmatprep.subr.mxu0 %v226
    %326 = vmatpush1.msra.mxu0 %v225
    %327 = vmatprep.subr.mxu0 %v232
    %328 = vmatpush1.msra.mxu0 %v231
    %329 = vmatprep.subr.mxu0 %v238
    %330 = vmatpush1.msra.mxu0 %v237
    %331 = vmatprep.subr.mxu0 %v244
    %332 = vmatpush1.msra.mxu0 %v243
    %333 = vmatprep.subr.mxu0 %v250
    %334 = vmatpush1.msra.mxu0 %v249
    %335 = vmatprep.subr.mxu0 %v256
    %336 = vmatpush1.msra.mxu0 %v255
    %337 = vmatprep.subr.mxu0 %v262
    %338 = vmatpush1.msra.mxu0 %v261
    %339 = vmatprep.subr.mxu0 %v268
    %340 = vmatpush1.msra.mxu0 %v267
    %341 = vmatprep.subr.mxu0 %v274
    %342 = vmatpush1.msra.mxu0 %v273
    %343 = vmatprep.subr.mxu0 0.0
    %344 = vmatpush1.msra.mxu0 0.0
    %345 = vmatprep.subr.mxu0 0.0
    %346 = vmatpush1.msra.mxu0 0.0
    %347 = vmatprep.subr.mxu0 0.0
    %348 = vmatpush1.msra.mxu0 0.0
    %349 = vmatprep.subr.mxu0 0.0
    %350 = vmatpush1.msra.mxu0 0.0
    %351 = vmatprep.subr.mxu0 0.0
    %352 = vmatpush1.msra.mxu0 0.0
    %353 = vmatprep.subr.mxu0 0.0
    %354 = vmatpush1.msra.mxu0 0.0
    %355 = vmatprep.subr.mxu0 0.0
    %356 = vmatpush1.msra.mxu0 0.0
    %357 = vmatprep.subr.mxu0 0.0
    %358 = vmatpush1.msra.mxu0 0.0
    %359 = vmatprep.subr.mxu0 0.0
    %360 = vmatpush1.msra.mxu0 0.0
    %361 = vmatprep.subr.mxu0 0.0
    %362 = vmatpush1.msra.mxu0 0.0
    %363 = vmatprep.subr.mxu0 0.0
    %364 = vmatpush1.msra.mxu0 0.0
    %365 = vmatprep.subr.mxu0 0.0
    %366 = vmatpush1.msra.mxu0 0.0
    %367 = vmatprep.subr.mxu0 0.0
    %368 = vmatpush1.msra.mxu0 0.0
    %369 = vmatprep.subr.mxu0 0.0
    %370 = vmatpush1.msra.mxu0 0.0
    %371 = vmatprep.subr.mxu0 0.0
    %372 = vmatpush1.msra.mxu0 0.0
    %373 = vmatprep.subr.mxu0 0.0
    %374 = vmatpush1.msra.mxu0 0.0
    %375 = vmatprep.mubr.f32.mxu0 0.0
    %376 = vmatmul.mubr.f32.gmra.mrb[0].mxu0 %v175
    %v377 = vpop.f32.mrb[0].mxu0
    %v378 = vadd.f32 %v284, %v377
    %v379 = vpop.f32.mrb[0].mxu0
    %v380 = vadd.f32 %v288, %v379
    %381 = vmatprep.mubr.f32.mxu0 0.0
    %382 = vmatmul.mubr.f32.gmra.mrb[0].mxu0 %v176
    %v383 = vpop.f32.mrb[0].mxu0
    %v384 = vadd.f32 %v284, %v383
    %v385 = vpop.f32.mrb[0].mxu0
    %v386 = vadd.f32 %v288, %v385
    %387 = vmatprep.mubr.f32.mxu0 0.0
    %388 = vmatmul.mubr.f32.gmra.mrb[0].mxu0 %v177
    %v389 = vpop.f32.mrb[0].mxu0
    %v390 = vadd.f32 %v284, %v389
    %v391 = vpop.f32.mrb[0].mxu0
    %v392 = vadd.f32 %v288, %v391
    %393 = vmatprep.mubr.f32.mxu0 0.0
    %394 = vmatmul.mubr.f32.gmra.mrb[0].mxu0 %v178
    %v395 = vpop.f32.mrb[0].mxu0
    %v396 = vadd.f32 %v284, %v395
    %v397 = vpop.f32.mrb[0].mxu0
    %v398 = vadd.f32 %v288, %v397
    %399 = vmatprep.mubr.f32.mxu0 0.0
    %400 = vmatmul.mubr.f32.gmra.mrb[0].mxu0 %v179
    %v401 = vpop.f32.mrb[0].mxu0
    %v402 = vadd.f32 %v284, %v401
    %v403 = vpop.f32.mrb[0].mxu0
    %v404 = vadd.f32 %v288, %v403
    %405 = vmatprep.mubr.f32.mxu0 0.0
    %406 = vmatmul.mubr.f32.gmra.mrb[0].mxu0 %v180
    %v407 = vpop.f32.mrb[0].mxu0
    %v408 = vadd.f32 %v284, %v407
    %v409 = vpop.f32.mrb[0].mxu0
    %v410 = vadd.f32 %v288, %v409
    %411 = vmatprep.mubr.f32.mxu0 0.0
    %412 = vmatmul.mubr.f32.gmra.mrb[0].mxu0 %v181
    %v413 = vpop.f32.mrb[0].mxu0
    %v414 = vadd.f32 %v284, %v413
    %v415 = vpop.f32.mrb[0].mxu0
    %v416 = vadd.f32 %v288, %v415
    %417 = vmatprep.mubr.f32.mxu0 0.0
    %418 = vmatmul.mubr.f32.gmra.mrb[0].mxu0 %v182
    %v419 = vpop.f32.mrb[0].mxu0
    %v420 = vadd.f32 %v284, %v419
    %v421 = vpop.f32.mrb[0].mxu0
    %v422 = vadd.f32 %v288, %v421
    %423 = vdwg.mxu0
    %424 = vmatprep.subr.mxu0 %v186
    %425 = vmatpush1.msra.mxu0 %v185
    %426 = vmatprep.subr.mxu0 %v192
    %427 = vmatpush1.msra.mxu0 %v191
    %428 = vmatprep.subr.mxu0 %v198
    %429 = vmatpush1.msra.mxu0 %v197
    %430 = vmatprep.subr.mxu0 %v204
    %431 = vmatpush1.msra.mxu0 %v203
    %432 = vmatprep.subr.mxu0 %v210
    %433 = vmatpush1.msra.mxu0 %v209
    %434 = vmatprep.subr.mxu0 %v216
    %435 = vmatpush1.msra.mxu0 %v215
    %436 = vmatprep.subr.mxu0 %v222
    %437 = vmatpush1.msra.mxu0 %v221
    %438 = vmatprep.subr.mxu0 %v228
    %439 = vmatpush1.msra.mxu0 %v227
    %440 = vmatprep.subr.mxu0 %v234
    %441 = vmatpush1.msra.mxu0 %v233
    %442 = vmatprep.subr.mxu0 %v240
    %443 = vmatpush1.msra.mxu0 %v239
    %444 = vmatprep.subr.mxu0 %v246
    %445 = vmatpush1.msra.mxu0 %v245
    %446 = vmatprep.subr.mxu0 %v252
    %447 = vmatpush1.msra.mxu0 %v251
    %448 = vmatprep.subr.mxu0 %v258
    %449 = vmatpush1.msra.mxu0 %v257
    %450 = vmatprep.subr.mxu0 %v264
    %451 = vmatpush1.msra.mxu0 %v263
    %452 = vmatprep.subr.mxu0 %v270
    %453 = vmatpush1.msra.mxu0 %v269
    %454 = vmatprep.subr.mxu0 %v276
    %455 = vmatpush1.msra.mxu0 %v275
    %456 = vmatprep.subr.mxu0 0.0
    %457 = vmatpush1.msra.mxu0 0.0
    %458 = vmatprep.subr.mxu0 0.0
    %459 = vmatpush1.msra.mxu0 0.0
    %460 = vmatprep.subr.mxu0 0.0
    %461 = vmatpush1.msra.mxu0 0.0
    %462 = vmatprep.subr.mxu0 0.0
    %463 = vmatpush1.msra.mxu0 0.0
    %464 = vmatprep.subr.mxu0 0.0
    %465 = vmatpush1.msra.mxu0 0.0
    %466 = vmatprep.subr.mxu0 0.0
    %467 = vmatpush1.msra.mxu0 0.0
    %468 = vmatprep.subr.mxu0 0.0
    %469 = vmatpush1.msra.mxu0 0.0
    %470 = vmatprep.subr.mxu0 0.0
    %471 = vmatpush1.msra.mxu0 0.0
    %472 = vmatprep.subr.mxu0 0.0
    %473 = vmatpush1.msra.mxu0 0.0
    %474 = vmatprep.subr.mxu0 0.0
    %475 = vmatpush1.msra.mxu0 0.0
    %476 = vmatprep.subr.mxu0 0.0
    %477 = vmatpush1.msra.mxu0 0.0
    %478 = vmatprep.subr.mxu0 0.0
    %479 = vmatpush1.msra.mxu0 0.0
    %480 = vmatprep.subr.mxu0 0.0
    %481 = vmatpush1.msra.mxu0 0.0
    %482 = vmatprep.subr.mxu0 0.0
    %483 = vmatpush1.msra.mxu0 0.0
    %484 = vmatprep.subr.mxu0 0.0
    %485 = vmatpush1.msra.mxu0 0.0
    %486 = vmatprep.subr.mxu0 0.0
    %487 = vmatpush1.msra.mxu0 0.0
    %488 = vmatprep.mubr.f32.mxu0 0.0
    %489 = vmatmul.mubr.f32.gmra.mrb[0].mxu0 %v175
    %v490 = vpop.f32.mrb[0].mxu0
    %v491 = vadd.f32 %v292, %v490
    %v492 = vpop.f32.mrb[0].mxu0
    %v493 = vadd.f32 %v296, %v492
    %494 = vmatprep.mubr.f32.mxu0 0.0
    %495 = vmatmul.mubr.f32.gmra.mrb[0].mxu0 %v176
    %v496 = vpop.f32.mrb[0].mxu0
    %v497 = vadd.f32 %v292, %v496
    %v498 = vpop.f32.mrb[0].mxu0
    %v499 = vadd.f32 %v296, %v498
    %500 = vmatprep.mubr.f32.mxu0 0.0
    %501 = vmatmul.mubr.f32.gmra.mrb[0].mxu0 %v177
    %v502 = vpop.f32.mrb[0].mxu0
    %v503 = vadd.f32 %v292, %v502
    %v504 = vpop.f32.mrb[0].mxu0
    %v505 = vadd.f32 %v296, %v504
    %506 = vmatprep.mubr.f32.mxu0 0.0
    %507 = vmatmul.mubr.f32.gmra.mrb[0].mxu0 %v178
    %v508 = vpop.f32.mrb[0].mxu0
    %v509 = vadd.f32 %v292, %v508
    %v510 = vpop.f32.mrb[0].mxu0
    %v511 = vadd.f32 %v296, %v510
    %512 = vmatprep.mubr.f32.mxu0 0.0
    %513 = vmatmul.mubr.f32.gmra.mrb[0].mxu0 %v179
    %v514 = vpop.f32.mrb[0].mxu0
    %v515 = vadd.f32 %v292, %v514
    %v516 = vpop.f32.mrb[0].mxu0
    %v517 = vadd.f32 %v296, %v516
    %518 = vmatprep.mubr.f32.mxu0 0.0
    %519 = vmatmul.mubr.f32.gmra.mrb[0].mxu0 %v180
    %v520 = vpop.f32.mrb[0].mxu0
    %v521 = vadd.f32 %v292, %v520
    %v522 = vpop.f32.mrb[0].mxu0
    %v523 = vadd.f32 %v296, %v522
    %524 = vmatprep.mubr.f32.mxu0 0.0
    %525 = vmatmul.mubr.f32.gmra.mrb[0].mxu0 %v181
    %v526 = vpop.f32.mrb[0].mxu0
    %v527 = vadd.f32 %v292, %v526
    %v528 = vpop.f32.mrb[0].mxu0
    %v529 = vadd.f32 %v296, %v528
    %530 = vmatprep.mubr.f32.mxu0 0.0
    %531 = vmatmul.mubr.f32.gmra.mrb[0].mxu0 %v182
    %v532 = vpop.f32.mrb[0].mxu0
    %v533 = vadd.f32 %v292, %v532
    %v534 = vpop.f32.mrb[0].mxu0
    %v535 = vadd.f32 %v296, %v534
    %536 = vdwg.mxu0
    %537 = vmatprep.subr.mxu0 %v188
    %538 = vmatpush1.msra.mxu0 %v187
    %539 = vmatprep.subr.mxu0 %v194
    %540 = vmatpush1.msra.mxu0 %v193
    %541 = vmatprep.subr.mxu0 %v200
    %542 = vmatpush1.msra.mxu0 %v199
    %543 = vmatprep.subr.mxu0 %v206
    %544 = vmatpush1.msra.mxu0 %v205
    %545 = vmatprep.subr.mxu0 %v212
    %546 = vmatpush1.msra.mxu0 %v211
    %547 = vmatprep.subr.mxu0 %v218
    %548 = vmatpush1.msra.mxu0 %v217
    %549 = vmatprep.subr.mxu0 %v224
    %550 = vmatpush1.msra.mxu0 %v223
    %551 = vmatprep.subr.mxu0 %v230
    %552 = vmatpush1.msra.mxu0 %v229
    %553 = vmatprep.subr.mxu0 %v236
    %554 = vmatpush1.msra.mxu0 %v235
    %555 = vmatprep.subr.mxu0 %v242
    %556 = vmatpush1.msra.mxu0 %v241
    %557 = vmatprep.subr.mxu0 %v248
    %558 = vmatpush1.msra.mxu0 %v247
    %559 = vmatprep.subr.mxu0 %v254
    %560 = vmatpush1.msra.mxu0 %v253
    %561 = vmatprep.subr.mxu0 %v260
    %562 = vmatpush1.msra.mxu0 %v259
    %563 = vmatprep.subr.mxu0 %v266
    %564 = vmatpush1.msra.mxu0 %v265
    %565 = vmatprep.subr.mxu0 %v272
    %566 = vmatpush1.msra.mxu0 %v271
    %567 = vmatprep.subr.mxu0 %v278
    %568 = vmatpush1.msra.mxu0 %v277
    %569 = vmatprep.subr.mxu0 0.0
    %570 = vmatpush1.msra.mxu0 0.0
    %571 = vmatprep.subr.mxu0 0.0
    %572 = vmatpush1.msra.mxu0 0.0
    %573 = vmatprep.subr.mxu0 0.0
    %574 = vmatpush1.msra.mxu0 0.0
    %575 = vmatprep.subr.mxu0 0.0
    %576 = vmatpush1.msra.mxu0 0.0
    %577 = vmatprep.subr.mxu0 0.0
    %578 = vmatpush1.msra.mxu0 0.0
    %579 = vmatprep.subr.mxu0 0.0
    %580 = vmatpush1.msra.mxu0 0.0
    %581 = vmatprep.subr.mxu0 0.0
    %582 = vmatpush1.msra.mxu0 0.0
    %583 = vmatprep.subr.mxu0 0.0
    %584 = vmatpush1.msra.mxu0 0.0
    %585 = vmatprep.subr.mxu0 0.0
    %586 = vmatpush1.msra.mxu0 0.0
    %587 = vmatprep.subr.mxu0 0.0
    %588 = vmatpush1.msra.mxu0 0.0
    %589 = vmatprep.subr.mxu0 0.0
    %590 = vmatpush1.msra.mxu0 0.0
    %591 = vmatprep.subr.mxu0 0.0
    %592 = vmatpush1.msra.mxu0 0.0
    %593 = vmatprep.subr.mxu0 0.0
    %594 = vmatpush1.msra.mxu0 0.0
    %595 = vmatprep.subr.mxu0 0.0
    %596 = vmatpush1.msra.mxu0 0.0
    %597 = vmatprep.subr.mxu0 0.0
    %598 = vmatpush1.msra.mxu0 0.0
    %599 = vmatprep.subr.mxu0 0.0
    %600 = vmatpush1.msra.mxu0 0.0
    %601 = vmatprep.mubr.f32.mxu0 0.0
    %602 = vmatmul.mubr.f32.gmra.mrb[0].mxu0 %v175
    %v603 = vpop.f32.mrb[0].mxu0
    %v604 = vadd.f32 %v300, %v603
    %v605 = vpop.f32.mrb[0].mxu0
    %v606 = vadd.f32 %v304, %v605
    %607 = vmatprep.mubr.f32.mxu0 0.0
    %608 = vmatmul.mubr.f32.gmra.mrb[0].mxu0 %v176
    %v609 = vpop.f32.mrb[0].mxu0
    %v610 = vadd.f32 %v300, %v609
    %v611 = vpop.f32.mrb[0].mxu0
    %v612 = vadd.f32 %v304, %v611
    %613 = vmatprep.mubr.f32.mxu0 0.0
    %614 = vmatmul.mubr.f32.gmra.mrb[0].mxu0 %v177
    %v615 = vpop.f32.mrb[0].mxu0
    %v616 = vadd.f32 %v300, %v615
    %v617 = vpop.f32.mrb[0].mxu0
    %v618 = vadd.f32 %v304, %v617
    %619 = vmatprep.mubr.f32.mxu0 0.0
    %620 = vmatmul.mubr.f32.gmra.mrb[0].mxu0 %v178
    %v621 = vpop.f32.mrb[0].mxu0
    %v622 = vadd.f32 %v300, %v621
    %v623 = vpop.f32.mrb[0].mxu0
    %v624 = vadd.f32 %v304, %v623
    %625 = vmatprep.mubr.f32.mxu0 0.0
    %626 = vmatmul.mubr.f32.gmra.mrb[0].mxu0 %v179
    %v627 = vpop.f32.mrb[0].mxu0
    %v628 = vadd.f32 %v300, %v627
    %v629 = vpop.f32.mrb[0].mxu0
    %v630 = vadd.f32 %v304, %v629
    %631 = vmatprep.mubr.f32.mxu0 0.0
    %632 = vmatmul.mubr.f32.gmra.mrb[0].mxu0 %v180
    %v633 = vpop.f32.mrb[0].mxu0
    %v634 = vadd.f32 %v300, %v633
    %v635 = vpop.f32.mrb[0].mxu0
    %v636 = vadd.f32 %v304, %v635
    %637 = vmatprep.mubr.f32.mxu0 0.0
    %638 = vmatmul.mubr.f32.gmra.mrb[0].mxu0 %v181
    %v639 = vpop.f32.mrb[0].mxu0
    %v640 = vadd.f32 %v300, %v639
    %v641 = vpop.f32.mrb[0].mxu0
    %v642 = vadd.f32 %v304, %v641
    %643 = vmatprep.mubr.f32.mxu0 0.0
    %644 = vmatmul.mubr.f32.gmra.mrb[0].mxu0 %v182
    %v645 = vpop.f32.mrb[0].mxu0
    %v646 = vadd.f32 %v300, %v645
    %v647 = vpop.f32.mrb[0].mxu0
    %v648 = vadd.f32 %v304, %v647
    %649 = vdwg.mxu0
    %650 = vst [vmem:[#allocation3] sm:$0xff] %v378
    %651 = vst [vmem:[#allocation3 + $0x8] sm:$0xff] %v380
    %652 = vst [vmem:[#allocation3 + $0x10] sm:$0xff] %v491
    %653 = vst [vmem:[#allocation3 + $0x18] sm:$0xff] %v493
    %654 = vst [vmem:[#allocation3 + $0x20] sm:$0xff] %v604
    %655 = vst [vmem:[#allocation3 + $0x28] sm:$0xff] %v606
    %656 = vst [vmem:[#allocation3 + $0x30] sm:$0xff] %v384
    %657 = vst [vmem:[#allocation3 + $0x38] sm:$0xff] %v386
    %658 = vst [vmem:[#allocation3 + $0x40] sm:$0xff] %v497
    %659 = vst [vmem:[#allocation3 + $0x48] sm:$0xff] %v499
    %660 = vst [vmem:[#allocation3 + $0x50] sm:$0xff] %v610
    %661 = vst [vmem:[#allocation3 + $0x58] sm:$0xff] %v612
    %662 = vst [vmem:[#allocation3 + $0x60] sm:$0xff] %v390
    %663 = vst [vmem:[#allocation3 + $0x68] sm:$0xff] %v392
    %664 = vst [vmem:[#allocation3 + $0x70] sm:$0xff] %v503
    %665 = vst [vmem:[#allocation3 + $0x78] sm:$0xff] %v505
    %666 = vst [vmem:[#allocation3 + $0x80] sm:$0xff] %v616
    %667 = vst [vmem:[#allocation3 + $0x88] sm:$0xff] %v618
    %668 = vst [vmem:[#allocation3 + $0x90] sm:$0xff] %v396
    %669 = vst [vmem:[#allocation3 + $0x98] sm:$0xff] %v398
    %670 = vst [vmem:[#allocation3 + $0xa0] sm:$0xff] %v509
    %671 = vst [vmem:[#allocation3 + $0xa8] sm:$0xff] %v511
    %672 = vst [vmem:[#allocation3 + $0xb0] sm:$0xff] %v622
    %673 = vst [vmem:[#allocation3 + $0xb8] sm:$0xff] %v624
    %674 = vst [vmem:[#allocation3 + $0xc0] sm:$0xff] %v402
    %675 = vst [vmem:[#allocation3 + $0xc8] sm:$0xff] %v404
    %676 = vst [vmem:[#allocation3 + $0xd0] sm:$0xff] %v515
    %677 = vst [vmem:[#allocation3 + $0xd8] sm:$0xff] %v517
    %678 = vst [vmem:[#allocation3 + $0xe0] sm:$0xff] %v628
    %679 = vst [vmem:[#allocation3 + $0xe8] sm:$0xff] %v630
    %680 = vst [vmem:[#allocation3 + $0xf0] sm:$0xff] %v408
    %681 = vst [vmem:[#allocation3 + $0xf8] sm:$0xff] %v410
    %682 = vst [vmem:[#allocation3 + $0x100] sm:$0xff] %v521
    %683 = vst [vmem:[#allocation3 + $0x108] sm:$0xff] %v523
    %684 = vst [vmem:[#allocation3 + $0x110] sm:$0xff] %v634
    %685 = vst [vmem:[#allocation3 + $0x118] sm:$0xff] %v636
    %686 = vst [vmem:[#allocation3 + $0x120] sm:$0xff] %v414
    %687 = vst [vmem:[#allocation3 + $0x128] sm:$0xff] %v416
    %688 = vst [vmem:[#allocation3 + $0x130] sm:$0xff] %v527
    %689 = vst [vmem:[#allocation3 + $0x138] sm:$0xff] %v529
    %690 = vst [vmem:[#allocation3 + $0x140] sm:$0xff] %v640
    %691 = vst [vmem:[#allocation3 + $0x148] sm:$0xff] %v642
    %692 = vst [vmem:[#allocation3 + $0x150] sm:$0xff] %v420
    %693 = vst [vmem:[#allocation3 + $0x158] sm:$0xff] %v422
    %694 = vst [vmem:[#allocation3 + $0x160] sm:$0xff] %v533
    %695 = vst [vmem:[#allocation3 + $0x168] sm:$0xff] %v535
    %696 = vst [vmem:[#allocation3 + $0x170] sm:$0xff] %v646
    %697 = vst [vmem:[#allocation3 + $0x178] sm:$0xff] %v648
    %698 = vst [vmem:[#allocation4] sm:$0xff] 0.0
    %699 = vst [vmem:[#allocation4 + $0x8] sm:$0xff] 0.0
    %v700 = vld [vmem:[#allocation16] sm:$0x1]
    %v702 = vlaneseq
    %v703 = vshrl.u32 %v702, 7
    %v704 = vsub.s32 0, %v703
    %v705 = vrot.slane %v700, %v704
    %s707 = scalar_lea.vmem [#allocation16], 1
    %v708 = vld [vmem:[%s707] sm:$0x1]
    %v710 = vlaneseq
    %v711 = vshrl.u32 %v710, 7
    %v712 = vsub.s32 0, %v711
    %v713 = vrot.slane %v708, %v712
    // While loop
    $region86: #{tpu_custom_call.1} parent=1 // loop_pre_header
      _
    $region87: #{tpu_custom_call.1} parent=1 // loop_header
      %s716 = sphi 0, %s718
      %p717 = scmp.ge.s32.totalorder %s716, %s174
    $region88: #{tpu_custom_call.1} parent=1 // loop_header_branch
      %720 = sbr.rel (%p717) target = $region92
    $region89: #{tpu_custom_call.1} parent=1 // loop_body
      %s721 = ssub.s32 %s174, 1
      %s722 = ssub.s32 %s721, %s716
      %v723 = vld [vmem:[#allocation4] sm:$0xff]
      %s724 = scalar_lea.vmem [#allocation4], 8
      %v725 = vld [vmem:[%s724] sm:$0xff]
      %s726 = smul.u32 %s716, 6
      %s727 = smul.addr %s726, 8
      %s728 = scalar_lea.vmem [#allocation3], %s727
      %v729 = vld [vmem:[%s728] sm:$0xff]
      %v730 = vld [vmem:[%s728 + $0x8] sm:$0xff]
      %v731 = vld [vmem:[%s728 + $0x10] sm:$0xff]
      %s732 = smul.u32 %s722, 6
      %s733 = smul.addr %s732, 8
      %s734 = scalar_lea.vmem [#allocation3], %s733
      %v735 = vld [vmem:[%s734 + $0x18] sm:$0xff]
      %v736 = vld [vmem:[%s734 + $0x20] sm:$0xff]
      %v737 = vld [vmem:[%s734 + $0x28] sm:$0xff]
      %v738 = vld [vmem:[#allocation13] sm:$0xff]
      %v739 = vld [vmem:[#allocation13 + $0x8] sm:$0xff]
      %v740 = vld [vmem:[#allocation13 + $0x10] sm:$0xff]
      %v741 = vld [vmem:[#allocation13 + $0x18] sm:$0xff]
      %v742 = vld [vmem:[#allocation13 + $0x20] sm:$0xff]
      %v743 = vld [vmem:[#allocation13 + $0x28] sm:$0xff]
      %v744 = vld [vmem:[#allocation13 + $0x30] sm:$0xff]
      %v745 = vld [vmem:[#allocation13 + $0x38] sm:$0xff]
      %v746 = vld [vmem:[#allocation13 + $0x40] sm:$0xff]
      %v747 = vld [vmem:[#allocation13 + $0x48] sm:$0xff]
      %v748 = vld [vmem:[#allocation13 + $0x50] sm:$0xff]
      %v749 = vld [vmem:[#allocation13 + $0x58] sm:$0xff]
      %v750 = vld [vmem:[#allocation13 + $0x60] sm:$0xff]
      %v751 = vld [vmem:[#allocation13 + $0x68] sm:$0xff]
      %v752 = vld [vmem:[#allocation13 + $0x70] sm:$0xff]
      %v753 = vld [vmem:[#allocation13 + $0x78] sm:$0xff]
      %v754 = vld [vmem:[#allocation13 + $0x80] sm:$0xff]
      %v755 = vld [vmem:[#allocation13 + $0x88] sm:$0xff]
      %v756 = vld [vmem:[#allocation13 + $0x90] sm:$0xff]
      %v757 = vld [vmem:[#allocation13 + $0x98] sm:$0xff]
      %v758 = vld [vmem:[#allocation13 + $0xa0] sm:$0xff]
      %v759 = vld [vmem:[#allocation13 + $0xa8] sm:$0xff]
      %v760 = vld [vmem:[#allocation13 + $0xb0] sm:$0xff]
      %v761 = vld [vmem:[#allocation13 + $0xb8] sm:$0xff]
      %v762 = vld [vmem:[#allocation13 + $0xc0] sm:$0xff]
      %v763 = vld [vmem:[#allocation13 + $0xc8] sm:$0xff]
      %v764 = vld [vmem:[#allocation13 + $0xd0] sm:$0xff]
      %v765 = vld [vmem:[#allocation13 + $0xd8] sm:$0xff]
      %v766 = vld [vmem:[#allocation13 + $0xe0] sm:$0xff]
      %v767 = vld [vmem:[#allocation13 + $0xe8] sm:$0xff]
      %v768 = vld [vmem:[#allocation13 + $0xf0] sm:$0xff]
      %v769 = vld [vmem:[#allocation13 + $0xf8] sm:$0xff]
      %v770 = vld [vmem:[#allocation13 + $0x100] sm:$0xff]
      %v771 = vld [vmem:[#allocation13 + $0x108] sm:$0xff]
      %v772 = vld [vmem:[#allocation13 + $0x110] sm:$0xff]
      %v773 = vld [vmem:[#allocation13 + $0x118] sm:$0xff]
      %v774 = vld [vmem:[#allocation13 + $0x120] sm:$0xff]
      %v775 = vld [vmem:[#allocation13 + $0x128] sm:$0xff]
      %v776 = vld [vmem:[#allocation13 + $0x130] sm:$0xff]
      %v777 = vld [vmem:[#allocation13 + $0x138] sm:$0xff]
      %v778 = vld [vmem:[#allocation13 + $0x140] sm:$0xff]
      %v779 = vld [vmem:[#allocation13 + $0x148] sm:$0xff]
      %v780 = vld [vmem:[#allocation13 + $0x150] sm:$0xff]
      %v781 = vld [vmem:[#allocation13 + $0x158] sm:$0xff]
      %v782 = vld [vmem:[#allocation13 + $0x160] sm:$0xff]
      %v783 = vld [vmem:[#allocation13 + $0x168] sm:$0xff]
      %v784 = vld [vmem:[#allocation13 + $0x170] sm:$0xff]
      %v785 = vld [vmem:[#allocation13 + $0x178] sm:$0xff]
      %786 = vmatprep.subr.mxu0 %v739
      %787 = vmatpush1.msra.mxu0 %v738
      %788 = vmatprep.subr.mxu0 %v742
      %789 = vmatpush1.msra.mxu0 %v741
      %790 = vmatprep.subr.mxu0 %v745
      %791 = vmatpush1.msra.mxu0 %v744
      %792 = vmatprep.subr.mxu0 %v748
      %793 = vmatpush1.msra.mxu0 %v747
      %794 = vmatprep.subr.mxu0 %v751
      %795 = vmatpush1.msra.mxu0 %v750
      %796 = vmatprep.subr.mxu0 %v754
      %797 = vmatpush1.msra.mxu0 %v753
      %798 = vmatprep.subr.mxu0 %v757
      %799 = vmatpush1.msra.mxu0 %v756
      %800 = vmatprep.subr.mxu0 %v760
      %801 = vmatpush1.msra.mxu0 %v759
      %802 = vmatprep.subr.mxu0 %v763
      %803 = vmatpush1.msra.mxu0 %v762
      %804 = vmatprep.subr.mxu0 %v766
      %805 = vmatpush1.msra.mxu0 %v765
      %806 = vmatprep.subr.mxu0 %v769
      %807 = vmatpush1.msra.mxu0 %v768
      %808 = vmatprep.subr.mxu0 %v772
      %809 = vmatpush1.msra.mxu0 %v771
      %810 = vmatprep.subr.mxu0 %v775
      %811 = vmatpush1.msra.mxu0 %v774
      %812 = vmatprep.subr.mxu0 %v778
      %813 = vmatpush1.msra.mxu0 %v777
      %814 = vmatprep.subr.mxu0 %v781
      %815 = vmatpush1.msra.mxu0 %v780
      %816 = vmatprep.subr.mxu0 %v784
      %817 = vmatpush1.msra.mxu0 %v783
      %818 = vmatprep.subr.mxu0 0.0
      %819 = vmatpush1.msra.mxu0 0.0
      %820 = vmatprep.subr.mxu0 0.0
      %821 = vmatpush1.msra.mxu0 0.0
      %822 = vmatprep.subr.mxu0 0.0
      %823 = vmatpush1.msra.mxu0 0.0
      %824 = vmatprep.subr.mxu0 0.0
      %825 = vmatpush1.msra.mxu0 0.0
      %826 = vmatprep.subr.mxu0 0.0
      %827 = vmatpush1.msra.mxu0 0.0
      %828 = vmatprep.subr.mxu0 0.0
      %829 = vmatpush1.msra.mxu0 0.0
      %830 = vmatprep.subr.mxu0 0.0
      %831 = vmatpush1.msra.mxu0 0.0
      %832 = vmatprep.subr.mxu0 0.0
      %833 = vmatpush1.msra.mxu0 0.0
      %834 = vmatprep.subr.mxu0 0.0
      %835 = vmatpush1.msra.mxu0 0.0
      %836 = vmatprep.subr.mxu0 0.0
      %837 = vmatpush1.msra.mxu0 0.0
      %838 = vmatprep.subr.mxu0 0.0
      %839 = vmatpush1.msra.mxu0 0.0
      %840 = vmatprep.subr.mxu0 0.0
      %841 = vmatpush1.msra.mxu0 0.0
      %842 = vmatprep.subr.mxu0 0.0
      %843 = vmatpush1.msra.mxu0 0.0
      %844 = vmatprep.subr.mxu0 0.0
      %845 = vmatpush1.msra.mxu0 0.0
      %846 = vmatprep.subr.mxu0 0.0
      %847 = vmatpush1.msra.mxu0 0.0
      %848 = vmatprep.subr.mxu0 0.0
      %849 = vmatpush1.msra.mxu0 0.0
      %850 = vmatprep.mubr.f32.mxu0 0.0
      %851 = vmatmul.mubr.f32.gmra.mrb[0].mxu0 %v723
      %v852 = vpop.f32.mrb[0].mxu0
      %v853 = vadd.f32 0.0, %v852
      %v854 = vpop.f32.mrb[0].mxu0
      %v855 = vadd.f32 0.0, %v854
      %856 = vdwg.mxu0
      %857 = vmatprep.subr.mxu0 0.0
      %858 = vmatpush1.msra.mxu0 %v740
      %859 = vmatprep.subr.mxu0 0.0
      %860 = vmatpush1.msra.mxu0 %v743
      %861 = vmatprep.subr.mxu0 0.0
      %862 = vmatpush1.msra.mxu0 %v746
      %863 = vmatprep.subr.mxu0 0.0
      %864 = vmatpush1.msra.mxu0 %v749
      %865 = vmatprep.subr.mxu0 0.0
      %866 = vmatpush1.msra.mxu0 %v752
      %867 = vmatprep.subr.mxu0 0.0
      %868 = vmatpush1.msra.mxu0 %v755
      %869 = vmatprep.subr.mxu0 0.0
      %870 = vmatpush1.msra.mxu0 %v758
      %871 = vmatprep.subr.mxu0 0.0
      %872 = vmatpush1.msra.mxu0 %v761
      %873 = vmatprep.subr.mxu0 0.0
      %874 = vmatpush1.msra.mxu0 %v764
      %875 = vmatprep.subr.mxu0 0.0
      %876 = vmatpush1.msra.mxu0 %v767
      %877 = vmatprep.subr.mxu0 0.0
      %878 = vmatpush1.msra.mxu0 %v770
      %879 = vmatprep.subr.mxu0 0.0
      %880 = vmatpush1.msra.mxu0 %v773
      %881 = vmatprep.subr.mxu0 0.0
      %882 = vmatpush1.msra.mxu0 %v776
      %883 = vmatprep.subr.mxu0 0.0
      %884 = vmatpush1.msra.mxu0 %v779
      %885 = vmatprep.subr.mxu0 0.0
      %886 = vmatpush1.msra.mxu0 %v782
      %887 = vmatprep.subr.mxu0 0.0
      %888 = vmatpush1.msra.mxu0 %v785
      %889 = vmatprep.subr.mxu0 0.0
      %890 = vmatpush1.msra.mxu0 0.0
      %891 = vmatprep.subr.mxu0 0.0
      %892 = vmatpush1.msra.mxu0 0.0
      %893 = vmatprep.subr.mxu0 0.0
      %894 = vmatpush1.msra.mxu0 0.0
      %895 = vmatprep.subr.mxu0 0.0
      %896 = vmatpush1.msra.mxu0 0.0
      %897 = vmatprep.subr.mxu0 0.0
      %898 = vmatpush1.msra.mxu0 0.0
      %899 = vmatprep.subr.mxu0 0.0
      %900 = vmatpush1.msra.mxu0 0.0
      %901 = vmatprep.subr.mxu0 0.0
      %902 = vmatpush1.msra.mxu0 0.0
      %903 = vmatprep.subr.mxu0 0.0
      %904 = vmatpush1.msra.mxu0 0.0
      %905 = vmatprep.subr.mxu0 0.0
      %906 = vmatpush1.msra.mxu0 0.0
      %907 = vmatprep.subr.mxu0 0.0
      %908 = vmatpush1.msra.mxu0 0.0
      %909 = vmatprep.subr.mxu0 0.0
      %910 = vmatpush1.msra.mxu0 0.0
      %911 = vmatprep.subr.mxu0 0.0
      %912 = vmatpush1.msra.mxu0 0.0
      %913 = vmatprep.subr.mxu0 0.0
      %914 = vmatpush1.msra.mxu0 0.0
      %915 = vmatprep.subr.mxu0 0.0
      %916 = vmatpush1.msra.mxu0 0.0
      %917 = vmatprep.subr.mxu0 0.0
      %918 = vmatpush1.msra.mxu0 0.0
      %919 = vmatprep.subr.mxu0 0.0
      %920 = vmatpush1.msra.mxu0 0.0
      %921 = vmatprep.mubr.f32.mxu0 0.0
      %922 = vmatmul.mubr.f32.gmra.mrb[0].mxu0 %v723
      %v923 = vpop.f32.mrb[0].mxu0
      %v924 = vadd.f32 0.0, %v923
      %v925 = vpop.f32.mrb[0].mxu0
      %926 = vdwg.mxu0
      %s927 = scalar_lea.vmem [#allocation13], 384
      %v928 = vld [vmem:[%s927] sm:$0xff]
      %v929 = vld [vmem:[%s927 + $0x8] sm:$0xff]
      %v930 = vld [vmem:[%s927 + $0x10] sm:$0xff]
      %v931 = vld [vmem:[%s927 + $0x18] sm:$0xff]
      %v932 = vld [vmem:[%s927 + $0x20] sm:$0xff]
      %v933 = vld [vmem:[%s927 + $0x28] sm:$0xff]
      %v934 = vld [vmem:[%s927 + $0x30] sm:$0xff]
      %v935 = vld [vmem:[%s927 + $0x38] sm:$0xff]
      %v936 = vld [vmem:[%s927 + $0x40] sm:$0xff]
      %v937 = vld [vmem:[%s927 + $0x48] sm:$0xff]
      %v938 = vld [vmem:[%s927 + $0x50] sm:$0xff]
      %v939 = vld [vmem:[%s927 + $0x58] sm:$0xff]
      %v940 = vld [vmem:[%s927 + $0x60] sm:$0xff]
      %v941 = vld [vmem:[%s927 + $0x68] sm:$0xff]
      %v942 = vld [vmem:[%s927 + $0x70] sm:$0xff]
      %v943 = vld [vmem:[%s927 + $0x78] sm:$0xff]
      %v944 = vld [vmem:[%s927 + $0x80] sm:$0xff]
      %v945 = vld [vmem:[%s927 + $0x88] sm:$0xff]
      %v946 = vld [vmem:[%s927 + $0x90] sm:$0xff]
      %v947 = vld [vmem:[%s927 + $0x98] sm:$0xff]
      %v948 = vld [vmem:[%s927 + $0xa0] sm:$0xff]
      %v949 = vld [vmem:[%s927 + $0xa8] sm:$0xff]
      %v950 = vld [vmem:[%s927 + $0xb0] sm:$0xff]
      %v951 = vld [vmem:[%s927 + $0xb8] sm:$0xff]
      %v952 = vld [vmem:[%s927 + $0xc0] sm:$0xff]
      %v953 = vld [vmem:[%s927 + $0xc8] sm:$0xff]
      %v954 = vld [vmem:[%s927 + $0xd0] sm:$0xff]
      %v955 = vld [vmem:[%s927 + $0xd8] sm:$0xff]
      %v956 = vld [vmem:[%s927 + $0xe0] sm:$0xff]
      %v957 = vld [vmem:[%s927 + $0xe8] sm:$0xff]
      %v958 = vld [vmem:[%s927 + $0xf0] sm:$0xff]
      %v959 = vld [vmem:[%s927 + $0xf8] sm:$0xff]
      %v960 = vld [vmem:[%s927 + $0x100] sm:$0xff]
      %v961 = vld [vmem:[%s927 + $0x108] sm:$0xff]
      %v962 = vld [vmem:[%s927 + $0x110] sm:$0xff]
      %v963 = vld [vmem:[%s927 + $0x118] sm:$0xff]
      %v964 = vld [vmem:[%s927 + $0x120] sm:$0xff]
      %v965 = vld [vmem:[%s927 + $0x128] sm:$0xff]
      %v966 = vld [vmem:[%s927 + $0x130] sm:$0xff]
      %v967 = vld [vmem:[%s927 + $0x138] sm:$0xff]
      %v968 = vld [vmem:[%s927 + $0x140] sm:$0xff]
      %v969 = vld [vmem:[%s927 + $0x148] sm:$0xff]
      %v970 = vld [vmem:[%s927 + $0x150] sm:$0xff]
      %v971 = vld [vmem:[%s927 + $0x158] sm:$0xff]
      %v972 = vld [vmem:[%s927 + $0x160] sm:$0xff]
      %v973 = vld [vmem:[%s927 + $0x168] sm:$0xff]
      %v974 = vld [vmem:[%s927 + $0x170] sm:$0xff]
      %v975 = vld [vmem:[%s927 + $0x178] sm:$0xff]
      %976 = vmatprep.subr.mxu0 %v929
      %977 = vmatpush1.msra.mxu0 %v928
      %978 = vmatprep.subr.mxu0 %v932
      %979 = vmatpush1.msra.mxu0 %v931
      %980 = vmatprep.subr.mxu0 %v935
      %981 = vmatpush1.msra.mxu0 %v934
      %982 = vmatprep.subr.mxu0 %v938
      %983 = vmatpush1.msra.mxu0 %v937
      %984 = vmatprep.subr.mxu0 %v941
      %985 = vmatpush1.msra.mxu0 %v940
      %986 = vmatprep.subr.mxu0 %v944
      %987 = vmatpush1.msra.mxu0 %v943
      %988 = vmatprep.subr.mxu0 %v947
      %989 = vmatpush1.msra.mxu0 %v946
      %990 = vmatprep.subr.mxu0 %v950
      %991 = vmatpush1.msra.mxu0 %v949
      %992 = vmatprep.subr.mxu0 %v953
      %993 = vmatpush1.msra.mxu0 %v952
      %994 = vmatprep.subr.mxu0 %v956
      %995 = vmatpush1.msra.mxu0 %v955
      %996 = vmatprep.subr.mxu0 %v959
      %997 = vmatpush1.msra.mxu0 %v958
      %998 = vmatprep.subr.mxu0 %v962
      %999 = vmatpush1.msra.mxu0 %v961
      %1000 = vmatprep.subr.mxu0 %v965
      %1001 = vmatpush1.msra.mxu0 %v964
      %1002 = vmatprep.subr.mxu0 %v968
      %1003 = vmatpush1.msra.mxu0 %v967
      %1004 = vmatprep.subr.mxu0 %v971
      %1005 = vmatpush1.msra.mxu0 %v970
      %1006 = vmatprep.subr.mxu0 %v974
      %1007 = vmatpush1.msra.mxu0 %v973
      %1008 = vmatprep.subr.mxu0 0.0
      %1009 = vmatpush1.msra.mxu0 0.0
      %1010 = vmatprep.subr.mxu0 0.0
      %1011 = vmatpush1.msra.mxu0 0.0
      %1012 = vmatprep.subr.mxu0 0.0
      %1013 = vmatpush1.msra.mxu0 0.0
      %1014 = vmatprep.subr.mxu0 0.0
      %1015 = vmatpush1.msra.mxu0 0.0
      %1016 = vmatprep.subr.mxu0 0.0
      %1017 = vmatpush1.msra.mxu0 0.0
      %1018 = vmatprep.subr.mxu0 0.0
      %1019 = vmatpush1.msra.mxu0 0.0
      %1020 = vmatprep.subr.mxu0 0.0
      %1021 = vmatpush1.msra.mxu0 0.0
      %1022 = vmatprep.subr.mxu0 0.0
      %1023 = vmatpush1.msra.mxu0 0.0
      %1024 = vmatprep.subr.mxu0 0.0
      %1025 = vmatpush1.msra.mxu0 0.0
      %1026 = vmatprep.subr.mxu0 0.0
      %1027 = vmatpush1.msra.mxu0 0.0
      %1028 = vmatprep.subr.mxu0 0.0
      %1029 = vmatpush1.msra.mxu0 0.0
      %1030 = vmatprep.subr.mxu0 0.0
      %1031 = vmatpush1.msra.mxu0 0.0
      %1032 = vmatprep.subr.mxu0 0.0
      %1033 = vmatpush1.msra.mxu0 0.0
      %1034 = vmatprep.subr.mxu0 0.0
      %1035 = vmatpush1.msra.mxu0 0.0
      %1036 = vmatprep.subr.mxu0 0.0
      %1037 = vmatpush1.msra.mxu0 0.0
      %1038 = vmatprep.subr.mxu0 0.0
      %1039 = vmatpush1.msra.mxu0 0.0
      %1040 = vmatprep.mubr.f32.mxu0 0.0
      %1041 = vmatmul.mubr.f32.gmra.mrb[0].mxu0 %v725
      %v1042 = vpop.f32.mrb[0].mxu0
      %v1043 = vadd.f32 0.0, %v1042
      %v1044 = vpop.f32.mrb[0].mxu0
      %v1045 = vadd.f32 0.0, %v1044
      %1046 = vdwg.mxu0
      %1047 = vmatprep.subr.mxu0 0.0
      %1048 = vmatpush1.msra.mxu0 %v930
      %1049 = vmatprep.subr.mxu0 0.0
      %1050 = vmatpush1.msra.mxu0 %v933
      %1051 = vmatprep.subr.mxu0 0.0
      %1052 = vmatpush1.msra.mxu0 %v936
      %1053 = vmatprep.subr.mxu0 0.0
      %1054 = vmatpush1.msra.mxu0 %v939
      %1055 = vmatprep.subr.mxu0 0.0
      %1056 = vmatpush1.msra.mxu0 %v942
      %1057 = vmatprep.subr.mxu0 0.0
      %1058 = vmatpush1.msra.mxu0 %v945
      %1059 = vmatprep.subr.mxu0 0.0
      %1060 = vmatpush1.msra.mxu0 %v948
      %1061 = vmatprep.subr.mxu0 0.0
      %1062 = vmatpush1.msra.mxu0 %v951
      %1063 = vmatprep.subr.mxu0 0.0
      %1064 = vmatpush1.msra.mxu0 %v954
      %1065 = vmatprep.subr.mxu0 0.0
      %1066 = vmatpush1.msra.mxu0 %v957
      %1067 = vmatprep.subr.mxu0 0.0
      %1068 = vmatpush1.msra.mxu0 %v960
      %1069 = vmatprep.subr.mxu0 0.0
      %1070 = vmatpush1.msra.mxu0 %v963
      %1071 = vmatprep.subr.mxu0 0.0
      %1072 = vmatpush1.msra.mxu0 %v966
      %1073 = vmatprep.subr.mxu0 0.0
      %1074 = vmatpush1.msra.mxu0 %v969
      %1075 = vmatprep.subr.mxu0 0.0
      %1076 = vmatpush1.msra.mxu0 %v972
      %1077 = vmatprep.subr.mxu0 0.0
      %1078 = vmatpush1.msra.mxu0 %v975
      %1079 = vmatprep.subr.mxu0 0.0
      %1080 = vmatpush1.msra.mxu0 0.0
      %1081 = vmatprep.subr.mxu0 0.0
      %1082 = vmatpush1.msra.mxu0 0.0
      %1083 = vmatprep.subr.mxu0 0.0
      %1084 = vmatpush1.msra.mxu0 0.0
      %1085 = vmatprep.subr.mxu0 0.0
      %1086 = vmatpush1.msra.mxu0 0.0
      %1087 = vmatprep.subr.mxu0 0.0
      %1088 = vmatpush1.msra.mxu0 0.0
      %1089 = vmatprep.subr.mxu0 0.0
      %1090 = vmatpush1.msra.mxu0 0.0
      %1091 = vmatprep.subr.mxu0 0.0
      %1092 = vmatpush1.msra.mxu0 0.0
      %1093 = vmatprep.subr.mxu0 0.0
      %1094 = vmatpush1.msra.mxu0 0.0
      %1095 = vmatprep.subr.mxu0 0.0
      %1096 = vmatpush1.msra.mxu0 0.0
      %1097 = vmatprep.subr.mxu0 0.0
      %1098 = vmatpush1.msra.mxu0 0.0
      %1099 = vmatprep.subr.mxu0 0.0
      %1100 = vmatpush1.msra.mxu0 0.0
      %1101 = vmatprep.subr.mxu0 0.0
      %1102 = vmatpush1.msra.mxu0 0.0
      %1103 = vmatprep.subr.mxu0 0.0
      %1104 = vmatpush1.msra.mxu0 0.0
      %1105 = vmatprep.subr.mxu0 0.0
      %1106 = vmatpush1.msra.mxu0 0.0
      %1107 = vmatprep.subr.mxu0 0.0
      %1108 = vmatpush1.msra.mxu0 0.0
      %1109 = vmatprep.subr.mxu0 0.0
      %1110 = vmatpush1.msra.mxu0 0.0
      %1111 = vmatprep.mubr.f32.mxu0 0.0
      %1112 = vmatmul.mubr.f32.gmra.mrb[0].mxu0 %v725
      %v1113 = vpop.f32.mrb[0].mxu0
      %v1114 = vadd.f32 0.0, %v1113
      %v1115 = vpop.f32.mrb[0].mxu0
      %1116 = vdwg.mxu0
      %v1117 = vadd.f32 %v729, %v853
      %v1118 = vadd.f32 %v730, %v855
      %v1119 = vmul.f32 %v1117, 0.5
      %v1120 = vmul.f32 %v1118, 0.5
      %v1121 = vtanh.pop %v1119
      %v1122 = vtanh.pop %v1120
      %v1123 = vadd.f32 %v1121, 1.0
      %v1124 = vadd.f32 %v1122, 1.0
      %v1125 = vmul.f32 %v1123, 0.5
      %v1126 = vmul.f32 %v1124, 0.5
      %v1127 = vadd.f32 %v924, %v705
      %v1128 = vmul.f32 %v1125, %v1127
      %v1129 = vadd.f32 %v731, %v1128
      %v1130 = vtanh.pop %v1129
      %v1131 = vsub.f32 1.0, %v1126
      %v1132 = vmul.f32 %v1131, %v1130
      %v1133 = vmul.f32 %v1126, %v723
      %v1134 = vadd.f32 %v1132, %v1133
      %v1135 = vadd.f32 %v735, %v1043
      %v1136 = vadd.f32 %v736, %v1045
      %v1137 = vmul.f32 %v1135, 0.5
      %v1138 = vmul.f32 %v1136, 0.5
      %v1139 = vtanh.pop %v1137
      %v1140 = vtanh.pop %v1138
      %v1141 = vadd.f32 %v1139, 1.0
      %v1142 = vadd.f32 %v1140, 1.0
      %v1143 = vmul.f32 %v1141, 0.5
      %v1144 = vmul.f32 %v1142, 0.5
      %v1145 = vadd.f32 %v1114, %v713
      %v1146 = vmul.f32 %v1143, %v1145
      %v1147 = vadd.f32 %v737, %v1146
      %v1148 = vtanh.pop %v1147
      %v1149 = vsub.f32 1.0, %v1144
      %v1150 = vmul.f32 %v1149, %v1148
      %v1151 = vmul.f32 %v1144, %v725
      %v1152 = vadd.f32 %v1150, %v1151
      %v1153 = vstv %s716
      %vm1154 = vcmp.lt.s32.totalorder %v1153, %v173
      %v1155 = vsel %vm1154, 1, 0
      %1156 = vset.pattern.permute.xlu0 0
      %1157 = vperm.xlu0 %1156, %v1155
      %v1158 = vpop.permute.xlu0 %1157
      %vm1159 = vcmp.eq.s32.totalorder %v1158, 1
      %v1160 = vsel %vm1159, %v1134, %v723
      %v1161 = vstv %s722
      %vm1162 = vcmp.lt.s32.totalorder %v1161, %v173
      %v1163 = vsel %vm1162, 1, 0
      %1164 = vset.pattern.permute.xlu0 0
      %1165 = vperm.xlu0 %1164, %v1163
      %v1166 = vpop.permute.xlu0 %1165
      %vm1167 = vcmp.eq.s32.totalorder %v1166, 1
      %v1168 = vsel %vm1167, %v1152, %v725
      %1169 = vst [vmem:[#allocation4] sm:$0xff] %v1160
      %1170 = vst [vmem:[%s724] sm:$0xff] %v1168
      %s1171 = smul.u32 %s716, 2
      %s1172 = smul.addr %s1171, 8
      %s1173 = scalar_lea.vmem [#allocation2], %s1172
      %1174 = vst [vmem:[%s1173] sm:$0xff] %v1160
      %s1175 = smul.u32 %s722, 2
      %s1176 = smul.addr %s1175, 8
      %s1177 = scalar_lea.vmem [#allocation2], %s1176
      %1178 = vst [vmem:[%s1177 + $0x8] sm:$0xff] %v1168
    $region90: #{tpu_custom_call.1} parent=1 // loop_footer
      %s718 = sadd.s32 %s716, 1
    $region91: #{tpu_custom_call.1} parent=1 // loop_footer_branch
      %715 = sbr.rel target = $region87
    $region92: #{tpu_custom_call.1} parent=1 // loop_exit
      _
    %v1179 = vld [vmem:[#allocation2] sm:$0xff]
    %v1180 = vld [vmem:[#allocation2 + $0x8] sm:$0xff]
    %v1181 = vld [vmem:[#allocation2 + $0x10] sm:$0xff]
    %v1182 = vld [vmem:[#allocation2 + $0x18] sm:$0xff]
    %v1183 = vld [vmem:[#allocation2 + $0x20] sm:$0xff]
    %v1184 = vld [vmem:[#allocation2 + $0x28] sm:$0xff]
    %v1185 = vld [vmem:[#allocation2 + $0x30] sm:$0xff]
    %v1186 = vld [vmem:[#allocation2 + $0x38] sm:$0xff]
    %v1187 = vld [vmem:[#allocation2 + $0x40] sm:$0xff]
    %v1188 = vld [vmem:[#allocation2 + $0x48] sm:$0xff]
    %v1189 = vld [vmem:[#allocation2 + $0x50] sm:$0xff]
    %v1190 = vld [vmem:[#allocation2 + $0x58] sm:$0xff]
    %v1191 = vld [vmem:[#allocation2 + $0x60] sm:$0xff]
    %v1192 = vld [vmem:[#allocation2 + $0x68] sm:$0xff]
    %v1193 = vld [vmem:[#allocation2 + $0x70] sm:$0xff]
    %v1194 = vld [vmem:[#allocation2 + $0x78] sm:$0xff]
    %v1195 = vld [vmem:[#allocation12] sm:$0xff]
    %v1196 = vld [vmem:[#allocation12 + $0x8] sm:$0xff]
    %v1197 = vld [vmem:[#allocation12 + $0x10] sm:$0xff]
    %v1198 = vld [vmem:[#allocation12 + $0x18] sm:$0xff]
    %v1199 = vld [vmem:[#allocation12 + $0x20] sm:$0xff]
    %v1200 = vld [vmem:[#allocation12 + $0x28] sm:$0xff]
    %v1201 = vld [vmem:[#allocation12 + $0x30] sm:$0xff]
    %v1202 = vld [vmem:[#allocation12 + $0x38] sm:$0xff]
    %v1203 = vld [vmem:[#allocation12 + $0x40] sm:$0xff]
    %v1204 = vld [vmem:[#allocation12 + $0x48] sm:$0xff]
    %v1205 = vld [vmem:[#allocation12 + $0x50] sm:$0xff]
    %v1206 = vld [vmem:[#allocation12 + $0x58] sm:$0xff]
    %v1207 = vld [vmem:[#allocation12 + $0x60] sm:$0xff]
    %v1208 = vld [vmem:[#allocation12 + $0x68] sm:$0xff]
    %v1209 = vld [vmem:[#allocation12 + $0x70] sm:$0xff]
    %v1210 = vld [vmem:[#allocation12 + $0x78] sm:$0xff]
    %v1211 = vld [vmem:[#allocation12 + $0x80] sm:$0xff]
    %v1212 = vld [vmem:[#allocation12 + $0x88] sm:$0xff]
    %v1213 = vld [vmem:[#allocation12 + $0x90] sm:$0xff]
    %v1214 = vld [vmem:[#allocation12 + $0x98] sm:$0xff]
    %v1215 = vld [vmem:[#allocation12 + $0xa0] sm:$0xff]
    %v1216 = vld [vmem:[#allocation12 + $0xa8] sm:$0xff]
    %v1217 = vld [vmem:[#allocation12 + $0xb0] sm:$0xff]
    %v1218 = vld [vmem:[#allocation12 + $0xb8] sm:$0xff]
    %v1219 = vld [vmem:[#allocation12 + $0xc0] sm:$0xff]
    %v1220 = vld [vmem:[#allocation12 + $0xc8] sm:$0xff]
    %v1221 = vld [vmem:[#allocation12 + $0xd0] sm:$0xff]
    %v1222 = vld [vmem:[#allocation12 + $0xd8] sm:$0xff]
    %v1223 = vld [vmem:[#allocation12 + $0xe0] sm:$0xff]
    %v1224 = vld [vmem:[#allocation12 + $0xe8] sm:$0xff]
    %v1225 = vld [vmem:[#allocation12 + $0xf0] sm:$0xff]
    %v1226 = vld [vmem:[#allocation12 + $0xf8] sm:$0xff]
    %v1227 = vld [vmem:[#allocation12 + $0x100] sm:$0xff]
    %v1228 = vld [vmem:[#allocation12 + $0x108] sm:$0xff]
    %v1229 = vld [vmem:[#allocation12 + $0x110] sm:$0xff]
    %v1230 = vld [vmem:[#allocation12 + $0x118] sm:$0xff]
    %v1231 = vld [vmem:[#allocation12 + $0x120] sm:$0xff]
    %v1232 = vld [vmem:[#allocation12 + $0x128] sm:$0xff]
    %v1233 = vld [vmem:[#allocation12 + $0x130] sm:$0xff]
    %v1234 = vld [vmem:[#allocation12 + $0x138] sm:$0xff]
    %v1235 = vld [vmem:[#allocation12 + $0x140] sm:$0xff]
    %v1236 = vld [vmem:[#allocation12 + $0x148] sm:$0xff]
    %v1237 = vld [vmem:[#allocation12 + $0x150] sm:$0xff]
    %v1238 = vld [vmem:[#allocation12 + $0x158] sm:$0xff]
    %v1239 = vld [vmem:[#allocation12 + $0x160] sm:$0xff]
    %v1240 = vld [vmem:[#allocation12 + $0x168] sm:$0xff]
    %v1241 = vld [vmem:[#allocation12 + $0x170] sm:$0xff]
    %v1242 = vld [vmem:[#allocation12 + $0x178] sm:$0xff]
    %v1243 = vld [vmem:[#allocation12 + $0x180] sm:$0xff]
    %v1244 = vld [vmem:[#allocation12 + $0x188] sm:$0xff]
    %v1245 = vld [vmem:[#allocation12 + $0x190] sm:$0xff]
    %v1246 = vld [vmem:[#allocation12 + $0x198] sm:$0xff]
    %v1247 = vld [vmem:[#allocation12 + $0x1a0] sm:$0xff]
    %v1248 = vld [vmem:[#allocation12 + $0x1a8] sm:$0xff]
    %v1249 = vld [vmem:[#allocation12 + $0x1b0] sm:$0xff]
    %v1250 = vld [vmem:[#allocation12 + $0x1b8] sm:$0xff]
    %v1251 = vld [vmem:[#allocation12 + $0x1c0] sm:$0xff]
    %v1252 = vld [vmem:[#allocation12 + $0x1c8] sm:$0xff]
    %v1253 = vld [vmem:[#allocation12 + $0x1d0] sm:$0xff]
    %v1254 = vld [vmem:[#allocation12 + $0x1d8] sm:$0xff]
    %v1255 = vld [vmem:[#allocation12 + $0x1e0] sm:$0xff]
    %v1256 = vld [vmem:[#allocation12 + $0x1e8] sm:$0xff]
    %v1257 = vld [vmem:[#allocation12 + $0x1f0] sm:$0xff]
    %v1258 = vld [vmem:[#allocation12 + $0x1f8] sm:$0xff]
    %v1259 = vld [vmem:[#allocation12 + $0x200] sm:$0xff]
    %v1260 = vld [vmem:[#allocation12 + $0x208] sm:$0xff]
    %v1261 = vld [vmem:[#allocation12 + $0x210] sm:$0xff]
    %v1262 = vld [vmem:[#allocation12 + $0x218] sm:$0xff]
    %v1263 = vld [vmem:[#allocation12 + $0x220] sm:$0xff]
    %v1264 = vld [vmem:[#allocation12 + $0x228] sm:$0xff]
    %v1265 = vld [vmem:[#allocation12 + $0x230] sm:$0xff]
    %v1266 = vld [vmem:[#allocation12 + $0x238] sm:$0xff]
    %v1267 = vld [vmem:[#allocation12 + $0x240] sm:$0xff]
    %v1268 = vld [vmem:[#allocation12 + $0x248] sm:$0xff]
    %v1269 = vld [vmem:[#allocation12 + $0x250] sm:$0xff]
    %v1270 = vld [vmem:[#allocation12 + $0x258] sm:$0xff]
    %v1271 = vld [vmem:[#allocation12 + $0x260] sm:$0xff]
    %v1272 = vld [vmem:[#allocation12 + $0x268] sm:$0xff]
    %v1273 = vld [vmem:[#allocation12 + $0x270] sm:$0xff]
    %v1274 = vld [vmem:[#allocation12 + $0x278] sm:$0xff]
    %v1275 = vld [vmem:[#allocation12 + $0x280] sm:$0xff]
    %v1276 = vld [vmem:[#allocation12 + $0x288] sm:$0xff]
    %v1277 = vld [vmem:[#allocation12 + $0x290] sm:$0xff]
    %v1278 = vld [vmem:[#allocation12 + $0x298] sm:$0xff]
    %v1279 = vld [vmem:[#allocation12 + $0x2a0] sm:$0xff]
    %v1280 = vld [vmem:[#allocation12 + $0x2a8] sm:$0xff]
    %v1281 = vld [vmem:[#allocation12 + $0x2b0] sm:$0xff]
    %v1282 = vld [vmem:[#allocation12 + $0x2b8] sm:$0xff]
    %v1283 = vld [vmem:[#allocation12 + $0x2c0] sm:$0xff]
    %v1284 = vld [vmem:[#allocation12 + $0x2c8] sm:$0xff]
    %v1285 = vld [vmem:[#allocation12 + $0x2d0] sm:$0xff]
    %v1286 = vld [vmem:[#allocation12 + $0x2d8] sm:$0xff]
    %v1287 = vld [vmem:[#allocation12 + $0x2e0] sm:$0xff]
    %v1288 = vld [vmem:[#allocation12 + $0x2e8] sm:$0xff]
    %v1289 = vld [vmem:[#allocation12 + $0x2f0] sm:$0xff]
    %v1290 = vld [vmem:[#allocation12 + $0x2f8] sm:$0xff]
    %v1291 = vld [vmem:[#allocation12 + $0x300] sm:$0xff]
    %v1292 = vld [vmem:[#allocation12 + $0x308] sm:$0xff]
    %v1293 = vld [vmem:[#allocation12 + $0x310] sm:$0xff]
    %v1294 = vld [vmem:[#allocation12 + $0x318] sm:$0xff]
    %v1295 = vld [vmem:[#allocation12 + $0x320] sm:$0xff]
    %v1296 = vld [vmem:[#allocation12 + $0x328] sm:$0xff]
    %v1297 = vld [vmem:[#allocation12 + $0x330] sm:$0xff]
    %v1298 = vld [vmem:[#allocation12 + $0x338] sm:$0xff]
    %v1299 = vld [vmem:[#allocation12 + $0x340] sm:$0xff]
    %v1300 = vld [vmem:[#allocation12 + $0x348] sm:$0xff]
    %v1301 = vld [vmem:[#allocation12 + $0x350] sm:$0xff]
    %v1302 = vld [vmem:[#allocation12 + $0x358] sm:$0xff]
    %v1303 = vld [vmem:[#allocation12 + $0x360] sm:$0xff]
    %v1304 = vld [vmem:[#allocation12 + $0x368] sm:$0xff]
    %v1305 = vld [vmem:[#allocation12 + $0x370] sm:$0xff]
    %v1306 = vld [vmem:[#allocation12 + $0x378] sm:$0xff]
    %v1307 = vld [vmem:[#allocation12 + $0x380] sm:$0xff]
    %v1308 = vld [vmem:[#allocation12 + $0x388] sm:$0xff]
    %v1309 = vld [vmem:[#allocation12 + $0x390] sm:$0xff]
    %v1310 = vld [vmem:[#allocation12 + $0x398] sm:$0xff]
    %v1311 = vld [vmem:[#allocation12 + $0x3a0] sm:$0xff]
    %v1312 = vld [vmem:[#allocation12 + $0x3a8] sm:$0xff]
    %v1313 = vld [vmem:[#allocation12 + $0x3b0] sm:$0xff]
    %v1314 = vld [vmem:[#allocation12 + $0x3b8] sm:$0xff]
    %v1315 = vld [vmem:[#allocation12 + $0x3c0] sm:$0xff]
    %v1316 = vld [vmem:[#allocation12 + $0x3c8] sm:$0xff]
    %v1317 = vld [vmem:[#allocation12 + $0x3d0] sm:$0xff]
    %v1318 = vld [vmem:[#allocation12 + $0x3d8] sm:$0xff]
    %v1319 = vld [vmem:[#allocation12 + $0x3e0] sm:$0xff]
    %v1320 = vld [vmem:[#allocation12 + $0x3e8] sm:$0xff]
    %v1321 = vld [vmem:[#allocation12 + $0x3f0] sm:$0xff]
    %v1322 = vld [vmem:[#allocation12 + $0x3f8] sm:$0xff]
    %v1323 = vld [vmem:[#allocation12 + $0x400] sm:$0xff]
    %v1324 = vld [vmem:[#allocation12 + $0x408] sm:$0xff]
    %v1325 = vld [vmem:[#allocation12 + $0x410] sm:$0xff]
    %v1326 = vld [vmem:[#allocation12 + $0x418] sm:$0xff]
    %v1327 = vld [vmem:[#allocation12 + $0x420] sm:$0xff]
    %v1328 = vld [vmem:[#allocation12 + $0x428] sm:$0xff]
    %v1329 = vld [vmem:[#allocation12 + $0x430] sm:$0xff]
    %v1330 = vld [vmem:[#allocation12 + $0x438] sm:$0xff]
    %v1331 = vld [vmem:[#allocation12 + $0x440] sm:$0xff]
    %v1332 = vld [vmem:[#allocation12 + $0x448] sm:$0xff]
    %v1333 = vld [vmem:[#allocation12 + $0x450] sm:$0xff]
    %v1334 = vld [vmem:[#allocation12 + $0x458] sm:$0xff]
    %v1335 = vld [vmem:[#allocation12 + $0x460] sm:$0xff]
    %v1336 = vld [vmem:[#allocation12 + $0x468] sm:$0xff]
    %v1337 = vld [vmem:[#allocation12 + $0x470] sm:$0xff]
    %v1338 = vld [vmem:[#allocation12 + $0x478] sm:$0xff]
    %v1339 = vld [vmem:[#allocation12 + $0x480] sm:$0xff]
    %v1340 = vld [vmem:[#allocation12 + $0x488] sm:$0xff]
    %v1341 = vld [vmem:[#allocation12 + $0x490] sm:$0xff]
    %v1342 = vld [vmem:[#allocation12 + $0x498] sm:$0xff]
    %v1343 = vld [vmem:[#allocation12 + $0x4a0] sm:$0xff]
    %v1344 = vld [vmem:[#allocation12 + $0x4a8] sm:$0xff]
    %v1345 = vld [vmem:[#allocation12 + $0x4b0] sm:$0xff]
    %v1346 = vld [vmem:[#allocation12 + $0x4b8] sm:$0xff]
    %v1347 = vld [vmem:[#allocation12 + $0x4c0] sm:$0xff]
    %v1348 = vld [vmem:[#allocation12 + $0x4c8] sm:$0xff]
    %v1349 = vld [vmem:[#allocation12 + $0x4d0] sm:$0xff]
    %v1350 = vld [vmem:[#allocation12 + $0x4d8] sm:$0xff]
    %v1351 = vld [vmem:[#allocation12 + $0x4e0] sm:$0xff]
    %v1352 = vld [vmem:[#allocation12 + $0x4e8] sm:$0xff]
    %v1353 = vld [vmem:[#allocation12 + $0x4f0] sm:$0xff]
    %v1354 = vld [vmem:[#allocation12 + $0x4f8] sm:$0xff]
    %v1355 = vld [vmem:[#allocation12 + $0x500] sm:$0xff]
    %v1356 = vld [vmem:[#allocation12 + $0x508] sm:$0xff]
    %v1357 = vld [vmem:[#allocation12 + $0x510] sm:$0xff]
    %v1358 = vld [vmem:[#allocation12 + $0x518] sm:$0xff]
    %v1359 = vld [vmem:[#allocation12 + $0x520] sm:$0xff]
    %v1360 = vld [vmem:[#allocation12 + $0x528] sm:$0xff]
    %v1361 = vld [vmem:[#allocation12 + $0x530] sm:$0xff]
    %v1362 = vld [vmem:[#allocation12 + $0x538] sm:$0xff]
    %v1363 = vld [vmem:[#allocation12 + $0x540] sm:$0xff]
    %v1364 = vld [vmem:[#allocation12 + $0x548] sm:$0xff]
    %v1365 = vld [vmem:[#allocation12 + $0x550] sm:$0xff]
    %v1366 = vld [vmem:[#allocation12 + $0x558] sm:$0xff]
    %v1367 = vld [vmem:[#allocation12 + $0x560] sm:$0xff]
    %v1368 = vld [vmem:[#allocation12 + $0x568] sm:$0xff]
    %v1369 = vld [vmem:[#allocation12 + $0x570] sm:$0xff]
    %v1370 = vld [vmem:[#allocation12 + $0x578] sm:$0xff]
    %v1371 = vld [vmem:[#allocation12 + $0x580] sm:$0xff]
    %v1372 = vld [vmem:[#allocation12 + $0x588] sm:$0xff]
    %v1373 = vld [vmem:[#allocation12 + $0x590] sm:$0xff]
    %v1374 = vld [vmem:[#allocation12 + $0x598] sm:$0xff]
    %v1375 = vld [vmem:[#allocation12 + $0x5a0] sm:$0xff]
    %v1376 = vld [vmem:[#allocation12 + $0x5a8] sm:$0xff]
    %v1377 = vld [vmem:[#allocation12 + $0x5b0] sm:$0xff]
    %v1378 = vld [vmem:[#allocation12 + $0x5b8] sm:$0xff]
    %v1379 = vld [vmem:[#allocation12 + $0x5c0] sm:$0xff]
    %v1380 = vld [vmem:[#allocation12 + $0x5c8] sm:$0xff]
    %v1381 = vld [vmem:[#allocation12 + $0x5d0] sm:$0xff]
    %v1382 = vld [vmem:[#allocation12 + $0x5d8] sm:$0xff]
    %v1383 = vld [vmem:[#allocation12 + $0x5e0] sm:$0xff]
    %v1384 = vld [vmem:[#allocation12 + $0x5e8] sm:$0xff]
    %v1385 = vld [vmem:[#allocation12 + $0x5f0] sm:$0xff]
    %v1386 = vld [vmem:[#allocation12 + $0x5f8] sm:$0xff]
    %s1387 = scalar_lea.vmem [#allocation15], 6
    %v1388 = vld [vmem:[%s1387] sm:$0x3f]
    %v1390 = vlaneseq
    %v1391 = vshrl.u32 %v1390, 7
    %v1392 = vsub.s32 0, %v1391
    %v1393 = vrot.slane %v1388, %v1392
    %v1394 = vlaneseq
    %v1395 = vshrl.u32 %v1394, 7
    %v1396 = vsub.s32 1, %v1395
    %v1397 = vrot.slane %v1388, %v1396
    %v1398 = vlaneseq
    %v1399 = vshrl.u32 %v1398, 7
    %v1400 = vsub.s32 2, %v1399
    %v1401 = vrot.slane %v1388, %v1400
    %v1402 = vlaneseq
    %v1403 = vshrl.u32 %v1402, 7
    %v1404 = vsub.s32 3, %v1403
    %v1405 = vrot.slane %v1388, %v1404
    %v1406 = vlaneseq
    %v1407 = vshrl.u32 %v1406, 7
    %v1408 = vsub.s32 4, %v1407
    %v1409 = vrot.slane %v1388, %v1408
    %v1410 = vlaneseq
    %v1411 = vshrl.u32 %v1410, 7
    %v1412 = vsub.s32 5, %v1411
    %v1413 = vrot.slane %v1388, %v1412
    %1420 = vmatprep.subr.mxu0 %v1196
    %1421 = vmatpush1.msra.mxu0 %v1195
    %1422 = vmatprep.subr.mxu0 %v1202
    %1423 = vmatpush1.msra.mxu0 %v1201
    %1424 = vmatprep.subr.mxu0 %v1208
    %1425 = vmatpush1.msra.mxu0 %v1207
    %1426 = vmatprep.subr.mxu0 %v1214
    %1427 = vmatpush1.msra.mxu0 %v1213
    %1428 = vmatprep.subr.mxu0 %v1220
    %1429 = vmatpush1.msra.mxu0 %v1219
    %1430 = vmatprep.subr.mxu0 %v1226
    %1431 = vmatpush1.msra.mxu0 %v1225
    %1432 = vmatprep.subr.mxu0 %v1232
    %1433 = vmatpush1.msra.mxu0 %v1231
    %1434 = vmatprep.subr.mxu0 %v1238
    %1435 = vmatpush1.msra.mxu0 %v1237
    %1436 = vmatprep.subr.mxu0 %v1244
    %1437 = vmatpush1.msra.mxu0 %v1243
    %1438 = vmatprep.subr.mxu0 %v1250
    %1439 = vmatpush1.msra.mxu0 %v1249
    %1440 = vmatprep.subr.mxu0 %v1256
    %1441 = vmatpush1.msra.mxu0 %v1255
    %1442 = vmatprep.subr.mxu0 %v1262
    %1443 = vmatpush1.msra.mxu0 %v1261
    %1444 = vmatprep.subr.mxu0 %v1268
    %1445 = vmatpush1.msra.mxu0 %v1267
    %1446 = vmatprep.subr.mxu0 %v1274
    %1447 = vmatpush1.msra.mxu0 %v1273
    %1448 = vmatprep.subr.mxu0 %v1280
    %1449 = vmatpush1.msra.mxu0 %v1279
    %1450 = vmatprep.subr.mxu0 %v1286
    %1451 = vmatpush1.msra.mxu0 %v1285
    %1452 = vmatprep.subr.mxu0 %v1292
    %1453 = vmatpush1.msra.mxu0 %v1291
    %1454 = vmatprep.subr.mxu0 %v1298
    %1455 = vmatpush1.msra.mxu0 %v1297
    %1456 = vmatprep.subr.mxu0 %v1304
    %1457 = vmatpush1.msra.mxu0 %v1303
    %1458 = vmatprep.subr.mxu0 %v1310
    %1459 = vmatpush1.msra.mxu0 %v1309
    %1460 = vmatprep.subr.mxu0 %v1316
    %1461 = vmatpush1.msra.mxu0 %v1315
    %1462 = vmatprep.subr.mxu0 %v1322
    %1463 = vmatpush1.msra.mxu0 %v1321
    %1464 = vmatprep.subr.mxu0 %v1328
    %1465 = vmatpush1.msra.mxu0 %v1327
    %1466 = vmatprep.subr.mxu0 %v1334
    %1467 = vmatpush1.msra.mxu0 %v1333
    %1468 = vmatprep.subr.mxu0 %v1340
    %1469 = vmatpush1.msra.mxu0 %v1339
    %1470 = vmatprep.subr.mxu0 %v1346
    %1471 = vmatpush1.msra.mxu0 %v1345
    %1472 = vmatprep.subr.mxu0 %v1352
    %1473 = vmatpush1.msra.mxu0 %v1351
    %1474 = vmatprep.subr.mxu0 %v1358
    %1475 = vmatpush1.msra.mxu0 %v1357
    %1476 = vmatprep.subr.mxu0 %v1364
    %1477 = vmatpush1.msra.mxu0 %v1363
    %1478 = vmatprep.subr.mxu0 %v1370
    %1479 = vmatpush1.msra.mxu0 %v1369
    %1480 = vmatprep.subr.mxu0 %v1376
    %1481 = vmatpush1.msra.mxu0 %v1375
    %1482 = vmatprep.subr.mxu0 %v1382
    %1483 = vmatpush1.msra.mxu0 %v1381
    %1484 = vmatprep.mubr.f32.mxu0 %v1180
    %1485 = vmatmul.mubr.f32.gmra.mrb[0].mxu0 %v1179
    %v1486 = vpop.f32.mrb[0].mxu0
    %v1487 = vadd.f32 %v1393, %v1486
    %v1488 = vpop.f32.mrb[0].mxu0
    %v1489 = vadd.f32 %v1397, %v1488
    %1490 = vmatprep.mubr.f32.mxu0 %v1182
    %1491 = vmatmul.mubr.f32.gmra.mrb[0].mxu0 %v1181
    %v1492 = vpop.f32.mrb[0].mxu0
    %v1493 = vadd.f32 %v1393, %v1492
    %v1494 = vpop.f32.mrb[0].mxu0
    %v1495 = vadd.f32 %v1397, %v1494
    %1496 = vmatprep.mubr.f32.mxu0 %v1184
    %1497 = vmatmul.mubr.f32.gmra.mrb[0].mxu0 %v1183
    %v1498 = vpop.f32.mrb[0].mxu0
    %v1499 = vadd.f32 %v1393, %v1498
    %v1500 = vpop.f32.mrb[0].mxu0
    %v1501 = vadd.f32 %v1397, %v1500
    %1502 = vmatprep.mubr.f32.mxu0 %v1186
    %1503 = vmatmul.mubr.f32.gmra.mrb[0].mxu0 %v1185
    %v1504 = vpop.f32.mrb[0].mxu0
    %v1505 = vadd.f32 %v1393, %v1504
    %v1506 = vpop.f32.mrb[0].mxu0
    %v1507 = vadd.f32 %v1397, %v1506
    %1508 = vmatprep.mubr.f32.mxu0 %v1188
    %1509 = vmatmul.mubr.f32.gmra.mrb[0].mxu0 %v1187
    %v1510 = vpop.f32.mrb[0].mxu0
    %v1511 = vadd.f32 %v1393, %v1510
    %v1512 = vpop.f32.mrb[0].mxu0
    %v1513 = vadd.f32 %v1397, %v1512
    %1514 = vmatprep.mubr.f32.mxu0 %v1190
    %1515 = vmatmul.mubr.f32.gmra.mrb[0].mxu0 %v1189
    %v1516 = vpop.f32.mrb[0].mxu0
    %v1517 = vadd.f32 %v1393, %v1516
    %v1518 = vpop.f32.mrb[0].mxu0
    %v1519 = vadd.f32 %v1397, %v1518
    %1520 = vmatprep.mubr.f32.mxu0 %v1192
    %1521 = vmatmul.mubr.f32.gmra.mrb[0].mxu0 %v1191
    %v1522 = vpop.f32.mrb[0].mxu0
    %v1523 = vadd.f32 %v1393, %v1522
    %v1524 = vpop.f32.mrb[0].mxu0
    %v1525 = vadd.f32 %v1397, %v1524
    %1526 = vmatprep.mubr.f32.mxu0 %v1194
    %1527 = vmatmul.mubr.f32.gmra.mrb[0].mxu0 %v1193
    %v1528 = vpop.f32.mrb[0].mxu0
    %v1529 = vadd.f32 %v1393, %v1528
    %v1530 = vpop.f32.mrb[0].mxu0
    %v1531 = vadd.f32 %v1397, %v1530
    %1532 = vdwg.mxu0
    %1533 = vmatprep.subr.mxu0 %v1198
    %1534 = vmatpush1.msra.mxu0 %v1197
    %1535 = vmatprep.subr.mxu0 %v1204
    %1536 = vmatpush1.msra.mxu0 %v1203
    %1537 = vmatprep.subr.mxu0 %v1210
    %1538 = vmatpush1.msra.mxu0 %v1209
    %1539 = vmatprep.subr.mxu0 %v1216
    %1540 = vmatpush1.msra.mxu0 %v1215
    %1541 = vmatprep.subr.mxu0 %v1222
    %1542 = vmatpush1.msra.mxu0 %v1221
    %1543 = vmatprep.subr.mxu0 %v1228
    %1544 = vmatpush1.msra.mxu0 %v1227
    %1545 = vmatprep.subr.mxu0 %v1234
    %1546 = vmatpush1.msra.mxu0 %v1233
    %1547 = vmatprep.subr.mxu0 %v1240
    %1548 = vmatpush1.msra.mxu0 %v1239
    %1549 = vmatprep.subr.mxu0 %v1246
    %1550 = vmatpush1.msra.mxu0 %v1245
    %1551 = vmatprep.subr.mxu0 %v1252
    %1552 = vmatpush1.msra.mxu0 %v1251
    %1553 = vmatprep.subr.mxu0 %v1258
    %1554 = vmatpush1.msra.mxu0 %v1257
    %1555 = vmatprep.subr.mxu0 %v1264
    %1556 = vmatpush1.msra.mxu0 %v1263
    %1557 = vmatprep.subr.mxu0 %v1270
    %1558 = vmatpush1.msra.mxu0 %v1269
    %1559 = vmatprep.subr.mxu0 %v1276
    %1560 = vmatpush1.msra.mxu0 %v1275
    %1561 = vmatprep.subr.mxu0 %v1282
    %1562 = vmatpush1.msra.mxu0 %v1281
    %1563 = vmatprep.subr.mxu0 %v1288
    %1564 = vmatpush1.msra.mxu0 %v1287
    %1565 = vmatprep.subr.mxu0 %v1294
    %1566 = vmatpush1.msra.mxu0 %v1293
    %1567 = vmatprep.subr.mxu0 %v1300
    %1568 = vmatpush1.msra.mxu0 %v1299
    %1569 = vmatprep.subr.mxu0 %v1306
    %1570 = vmatpush1.msra.mxu0 %v1305
    %1571 = vmatprep.subr.mxu0 %v1312
    %1572 = vmatpush1.msra.mxu0 %v1311
    %1573 = vmatprep.subr.mxu0 %v1318
    %1574 = vmatpush1.msra.mxu0 %v1317
    %1575 = vmatprep.subr.mxu0 %v1324
    %1576 = vmatpush1.msra.mxu0 %v1323
    %1577 = vmatprep.subr.mxu0 %v1330
    %1578 = vmatpush1.msra.mxu0 %v1329
    %1579 = vmatprep.subr.mxu0 %v1336
    %1580 = vmatpush1.msra.mxu0 %v1335
    %1581 = vmatprep.subr.mxu0 %v1342
    %1582 = vmatpush1.msra.mxu0 %v1341
    %1583 = vmatprep.subr.mxu0 %v1348
    %1584 = vmatpush1.msra.mxu0 %v1347
    %1585 = vmatprep.subr.mxu0 %v1354
    %1586 = vmatpush1.msra.mxu0 %v1353
    %1587 = vmatprep.subr.mxu0 %v1360
    %1588 = vmatpush1.msra.mxu0 %v1359
    %1589 = vmatprep.subr.mxu0 %v1366
    %1590 = vmatpush1.msra.mxu0 %v1365
    %1591 = vmatprep.subr.mxu0 %v1372
    %1592 = vmatpush1.msra.mxu0 %v1371
    %1593 = vmatprep.subr.mxu0 %v1378
    %1594 = vmatpush1.msra.mxu0 %v1377
    %1595 = vmatprep.subr.mxu0 %v1384
    %1596 = vmatpush1.msra.mxu0 %v1383
    %1597 = vmatprep.mubr.f32.mxu0 %v1180
    %1598 = vmatmul.mubr.f32.gmra.mrb[0].mxu0 %v1179
    %v1599 = vpop.f32.mrb[0].mxu0
    %v1600 = vadd.f32 %v1401, %v1599
    %v1601 = vpop.f32.mrb[0].mxu0
    %v1602 = vadd.f32 %v1405, %v1601
    %1603 = vmatprep.mubr.f32.mxu0 %v1182
    %1604 = vmatmul.mubr.f32.gmra.mrb[0].mxu0 %v1181
    %v1605 = vpop.f32.mrb[0].mxu0
    %v1606 = vadd.f32 %v1401, %v1605
    %v1607 = vpop.f32.mrb[0].mxu0
    %v1608 = vadd.f32 %v1405, %v1607
    %1609 = vmatprep.mubr.f32.mxu0 %v1184
    %1610 = vmatmul.mubr.f32.gmra.mrb[0].mxu0 %v1183
    %v1611 = vpop.f32.mrb[0].mxu0
    %v1612 = vadd.f32 %v1401, %v1611
    %v1613 = vpop.f32.mrb[0].mxu0
    %v1614 = vadd.f32 %v1405, %v1613
    %1615 = vmatprep.mubr.f32.mxu0 %v1186
    %1616 = vmatmul.mubr.f32.gmra.mrb[0].mxu0 %v1185
    %v1617 = vpop.f32.mrb[0].mxu0
    %v1618 = vadd.f32 %v1401, %v1617
    %v1619 = vpop.f32.mrb[0].mxu0
    %v1620 = vadd.f32 %v1405, %v1619
    %1621 = vmatprep.mubr.f32.mxu0 %v1188
    %1622 = vmatmul.mubr.f32.gmra.mrb[0].mxu0 %v1187
    %v1623 = vpop.f32.mrb[0].mxu0
    %v1624 = vadd.f32 %v1401, %v1623
    %v1625 = vpop.f32.mrb[0].mxu0
    %v1626 = vadd.f32 %v1405, %v1625
    %1627 = vmatprep.mubr.f32.mxu0 %v1190
    %1628 = vmatmul.mubr.f32.gmra.mrb[0].mxu0 %v1189
    %v1629 = vpop.f32.mrb[0].mxu0
    %v1630 = vadd.f32 %v1401, %v1629
    %v1631 = vpop.f32.mrb[0].mxu0
    %v1632 = vadd.f32 %v1405, %v1631
    %1633 = vmatprep.mubr.f32.mxu0 %v1192
    %1634 = vmatmul.mubr.f32.gmra.mrb[0].mxu0 %v1191
    %v1635 = vpop.f32.mrb[0].mxu0
    %v1636 = vadd.f32 %v1401, %v1635
    %v1637 = vpop.f32.mrb[0].mxu0
    %v1638 = vadd.f32 %v1405, %v1637
    %1639 = vmatprep.mubr.f32.mxu0 %v1194
    %1640 = vmatmul.mubr.f32.gmra.mrb[0].mxu0 %v1193
    %v1641 = vpop.f32.mrb[0].mxu0
    %v1642 = vadd.f32 %v1401, %v1641
    %v1643 = vpop.f32.mrb[0].mxu0
    %v1644 = vadd.f32 %v1405, %v1643
    %1645 = vdwg.mxu0
    %1646 = vmatprep.subr.mxu0 %v1200
    %1647 = vmatpush1.msra.mxu0 %v1199
    %1648 = vmatprep.subr.mxu0 %v1206
    %1649 = vmatpush1.msra.mxu0 %v1205
    %1650 = vmatprep.subr.mxu0 %v1212
    %1651 = vmatpush1.msra.mxu0 %v1211
    %1652 = vmatprep.subr.mxu0 %v1218
    %1653 = vmatpush1.msra.mxu0 %v1217
    %1654 = vmatprep.subr.mxu0 %v1224
    %1655 = vmatpush1.msra.mxu0 %v1223
    %1656 = vmatprep.subr.mxu0 %v1230
    %1657 = vmatpush1.msra.mxu0 %v1229
    %1658 = vmatprep.subr.mxu0 %v1236
    %1659 = vmatpush1.msra.mxu0 %v1235
    %1660 = vmatprep.subr.mxu0 %v1242
    %1661 = vmatpush1.msra.mxu0 %v1241
    %1662 = vmatprep.subr.mxu0 %v1248
    %1663 = vmatpush1.msra.mxu0 %v1247
    %1664 = vmatprep.subr.mxu0 %v1254
    %1665 = vmatpush1.msra.mxu0 %v1253
    %1666 = vmatprep.subr.mxu0 %v1260
    %1667 = vmatpush1.msra.mxu0 %v1259
    %1668 = vmatprep.subr.mxu0 %v1266
    %1669 = vmatpush1.msra.mxu0 %v1265
    %1670 = vmatprep.subr.mxu0 %v1272
    %1671 = vmatpush1.msra.mxu0 %v1271
    %1672 = vmatprep.subr.mxu0 %v1278
    %1673 = vmatpush1.msra.mxu0 %v1277
    %1674 = vmatprep.subr.mxu0 %v1284
    %1675 = vmatpush1.msra.mxu0 %v1283
    %1676 = vmatprep.subr.mxu0 %v1290
    %1677 = vmatpush1.msra.mxu0 %v1289
    %1678 = vmatprep.subr.mxu0 %v1296
    %1679 = vmatpush1.msra.mxu0 %v1295
    %1680 = vmatprep.subr.mxu0 %v1302
    %1681 = vmatpush1.msra.mxu0 %v1301
    %1682 = vmatprep.subr.mxu0 %v1308
    %1683 = vmatpush1.msra.mxu0 %v1307
    %1684 = vmatprep.subr.mxu0 %v1314
    %1685 = vmatpush1.msra.mxu0 %v1313
    %1686 = vmatprep.subr.mxu0 %v1320
    %1687 = vmatpush1.msra.mxu0 %v1319
    %1688 = vmatprep.subr.mxu0 %v1326
    %1689 = vmatpush1.msra.mxu0 %v1325
    %1690 = vmatprep.subr.mxu0 %v1332
    %1691 = vmatpush1.msra.mxu0 %v1331
    %1692 = vmatprep.subr.mxu0 %v1338
    %1693 = vmatpush1.msra.mxu0 %v1337
    %1694 = vmatprep.subr.mxu0 %v1344
    %1695 = vmatpush1.msra.mxu0 %v1343
    %1696 = vmatprep.subr.mxu0 %v1350
    %1697 = vmatpush1.msra.mxu0 %v1349
    %1698 = vmatprep.subr.mxu0 %v1356
    %1699 = vmatpush1.msra.mxu0 %v1355
    %1700 = vmatprep.subr.mxu0 %v1362
    %1701 = vmatpush1.msra.mxu0 %v1361
    %1702 = vmatprep.subr.mxu0 %v1368
    %1703 = vmatpush1.msra.mxu0 %v1367
    %1704 = vmatprep.subr.mxu0 %v1374
    %1705 = vmatpush1.msra.mxu0 %v1373
    %1706 = vmatprep.subr.mxu0 %v1380
    %1707 = vmatpush1.msra.mxu0 %v1379
    %1708 = vmatprep.subr.mxu0 %v1386
    %1709 = vmatpush1.msra.mxu0 %v1385
    %1710 = vmatprep.mubr.f32.mxu0 %v1180
    %1711 = vmatmul.mubr.f32.gmra.mrb[0].mxu0 %v1179
    %v1712 = vpop.f32.mrb[0].mxu0
    %v1713 = vadd.f32 %v1409, %v1712
    %v1714 = vpop.f32.mrb[0].mxu0
    %v1715 = vadd.f32 %v1413, %v1714
    %1716 = vmatprep.mubr.f32.mxu0 %v1182
    %1717 = vmatmul.mubr.f32.gmra.mrb[0].mxu0 %v1181
    %v1718 = vpop.f32.mrb[0].mxu0
    %v1719 = vadd.f32 %v1409, %v1718
    %v1720 = vpop.f32.mrb[0].mxu0
    %v1721 = vadd.f32 %v1413, %v1720
    %1722 = vmatprep.mubr.f32.mxu0 %v1184
    %1723 = vmatmul.mubr.f32.gmra.mrb[0].mxu0 %v1183
    %v1724 = vpop.f32.mrb[0].mxu0
    %v1725 = vadd.f32 %v1409, %v1724
    %v1726 = vpop.f32.mrb[0].mxu0
    %v1727 = vadd.f32 %v1413, %v1726
    %1728 = vmatprep.mubr.f32.mxu0 %v1186
    %1729 = vmatmul.mubr.f32.gmra.mrb[0].mxu0 %v1185
    %v1730 = vpop.f32.mrb[0].mxu0
    %v1731 = vadd.f32 %v1409, %v1730
    %v1732 = vpop.f32.mrb[0].mxu0
    %v1733 = vadd.f32 %v1413, %v1732
    %1734 = vmatprep.mubr.f32.mxu0 %v1188
    %1735 = vmatmul.mubr.f32.gmra.mrb[0].mxu0 %v1187
    %v1736 = vpop.f32.mrb[0].mxu0
    %v1737 = vadd.f32 %v1409, %v1736
    %v1738 = vpop.f32.mrb[0].mxu0
    %v1739 = vadd.f32 %v1413, %v1738
    %1740 = vmatprep.mubr.f32.mxu0 %v1190
    %1741 = vmatmul.mubr.f32.gmra.mrb[0].mxu0 %v1189
    %v1742 = vpop.f32.mrb[0].mxu0
    %v1743 = vadd.f32 %v1409, %v1742
    %v1744 = vpop.f32.mrb[0].mxu0
    %v1745 = vadd.f32 %v1413, %v1744
    %1746 = vmatprep.mubr.f32.mxu0 %v1192
    %1747 = vmatmul.mubr.f32.gmra.mrb[0].mxu0 %v1191
    %v1748 = vpop.f32.mrb[0].mxu0
    %v1749 = vadd.f32 %v1409, %v1748
    %v1750 = vpop.f32.mrb[0].mxu0
    %v1751 = vadd.f32 %v1413, %v1750
    %1752 = vmatprep.mubr.f32.mxu0 %v1194
    %1753 = vmatmul.mubr.f32.gmra.mrb[0].mxu0 %v1193
    %v1754 = vpop.f32.mrb[0].mxu0
    %v1755 = vadd.f32 %v1409, %v1754
    %v1756 = vpop.f32.mrb[0].mxu0
    %v1757 = vadd.f32 %v1413, %v1756
    %1758 = vdwg.mxu0
    %1759 = vst [vmem:[#allocation3] sm:$0xff] %v1487
    %1760 = vst [vmem:[#allocation3 + $0x8] sm:$0xff] %v1489
    %1761 = vst [vmem:[#allocation3 + $0x10] sm:$0xff] %v1600
    %1762 = vst [vmem:[#allocation3 + $0x18] sm:$0xff] %v1602
    %1763 = vst [vmem:[#allocation3 + $0x20] sm:$0xff] %v1713
    %1764 = vst [vmem:[#allocation3 + $0x28] sm:$0xff] %v1715
    %1765 = vst [vmem:[#allocation3 + $0x30] sm:$0xff] %v1493
    %1766 = vst [vmem:[#allocation3 + $0x38] sm:$0xff] %v1495
    %1767 = vst [vmem:[#allocation3 + $0x40] sm:$0xff] %v1606
    %1768 = vst [vmem:[#allocation3 + $0x48] sm:$0xff] %v1608
    %1769 = vst [vmem:[#allocation3 + $0x50] sm:$0xff] %v1719
    %1770 = vst [vmem:[#allocation3 + $0x58] sm:$0xff] %v1721
    %1771 = vst [vmem:[#allocation3 + $0x60] sm:$0xff] %v1499
    %1772 = vst [vmem:[#allocation3 + $0x68] sm:$0xff] %v1501
    %1773 = vst [vmem:[#allocation3 + $0x70] sm:$0xff] %v1612
    %1774 = vst [vmem:[#allocation3 + $0x78] sm:$0xff] %v1614
    %1775 = vst [vmem:[#allocation3 + $0x80] sm:$0xff] %v1725
    %1776 = vst [vmem:[#allocation3 + $0x88] sm:$0xff] %v1727
    %1777 = vst [vmem:[#allocation3 + $0x90] sm:$0xff] %v1505
    %1778 = vst [vmem:[#allocation3 + $0x98] sm:$0xff] %v1507
    %1779 = vst [vmem:[#allocation3 + $0xa0] sm:$0xff] %v1618
    %1780 = vst [vmem:[#allocation3 + $0xa8] sm:$0xff] %v1620
    %1781 = vst [vmem:[#allocation3 + $0xb0] sm:$0xff] %v1731
    %1782 = vst [vmem:[#allocation3 + $0xb8] sm:$0xff] %v1733
    %1783 = vst [vmem:[#allocation3 + $0xc0] sm:$0xff] %v1511
    %1784 = vst [vmem:[#allocation3 + $0xc8] sm:$0xff] %v1513
    %1785 = vst [vmem:[#allocation3 + $0xd0] sm:$0xff] %v1624
    %1786 = vst [vmem:[#allocation3 + $0xd8] sm:$0xff] %v1626
    %1787 = vst [vmem:[#allocation3 + $0xe0] sm:$0xff] %v1737
    %1788 = vst [vmem:[#allocation3 + $0xe8] sm:$0xff] %v1739
    %1789 = vst [vmem:[#allocation3 + $0xf0] sm:$0xff] %v1517
    %1790 = vst [vmem:[#allocation3 + $0xf8] sm:$0xff] %v1519
    %1791 = vst [vmem:[#allocation3 + $0x100] sm:$0xff] %v1630
    %1792 = vst [vmem:[#allocation3 + $0x108] sm:$0xff] %v1632
    %1793 = vst [vmem:[#allocation3 + $0x110] sm:$0xff] %v1743
    %1794 = vst [vmem:[#allocation3 + $0x118] sm:$0xff] %v1745
    %1795 = vst [vmem:[#allocation3 + $0x120] sm:$0xff] %v1523
    %1796 = vst [vmem:[#allocation3 + $0x128] sm:$0xff] %v1525
    %1797 = vst [vmem:[#allocation3 + $0x130] sm:$0xff] %v1636
    %1798 = vst [vmem:[#allocation3 + $0x138] sm:$0xff] %v1638
    %1799 = vst [vmem:[#allocation3 + $0x140] sm:$0xff] %v1749
    %1800 = vst [vmem:[#allocation3 + $0x148] sm:$0xff] %v1751
    %1801 = vst [vmem:[#allocation3 + $0x150] sm:$0xff] %v1529
    %1802 = vst [vmem:[#allocation3 + $0x158] sm:$0xff] %v1531
    %1803 = vst [vmem:[#allocation3 + $0x160] sm:$0xff] %v1642
    %1804 = vst [vmem:[#allocation3 + $0x168] sm:$0xff] %v1644
    %1805 = vst [vmem:[#allocation3 + $0x170] sm:$0xff] %v1755
    %1806 = vst [vmem:[#allocation3 + $0x178] sm:$0xff] %v1757
    %1807 = vst [vmem:[#allocation4] sm:$0xff] 0.0
    %1808 = vst [vmem:[#allocation4 + $0x8] sm:$0xff] 0.0
    %s1809 = scalar_lea.vmem [#allocation16], 2
    %v1810 = vld [vmem:[%s1809] sm:$0x1]
    %v1812 = vlaneseq
    %v1813 = vshrl.u32 %v1812, 7
    %v1814 = vsub.s32 0, %v1813
    %v1815 = vrot.slane %v1810, %v1814
    %s1817 = scalar_lea.vmem [#allocation16], 3
    %v1818 = vld [vmem:[%s1817] sm:$0x1]
    %v1820 = vlaneseq
    %v1821 = vshrl.u32 %v1820, 7
    %v1822 = vsub.s32 0, %v1821
    %v1823 = vrot.slane %v1818, %v1822
    // While loop
    $region93: #{tpu_custom_call.1} parent=1 // loop_pre_header
      _
    $region94: #{tpu_custom_call.1} parent=1 // loop_header
      %s1826 = sphi 0, %s1828
      %p1827 = scmp.ge.s32.totalorder %s1826, %s174
    $region95: #{tpu_custom_call.1} parent=1 // loop_header_branch
      %1830 = sbr.rel (%p1827) target = $region99
    $region96: #{tpu_custom_call.1} parent=1 // loop_body
      %s1831 = ssub.s32 %s174, 1
      %s1832 = ssub.s32 %s1831, %s1826
      %v1833 = vld [vmem:[#allocation4] sm:$0xff]
      %s1834 = scalar_lea.vmem [#allocation4], 8
      %v1835 = vld [vmem:[%s1834] sm:$0xff]
      %s1836 = smul.u32 %s1826, 6
      %s1837 = smul.addr %s1836, 8
      %s1838 = scalar_lea.vmem [#allocation3], %s1837
      %v1839 = vld [vmem:[%s1838] sm:$0xff]
      %v1840 = vld [vmem:[%s1838 + $0x8] sm:$0xff]
      %v1841 = vld [vmem:[%s1838 + $0x10] sm:$0xff]
      %s1842 = smul.u32 %s1832, 6
      %s1843 = smul.addr %s1842, 8
      %s1844 = scalar_lea.vmem [#allocation3], %s1843
      %v1845 = vld [vmem:[%s1844 + $0x18] sm:$0xff]
      %v1846 = vld [vmem:[%s1844 + $0x20] sm:$0xff]
      %v1847 = vld [vmem:[%s1844 + $0x28] sm:$0xff]
      %s1848 = scalar_lea.vmem [#allocation13], 768
      %v1849 = vld [vmem:[%s1848] sm:$0xff]
      %v1850 = vld [vmem:[%s1848 + $0x8] sm:$0xff]
      %v1851 = vld [vmem:[%s1848 + $0x10] sm:$0xff]
      %v1852 = vld [vmem:[%s1848 + $0x18] sm:$0xff]
      %v1853 = vld [vmem:[%s1848 + $0x20] sm:$0xff]
      %v1854 = vld [vmem:[%s1848 + $0x28] sm:$0xff]
      %v1855 = vld [vmem:[%s1848 + $0x30] sm:$0xff]
      %v1856 = vld [vmem:[%s1848 + $0x38] sm:$0xff]
      %v1857 = vld [vmem:[%s1848 + $0x40] sm:$0xff]
      %v1858 = vld [vmem:[%s1848 + $0x48] sm:$0xff]
      %v1859 = vld [vmem:[%s1848 + $0x50] sm:$0xff]
      %v1860 = vld [vmem:[%s1848 + $0x58] sm:$0xff]
      %v1861 = vld [vmem:[%s1848 + $0x60] sm:$0xff]
      %v1862 = vld [vmem:[%s1848 + $0x68] sm:$0xff]
      %v1863 = vld [vmem:[%s1848 + $0x70] sm:$0xff]
      %v1864 = vld [vmem:[%s1848 + $0x78] sm:$0xff]
      %v1865 = vld [vmem:[%s1848 + $0x80] sm:$0xff]
      %v1866 = vld [vmem:[%s1848 + $0x88] sm:$0xff]
      %v1867 = vld [vmem:[%s1848 + $0x90] sm:$0xff]
      %v1868 = vld [vmem:[%s1848 + $0x98] sm:$0xff]
      %v1869 = vld [vmem:[%s1848 + $0xa0] sm:$0xff]
      %v1870 = vld [vmem:[%s1848 + $0xa8] sm:$0xff]
      %v1871 = vld [vmem:[%s1848 + $0xb0] sm:$0xff]
      %v1872 = vld [vmem:[%s1848 + $0xb8] sm:$0xff]
      %v1873 = vld [vmem:[%s1848 + $0xc0] sm:$0xff]
      %v1874 = vld [vmem:[%s1848 + $0xc8] sm:$0xff]
      %v1875 = vld [vmem:[%s1848 + $0xd0] sm:$0xff]
      %v1876 = vld [vmem:[%s1848 + $0xd8] sm:$0xff]
      %v1877 = vld [vmem:[%s1848 + $0xe0] sm:$0xff]
      %v1878 = vld [vmem:[%s1848 + $0xe8] sm:$0xff]
      %v1879 = vld [vmem:[%s1848 + $0xf0] sm:$0xff]
      %v1880 = vld [vmem:[%s1848 + $0xf8] sm:$0xff]
      %v1881 = vld [vmem:[%s1848 + $0x100] sm:$0xff]
      %v1882 = vld [vmem:[%s1848 + $0x108] sm:$0xff]
      %v1883 = vld [vmem:[%s1848 + $0x110] sm:$0xff]
      %v1884 = vld [vmem:[%s1848 + $0x118] sm:$0xff]
      %v1885 = vld [vmem:[%s1848 + $0x120] sm:$0xff]
      %v1886 = vld [vmem:[%s1848 + $0x128] sm:$0xff]
      %v1887 = vld [vmem:[%s1848 + $0x130] sm:$0xff]
      %v1888 = vld [vmem:[%s1848 + $0x138] sm:$0xff]
      %v1889 = vld [vmem:[%s1848 + $0x140] sm:$0xff]
      %v1890 = vld [vmem:[%s1848 + $0x148] sm:$0xff]
      %v1891 = vld [vmem:[%s1848 + $0x150] sm:$0xff]
      %v1892 = vld [vmem:[%s1848 + $0x158] sm:$0xff]
      %v1893 = vld [vmem:[%s1848 + $0x160] sm:$0xff]
      %v1894 = vld [vmem:[%s1848 + $0x168] sm:$0xff]
      %v1895 = vld [vmem:[%s1848 + $0x170] sm:$0xff]
      %v1896 = vld [vmem:[%s1848 + $0x178] sm:$0xff]
      %1897 = vmatprep.subr.mxu0 %v1850
      %1898 = vmatpush1.msra.mxu0 %v1849
      %1899 = vmatprep.subr.mxu0 %v1853
      %1900 = vmatpush1.msra.mxu0 %v1852
      %1901 = vmatprep.subr.mxu0 %v1856
      %1902 = vmatpush1.msra.mxu0 %v1855
      %1903 = vmatprep.subr.mxu0 %v1859
      %1904 = vmatpush1.msra.mxu0 %v1858
      %1905 = vmatprep.subr.mxu0 %v1862
      %1906 = vmatpush1.msra.mxu0 %v1861
      %1907 = vmatprep.subr.mxu0 %v1865
      %1908 = vmatpush1.msra.mxu0 %v1864
      %1909 = vmatprep.subr.mxu0 %v1868
      %1910 = vmatpush1.msra.mxu0 %v1867
      %1911 = vmatprep.subr.mxu0 %v1871
      %1912 = vmatpush1.msra.mxu0 %v1870
      %1913 = vmatprep.subr.mxu0 %v1874
      %1914 = vmatpush1.msra.mxu0 %v1873
      %1915 = vmatprep.subr.mxu0 %v1877
      %1916 = vmatpush1.msra.mxu0 %v1876
      %1917 = vmatprep.subr.mxu0 %v1880
      %1918 = vmatpush1.msra.mxu0 %v1879
      %1919 = vmatprep.subr.mxu0 %v1883
      %1920 = vmatpush1.msra.mxu0 %v1882
      %1921 = vmatprep.subr.mxu0 %v1886
      %1922 = vmatpush1.msra.mxu0 %v1885
      %1923 = vmatprep.subr.mxu0 %v1889
      %1924 = vmatpush1.msra.mxu0 %v1888
      %1925 = vmatprep.subr.mxu0 %v1892
      %1926 = vmatpush1.msra.mxu0 %v1891
      %1927 = vmatprep.subr.mxu0 %v1895
      %1928 = vmatpush1.msra.mxu0 %v1894
      %1929 = vmatprep.subr.mxu0 0.0
      %1930 = vmatpush1.msra.mxu0 0.0
      %1931 = vmatprep.subr.mxu0 0.0
      %1932 = vmatpush1.msra.mxu0 0.0
      %1933 = vmatprep.subr.mxu0 0.0
      %1934 = vmatpush1.msra.mxu0 0.0
      %1935 = vmatprep.subr.mxu0 0.0
      %1936 = vmatpush1.msra.mxu0 0.0
      %1937 = vmatprep.subr.mxu0 0.0
      %1938 = vmatpush1.msra.mxu0 0.0
      %1939 = vmatprep.subr.mxu0 0.0
      %1940 = vmatpush1.msra.mxu0 0.0
      %1941 = vmatprep.subr.mxu0 0.0
      %1942 = vmatpush1.msra.mxu0 0.0
      %1943 = vmatprep.subr.mxu0 0.0
      %1944 = vmatpush1.msra.mxu0 0.0
      %1945 = vmatprep.subr.mxu0 0.0
      %1946 = vmatpush1.msra.mxu0 0.0
      %1947 = vmatprep.subr.mxu0 0.0
      %1948 = vmatpush1.msra.mxu0 0.0
      %1949 = vmatprep.subr.mxu0 0.0
      %1950 = vmatpush1.msra.mxu0 0.0
      %1951 = vmatprep.subr.mxu0 0.0
      %1952 = vmatpush1.msra.mxu0 0.0
      %1953 = vmatprep.subr.mxu0 0.0
      %1954 = vmatpush1.msra.mxu0 0.0
      %1955 = vmatprep.subr.mxu0 0.0
      %1956 = vmatpush1.msra.mxu0 0.0
      %1957 = vmatprep.subr.mxu0 0.0
      %1958 = vmatpush1.msra.mxu0 0.0
      %1959 = vmatprep.subr.mxu0 0.0
      %1960 = vmatpush1.msra.mxu0 0.0
      %1961 = vmatprep.mubr.f32.mxu0 0.0
      %1962 = vmatmul.mubr.f32.gmra.mrb[0].mxu0 %v1833
      %v1963 = vpop.f32.mrb[0].mxu0
      %v1964 = vadd.f32 0.0, %v1963
      %v1965 = vpop.f32.mrb[0].mxu0
      %v1966 = vadd.f32 0.0, %v1965
      %1967 = vdwg.mxu0
      %1968 = vmatprep.subr.mxu0 0.0
      %1969 = vmatpush1.msra.mxu0 %v1851
      %1970 = vmatprep.subr.mxu0 0.0
      %1971 = vmatpush1.msra.mxu0 %v1854
      %1972 = vmatprep.subr.mxu0 0.0
      %1973 = vmatpush1.msra.mxu0 %v1857
      %1974 = vmatprep.subr.mxu0 0.0
      %1975 = vmatpush1.msra.mxu0 %v1860
      %1976 = vmatprep.subr.mxu0 0.0
      %1977 = vmatpush1.msra.mxu0 %v1863
      %1978 = vmatprep.subr.mxu0 0.0
      %1979 = vmatpush1.msra.mxu0 %v1866
      %1980 = vmatprep.subr.mxu0 0.0
      %1981 = vmatpush1.msra.mxu0 %v1869
      %1982 = vmatprep.subr.mxu0 0.0
      %1983 = vmatpush1.msra.mxu0 %v1872
      %1984 = vmatprep.subr.mxu0 0.0
      %1985 = vmatpush1.msra.mxu0 %v1875
      %1986 = vmatprep.subr.mxu0 0.0
      %1987 = vmatpush1.msra.mxu0 %v1878
      %1988 = vmatprep.subr.mxu0 0.0
      %1989 = vmatpush1.msra.mxu0 %v1881
      %1990 = vmatprep.subr.mxu0 0.0
      %1991 = vmatpush1.msra.mxu0 %v1884
      %1992 = vmatprep.subr.mxu0 0.0
      %1993 = vmatpush1.msra.mxu0 %v1887
      %1994 = vmatprep.subr.mxu0 0.0
      %1995 = vmatpush1.msra.mxu0 %v1890
      %1996 = vmatprep.subr.mxu0 0.0
      %1997 = vmatpush1.msra.mxu0 %v1893
      %1998 = vmatprep.subr.mxu0 0.0
      %1999 = vmatpush1.msra.mxu0 %v1896
      %2000 = vmatprep.subr.mxu0 0.0
      %2001 = vmatpush1.msra.mxu0 0.0
      %2002 = vmatprep.subr.mxu0 0.0
      %2003 = vmatpush1.msra.mxu0 0.0
      %2004 = vmatprep.subr.mxu0 0.0
      %2005 = vmatpush1.msra.mxu0 0.0
      %2006 = vmatprep.subr.mxu0 0.0
      %2007 = vmatpush1.msra.mxu0 0.0
      %2008 = vmatprep.subr.mxu0 0.0
      %2009 = vmatpush1.msra.mxu0 0.0
      %2010 = vmatprep.subr.mxu0 0.0
      %2011 = vmatpush1.msra.mxu0 0.0
      %2012 = vmatprep.subr.mxu0 0.0
      %2013 = vmatpush1.msra.mxu0 0.0
      %2014 = vmatprep.subr.mxu0 0.0
      %2015 = vmatpush1.msra.mxu0 0.0
      %2016 = vmatprep.subr.mxu0 0.0
      %2017 = vmatpush1.msra.mxu0 0.0
      %2018 = vmatprep.subr.mxu0 0.0
      %2019 = vmatpush1.msra.mxu0 0.0
      %2020 = vmatprep.subr.mxu0 0.0
      %2021 = vmatpush1.msra.mxu0 0.0
      %2022 = vmatprep.subr.mxu0 0.0
      %2023 = vmatpush1.msra.mxu0 0.0
      %2024 = vmatprep.subr.mxu0 0.0
      %2025 = vmatpush1.msra.mxu0 0.0
      %2026 = vmatprep.subr.mxu0 0.0
      %2027 = vmatpush1.msra.mxu0 0.0
      %2028 = vmatprep.subr.mxu0 0.0
      %2029 = vmatpush1.msra.mxu0 0.0
      %2030 = vmatprep.subr.mxu0 0.0
      %2031 = vmatpush1.msra.mxu0 0.0
      %2032 = vmatprep.mubr.f32.mxu0 0.0
      %2033 = vmatmul.mubr.f32.gmra.mrb[0].mxu0 %v1833
      %v2034 = vpop.f32.mrb[0].mxu0
      %v2035 = vadd.f32 0.0, %v2034
      %v2036 = vpop.f32.mrb[0].mxu0
      %2037 = vdwg.mxu0
      %s2038 = scalar_lea.vmem [#allocation13], 1152
      %v2039 = vld [vmem:[%s2038] sm:$0xff]
      %v2040 = vld [vmem:[%s2038 + $0x8] sm:$0xff]
      %v2041 = vld [vmem:[%s2038 + $0x10] sm:$0xff]
      %v2042 = vld [vmem:[%s2038 + $0x18] sm:$0xff]
      %v2043 = vld [vmem:[%s2038 + $0x20] sm:$0xff]
      %v2044 = vld [vmem:[%s2038 + $0x28] sm:$0xff]
      %v2045 = vld [vmem:[%s2038 + $0x30] sm:$0xff]
      %v2046 = vld [vmem:[%s2038 + $0x38] sm:$0xff]
      %v2047 = vld [vmem:[%s2038 + $0x40] sm:$0xff]
      %v2048 = vld [vmem:[%s2038 + $0x48] sm:$0xff]
      %v2049 = vld [vmem:[%s2038 + $0x50] sm:$0xff]
      %v2050 = vld [vmem:[%s2038 + $0x58] sm:$0xff]
      %v2051 = vld [vmem:[%s2038 + $0x60] sm:$0xff]
      %v2052 = vld [vmem:[%s2038 + $0x68] sm:$0xff]
      %v2053 = vld [vmem:[%s2038 + $0x70] sm:$0xff]
      %v2054 = vld [vmem:[%s2038 + $0x78] sm:$0xff]
      %v2055 = vld [vmem:[%s2038 + $0x80] sm:$0xff]
      %v2056 = vld [vmem:[%s2038 + $0x88] sm:$0xff]
      %v2057 = vld [vmem:[%s2038 + $0x90] sm:$0xff]
      %v2058 = vld [vmem:[%s2038 + $0x98] sm:$0xff]
      %v2059 = vld [vmem:[%s2038 + $0xa0] sm:$0xff]
      %v2060 = vld [vmem:[%s2038 + $0xa8] sm:$0xff]
      %v2061 = vld [vmem:[%s2038 + $0xb0] sm:$0xff]
      %v2062 = vld [vmem:[%s2038 + $0xb8] sm:$0xff]
      %v2063 = vld [vmem:[%s2038 + $0xc0] sm:$0xff]
      %v2064 = vld [vmem:[%s2038 + $0xc8] sm:$0xff]
      %v2065 = vld [vmem:[%s2038 + $0xd0] sm:$0xff]
      %v2066 = vld [vmem:[%s2038 + $0xd8] sm:$0xff]
      %v2067 = vld [vmem:[%s2038 + $0xe0] sm:$0xff]
      %v2068 = vld [vmem:[%s2038 + $0xe8] sm:$0xff]
      %v2069 = vld [vmem:[%s2038 + $0xf0] sm:$0xff]
      %v2070 = vld [vmem:[%s2038 + $0xf8] sm:$0xff]
      %v2071 = vld [vmem:[%s2038 + $0x100] sm:$0xff]
      %v2072 = vld [vmem:[%s2038 + $0x108] sm:$0xff]
      %v2073 = vld [vmem:[%s2038 + $0x110] sm:$0xff]
      %v2074 = vld [vmem:[%s2038 + $0x118] sm:$0xff]
      %v2075 = vld [vmem:[%s2038 + $0x120] sm:$0xff]
      %v2076 = vld [vmem:[%s2038 + $0x128] sm:$0xff]
      %v2077 = vld [vmem:[%s2038 + $0x130] sm:$0xff]
      %v2078 = vld [vmem:[%s2038 + $0x138] sm:$0xff]
      %v2079 = vld [vmem:[%s2038 + $0x140] sm:$0xff]
      %v2080 = vld [vmem:[%s2038 + $0x148] sm:$0xff]
      %v2081 = vld [vmem:[%s2038 + $0x150] sm:$0xff]
      %v2082 = vld [vmem:[%s2038 + $0x158] sm:$0xff]
      %v2083 = vld [vmem:[%s2038 + $0x160] sm:$0xff]
      %v2084 = vld [vmem:[%s2038 + $0x168] sm:$0xff]
      %v2085 = vld [vmem:[%s2038 + $0x170] sm:$0xff]
      %v2086 = vld [vmem:[%s2038 + $0x178] sm:$0xff]
      %2087 = vmatprep.subr.mxu0 %v2040
      %2088 = vmatpush1.msra.mxu0 %v2039
      %2089 = vmatprep.subr.mxu0 %v2043
      %2090 = vmatpush1.msra.mxu0 %v2042
      %2091 = vmatprep.subr.mxu0 %v2046
      %2092 = vmatpush1.msra.mxu0 %v2045
      %2093 = vmatprep.subr.mxu0 %v2049
      %2094 = vmatpush1.msra.mxu0 %v2048
      %2095 = vmatprep.subr.mxu0 %v2052
      %2096 = vmatpush1.msra.mxu0 %v2051
      %2097 = vmatprep.subr.mxu0 %v2055
      %2098 = vmatpush1.msra.mxu0 %v2054
      %2099 = vmatprep.subr.mxu0 %v2058
      %2100 = vmatpush1.msra.mxu0 %v2057
      %2101 = vmatprep.subr.mxu0 %v2061
      %2102 = vmatpush1.msra.mxu0 %v2060
      %2103 = vmatprep.subr.mxu0 %v2064
      %2104 = vmatpush1.msra.mxu0 %v2063
      %2105 = vmatprep.subr.mxu0 %v2067
      %2106 = vmatpush1.msra.mxu0 %v2066
      %2107 = vmatprep.subr.mxu0 %v2070
      %2108 = vmatpush1.msra.mxu0 %v2069
      %2109 = vmatprep.subr.mxu0 %v2073
      %2110 = vmatpush1.msra.mxu0 %v2072
      %2111 = vmatprep.subr.mxu0 %v2076
      %2112 = vmatpush1.msra.mxu0 %v2075
      %2113 = vmatprep.subr.mxu0 %v2079
      %2114 = vmatpush1.msra.mxu0 %v2078
      %2115 = vmatprep.subr.mxu0 %v2082
      %2116 = vmatpush1.msra.mxu0 %v2081
      %2117 = vmatprep.subr.mxu0 %v2085
      %2118 = vmatpush1.msra.mxu0 %v2084
      %2119 = vmatprep.subr.mxu0 0.0
      %2120 = vmatpush1.msra.mxu0 0.0
      %2121 = vmatprep.subr.mxu0 0.0
      %2122 = vmatpush1.msra.mxu0 0.0
      %2123 = vmatprep.subr.mxu0 0.0
      %2124 = vmatpush1.msra.mxu0 0.0
      %2125 = vmatprep.subr.mxu0 0.0
      %2126 = vmatpush1.msra.mxu0 0.0
      %2127 = vmatprep.subr.mxu0 0.0
      %2128 = vmatpush1.msra.mxu0 0.0
      %2129 = vmatprep.subr.mxu0 0.0
      %2130 = vmatpush1.msra.mxu0 0.0
      %2131 = vmatprep.subr.mxu0 0.0
      %2132 = vmatpush1.msra.mxu0 0.0
      %2133 = vmatprep.subr.mxu0 0.0
      %2134 = vmatpush1.msra.mxu0 0.0
      %2135 = vmatprep.subr.mxu0 0.0
      %2136 = vmatpush1.msra.mxu0 0.0
      %2137 = vmatprep.subr.mxu0 0.0
      %2138 = vmatpush1.msra.mxu0 0.0
      %2139 = vmatprep.subr.mxu0 0.0
      %2140 = vmatpush1.msra.mxu0 0.0
      %2141 = vmatprep.subr.mxu0 0.0
      %2142 = vmatpush1.msra.mxu0 0.0
      %2143 = vmatprep.subr.mxu0 0.0
      %2144 = vmatpush1.msra.mxu0 0.0
      %2145 = vmatprep.subr.mxu0 0.0
      %2146 = vmatpush1.msra.mxu0 0.0
      %2147 = vmatprep.subr.mxu0 0.0
      %2148 = vmatpush1.msra.mxu0 0.0
      %2149 = vmatprep.subr.mxu0 0.0
      %2150 = vmatpush1.msra.mxu0 0.0
      %2151 = vmatprep.mubr.f32.mxu0 0.0
      %2152 = vmatmul.mubr.f32.gmra.mrb[0].mxu0 %v1835
      %v2153 = vpop.f32.mrb[0].mxu0
      %v2154 = vadd.f32 0.0, %v2153
      %v2155 = vpop.f32.mrb[0].mxu0
      %v2156 = vadd.f32 0.0, %v2155
      %2157 = vdwg.mxu0
      %2158 = vmatprep.subr.mxu0 0.0
      %2159 = vmatpush1.msra.mxu0 %v2041
      %2160 = vmatprep.subr.mxu0 0.0
      %2161 = vmatpush1.msra.mxu0 %v2044
      %2162 = vmatprep.subr.mxu0 0.0
      %2163 = vmatpush1.msra.mxu0 %v2047
      %2164 = vmatprep.subr.mxu0 0.0
      %2165 = vmatpush1.msra.mxu0 %v2050
      %2166 = vmatprep.subr.mxu0 0.0
      %2167 = vmatpush1.msra.mxu0 %v2053
      %2168 = vmatprep.subr.mxu0 0.0
      %2169 = vmatpush1.msra.mxu0 %v2056
      %2170 = vmatprep.subr.mxu0 0.0
      %2171 = vmatpush1.msra.mxu0 %v2059
      %2172 = vmatprep.subr.mxu0 0.0
      %2173 = vmatpush1.msra.mxu0 %v2062
      %2174 = vmatprep.subr.mxu0 0.0
      %2175 = vmatpush1.msra.mxu0 %v2065
      %2176 = vmatprep.subr.mxu0 0.0
      %2177 = vmatpush1.msra.mxu0 %v2068
      %2178 = vmatprep.subr.mxu0 0.0
      %2179 = vmatpush1.msra.mxu0 %v2071
      %2180 = vmatprep.subr.mxu0 0.0
      %2181 = vmatpush1.msra.mxu0 %v2074
      %2182 = vmatprep.subr.mxu0 0.0
      %2183 = vmatpush1.msra.mxu0 %v2077
      %2184 = vmatprep.subr.mxu0 0.0
      %2185 = vmatpush1.msra.mxu0 %v2080
      %2186 = vmatprep.subr.mxu0 0.0
      %2187 = vmatpush1.msra.mxu0 %v2083
      %2188 = vmatprep.subr.mxu0 0.0
      %2189 = vmatpush1.msra.mxu0 %v2086
      %2190 = vmatprep.subr.mxu0 0.0
      %2191 = vmatpush1.msra.mxu0 0.0
      %2192 = vmatprep.subr.mxu0 0.0
      %2193 = vmatpush1.msra.mxu0 0.0
      %2194 = vmatprep.subr.mxu0 0.0
      %2195 = vmatpush1.msra.mxu0 0.0
      %2196 = vmatprep.subr.mxu0 0.0
      %2197 = vmatpush1.msra.mxu0 0.0
      %2198 = vmatprep.subr.mxu0 0.0
      %2199 = vmatpush1.msra.mxu0 0.0
      %2200 = vmatprep.subr.mxu0 0.0
      %2201 = vmatpush1.msra.mxu0 0.0
      %2202 = vmatprep.subr.mxu0 0.0
      %2203 = vmatpush1.msra.mxu0 0.0
      %2204 = vmatprep.subr.mxu0 0.0
      %2205 = vmatpush1.msra.mxu0 0.0
      %2206 = vmatprep.subr.mxu0 0.0
      %2207 = vmatpush1.msra.mxu0 0.0
      %2208 = vmatprep.subr.mxu0 0.0
      %2209 = vmatpush1.msra.mxu0 0.0
      %2210 = vmatprep.subr.mxu0 0.0
      %2211 = vmatpush1.msra.mxu0 0.0
      %2212 = vmatprep.subr.mxu0 0.0
      %2213 = vmatpush1.msra.mxu0 0.0
      %2214 = vmatprep.subr.mxu0 0.0
      %2215 = vmatpush1.msra.mxu0 0.0
      %2216 = vmatprep.subr.mxu0 0.0
      %2217 = vmatpush1.msra.mxu0 0.0
      %2218 = vmatprep.subr.mxu0 0.0
      %2219 = vmatpush1.msra.mxu0 0.0
      %2220 = vmatprep.subr.mxu0 0.0
      %2221 = vmatpush1.msra.mxu0 0.0
      %2222 = vmatprep.mubr.f32.mxu0 0.0
      %2223 = vmatmul.mubr.f32.gmra.mrb[0].mxu0 %v1835
      %v2224 = vpop.f32.mrb[0].mxu0
      %v2225 = vadd.f32 0.0, %v2224
      %v2226 = vpop.f32.mrb[0].mxu0
      %2227 = vdwg.mxu0
      %v2228 = vadd.f32 %v1839, %v1964
      %v2229 = vadd.f32 %v1840, %v1966
      %v2230 = vmul.f32 %v2228, 0.5
      %v2231 = vmul.f32 %v2229, 0.5
      %v2232 = vtanh.pop %v2230
      %v2233 = vtanh.pop %v2231
      %v2234 = vadd.f32 %v2232, 1.0
      %v2235 = vadd.f32 %v2233, 1.0
      %v2236 = vmul.f32 %v2234, 0.5
      %v2237 = vmul.f32 %v2235, 0.5
      %v2238 = vadd.f32 %v2035, %v1815
      %v2239 = vmul.f32 %v2236, %v2238
      %v2240 = vadd.f32 %v1841, %v2239
      %v2241 = vtanh.pop %v2240
      %v2242 = vsub.f32 1.0, %v2237
      %v2243 = vmul.f32 %v2242, %v2241
      %v2244 = vmul.f32 %v2237, %v1833
      %v2245 = vadd.f32 %v2243, %v2244
      %v2246 = vadd.f32 %v1845, %v2154
      %v2247 = vadd.f32 %v1846, %v2156
      %v2248 = vmul.f32 %v2246, 0.5
      %v2249 = vmul.f32 %v2247, 0.5
      %v2250 = vtanh.pop %v2248
      %v2251 = vtanh.pop %v2249
      %v2252 = vadd.f32 %v2250, 1.0
      %v2253 = vadd.f32 %v2251, 1.0
      %v2254 = vmul.f32 %v2252, 0.5
      %v2255 = vmul.f32 %v2253, 0.5
      %v2256 = vadd.f32 %v2225, %v1823
      %v2257 = vmul.f32 %v2254, %v2256
      %v2258 = vadd.f32 %v1847, %v2257
      %v2259 = vtanh.pop %v2258
      %v2260 = vsub.f32 1.0, %v2255
      %v2261 = vmul.f32 %v2260, %v2259
      %v2262 = vmul.f32 %v2255, %v1835
      %v2263 = vadd.f32 %v2261, %v2262
      %v2264 = vstv %s1826
      %vm2265 = vcmp.lt.s32.totalorder %v2264, %v173
      %v2266 = vsel %vm2265, 1, 0
      %2267 = vset.pattern.permute.xlu0 0
      %2268 = vperm.xlu0 %2267, %v2266
      %v2269 = vpop.permute.xlu0 %2268
      %vm2270 = vcmp.eq.s32.totalorder %v2269, 1
      %v2271 = vsel %vm2270, %v2245, %v1833
      %v2272 = vstv %s1832
      %vm2273 = vcmp.lt.s32.totalorder %v2272, %v173
      %v2274 = vsel %vm2273, 1, 0
      %2275 = vset.pattern.permute.xlu0 0
      %2276 = vperm.xlu0 %2275, %v2274
      %v2277 = vpop.permute.xlu0 %2276
      %vm2278 = vcmp.eq.s32.totalorder %v2277, 1
      %v2279 = vsel %vm2278, %v2263, %v1835
      %2280 = vst [vmem:[#allocation4] sm:$0xff] %v2271
      %2281 = vst [vmem:[%s1834] sm:$0xff] %v2279
      %s2282 = smul.u32 %s1826, 2
      %s2283 = smul.addr %s2282, 8
      %s2284 = scalar_lea.vmem [#allocation2], %s2283
      %2285 = vst [vmem:[%s2284] sm:$0xff] %v2271
      %s2286 = smul.u32 %s1832, 2
      %s2287 = smul.addr %s2286, 8
      %s2288 = scalar_lea.vmem [#allocation2], %s2287
      %2289 = vst [vmem:[%s2288 + $0x8] sm:$0xff] %v2279
    $region97: #{tpu_custom_call.1} parent=1 // loop_footer
      %s1828 = sadd.s32 %s1826, 1
    $region98: #{tpu_custom_call.1} parent=1 // loop_footer_branch
      %1825 = sbr.rel target = $region94
    $region99: #{tpu_custom_call.1} parent=1 // loop_exit
      _
    %v2290 = vld [vmem:[#allocation2] sm:$0xff]
    %v2291 = vld [vmem:[#allocation2 + $0x8] sm:$0xff]
    %v2292 = vld [vmem:[#allocation2 + $0x10] sm:$0xff]
    %v2293 = vld [vmem:[#allocation2 + $0x18] sm:$0xff]
    %v2294 = vld [vmem:[#allocation2 + $0x20] sm:$0xff]
    %v2295 = vld [vmem:[#allocation2 + $0x28] sm:$0xff]
    %v2296 = vld [vmem:[#allocation2 + $0x30] sm:$0xff]
    %v2297 = vld [vmem:[#allocation2 + $0x38] sm:$0xff]
    %v2298 = vld [vmem:[#allocation2 + $0x40] sm:$0xff]
    %v2299 = vld [vmem:[#allocation2 + $0x48] sm:$0xff]
    %v2300 = vld [vmem:[#allocation2 + $0x50] sm:$0xff]
    %v2301 = vld [vmem:[#allocation2 + $0x58] sm:$0xff]
    %v2302 = vld [vmem:[#allocation2 + $0x60] sm:$0xff]
    %v2303 = vld [vmem:[#allocation2 + $0x68] sm:$0xff]
    %v2304 = vld [vmem:[#allocation2 + $0x70] sm:$0xff]
    %v2305 = vld [vmem:[#allocation2 + $0x78] sm:$0xff]
    %s2306 = scalar_lea.vmem [#allocation12], 1536
    %v2307 = vld [vmem:[%s2306] sm:$0xff]
    %v2308 = vld [vmem:[%s2306 + $0x8] sm:$0xff]
    %v2309 = vld [vmem:[%s2306 + $0x10] sm:$0xff]
    %v2310 = vld [vmem:[%s2306 + $0x18] sm:$0xff]
    %v2311 = vld [vmem:[%s2306 + $0x20] sm:$0xff]
    %v2312 = vld [vmem:[%s2306 + $0x28] sm:$0xff]
    %v2313 = vld [vmem:[%s2306 + $0x30] sm:$0xff]
    %v2314 = vld [vmem:[%s2306 + $0x38] sm:$0xff]
    %v2315 = vld [vmem:[%s2306 + $0x40] sm:$0xff]
    %v2316 = vld [vmem:[%s2306 + $0x48] sm:$0xff]
    %v2317 = vld [vmem:[%s2306 + $0x50] sm:$0xff]
    %v2318 = vld [vmem:[%s2306 + $0x58] sm:$0xff]
    %v2319 = vld [vmem:[%s2306 + $0x60] sm:$0xff]
    %v2320 = vld [vmem:[%s2306 + $0x68] sm:$0xff]
    %v2321 = vld [vmem:[%s2306 + $0x70] sm:$0xff]
    %v2322 = vld [vmem:[%s2306 + $0x78] sm:$0xff]
    %v2323 = vld [vmem:[%s2306 + $0x80] sm:$0xff]
    %v2324 = vld [vmem:[%s2306 + $0x88] sm:$0xff]
    %v2325 = vld [vmem:[%s2306 + $0x90] sm:$0xff]
    %v2326 = vld [vmem:[%s2306 + $0x98] sm:$0xff]
    %v2327 = vld [vmem:[%s2306 + $0xa0] sm:$0xff]
    %v2328 = vld [vmem:[%s2306 + $0xa8] sm:$0xff]
    %v2329 = vld [vmem:[%s2306 + $0xb0] sm:$0xff]
    %v2330 = vld [vmem:[%s2306 + $0xb8] sm:$0xff]
    %v2331 = vld [vmem:[%s2306 + $0xc0] sm:$0xff]
    %v2332 = vld [vmem:[%s2306 + $0xc8] sm:$0xff]
    %v2333 = vld [vmem:[%s2306 + $0xd0] sm:$0xff]
    %v2334 = vld [vmem:[%s2306 + $0xd8] sm:$0xff]
    %v2335 = vld [vmem:[%s2306 + $0xe0] sm:$0xff]
    %v2336 = vld [vmem:[%s2306 + $0xe8] sm:$0xff]
    %v2337 = vld [vmem:[%s2306 + $0xf0] sm:$0xff]
    %v2338 = vld [vmem:[%s2306 + $0xf8] sm:$0xff]
    %v2339 = vld [vmem:[%s2306 + $0x100] sm:$0xff]
    %v2340 = vld [vmem:[%s2306 + $0x108] sm:$0xff]
    %v2341 = vld [vmem:[%s2306 + $0x110] sm:$0xff]
    %v2342 = vld [vmem:[%s2306 + $0x118] sm:$0xff]
    %v2343 = vld [vmem:[%s2306 + $0x120] sm:$0xff]
    %v2344 = vld [vmem:[%s2306 + $0x128] sm:$0xff]
    %v2345 = vld [vmem:[%s2306 + $0x130] sm:$0xff]
    %v2346 = vld [vmem:[%s2306 + $0x138] sm:$0xff]
    %v2347 = vld [vmem:[%s2306 + $0x140] sm:$0xff]
    %v2348 = vld [vmem:[%s2306 + $0x148] sm:$0xff]
    %v2349 = vld [vmem:[%s2306 + $0x150] sm:$0xff]
    %v2350 = vld [vmem:[%s2306 + $0x158] sm:$0xff]
    %v2351 = vld [vmem:[%s2306 + $0x160] sm:$0xff]
    %v2352 = vld [vmem:[%s2306 + $0x168] sm:$0xff]
    %v2353 = vld [vmem:[%s2306 + $0x170] sm:$0xff]
    %v2354 = vld [vmem:[%s2306 + $0x178] sm:$0xff]
    %v2355 = vld [vmem:[%s2306 + $0x180] sm:$0xff]
    %v2356 = vld [vmem:[%s2306 + $0x188] sm:$0xff]
    %v2357 = vld [vmem:[%s2306 + $0x190] sm:$0xff]
    %v2358 = vld [vmem:[%s2306 + $0x198] sm:$0xff]
    %v2359 = vld [vmem:[%s2306 + $0x1a0] sm:$0xff]
    %v2360 = vld [vmem:[%s2306 + $0x1a8] sm:$0xff]
    %v2361 = vld [vmem:[%s2306 + $0x1b0] sm:$0xff]
    %v2362 = vld [vmem:[%s2306 + $0x1b8] sm:$0xff]
    %v2363 = vld [vmem:[%s2306 + $0x1c0] sm:$0xff]
    %v2364 = vld [vmem:[%s2306 + $0x1c8] sm:$0xff]
    %v2365 = vld [vmem:[%s2306 + $0x1d0] sm:$0xff]
    %v2366 = vld [vmem:[%s2306 + $0x1d8] sm:$0xff]
    %v2367 = vld [vmem:[%s2306 + $0x1e0] sm:$0xff]
    %v2368 = vld [vmem:[%s2306 + $0x1e8] sm:$0xff]
    %v2369 = vld [vmem:[%s2306 + $0x1f0] sm:$0xff]
    %v2370 = vld [vmem:[%s2306 + $0x1f8] sm:$0xff]
    %v2371 = vld [vmem:[%s2306 + $0x200] sm:$0xff]
    %v2372 = vld [vmem:[%s2306 + $0x208] sm:$0xff]
    %v2373 = vld [vmem:[%s2306 + $0x210] sm:$0xff]
    %v2374 = vld [vmem:[%s2306 + $0x218] sm:$0xff]
    %v2375 = vld [vmem:[%s2306 + $0x220] sm:$0xff]
    %v2376 = vld [vmem:[%s2306 + $0x228] sm:$0xff]
    %v2377 = vld [vmem:[%s2306 + $0x230] sm:$0xff]
    %v2378 = vld [vmem:[%s2306 + $0x238] sm:$0xff]
    %v2379 = vld [vmem:[%s2306 + $0x240] sm:$0xff]
    %v2380 = vld [vmem:[%s2306 + $0x248] sm:$0xff]
    %v2381 = vld [vmem:[%s2306 + $0x250] sm:$0xff]
    %v2382 = vld [vmem:[%s2306 + $0x258] sm:$0xff]
    %v2383 = vld [vmem:[%s2306 + $0x260] sm:$0xff]
    %v2384 = vld [vmem:[%s2306 + $0x268] sm:$0xff]
    %v2385 = vld [vmem:[%s2306 + $0x270] sm:$0xff]
    %v2386 = vld [vmem:[%s2306 + $0x278] sm:$0xff]
    %v2387 = vld [vmem:[%s2306 + $0x280] sm:$0xff]
    %v2388 = vld [vmem:[%s2306 + $0x288] sm:$0xff]
    %v2389 = vld [vmem:[%s2306 + $0x290] sm:$0xff]
    %v2390 = vld [vmem:[%s2306 + $0x298] sm:$0xff]
    %v2391 = vld [vmem:[%s2306 + $0x2a0] sm:$0xff]
    %v2392 = vld [vmem:[%s2306 + $0x2a8] sm:$0xff]
    %v2393 = vld [vmem:[%s2306 + $0x2b0] sm:$0xff]
    %v2394 = vld [vmem:[%s2306 + $0x2b8] sm:$0xff]
    %v2395 = vld [vmem:[%s2306 + $0x2c0] sm:$0xff]
    %v2396 = vld [vmem:[%s2306 + $0x2c8] sm:$0xff]
    %v2397 = vld [vmem:[%s2306 + $0x2d0] sm:$0xff]
    %v2398 = vld [vmem:[%s2306 + $0x2d8] sm:$0xff]
    %v2399 = vld [vmem:[%s2306 + $0x2e0] sm:$0xff]
    %v2400 = vld [vmem:[%s2306 + $0x2e8] sm:$0xff]
    %v2401 = vld [vmem:[%s2306 + $0x2f0] sm:$0xff]
    %v2402 = vld [vmem:[%s2306 + $0x2f8] sm:$0xff]
    %v2403 = vld [vmem:[%s2306 + $0x300] sm:$0xff]
    %v2404 = vld [vmem:[%s2306 + $0x308] sm:$0xff]
    %v2405 = vld [vmem:[%s2306 + $0x310] sm:$0xff]
    %v2406 = vld [vmem:[%s2306 + $0x318] sm:$0xff]
    %v2407 = vld [vmem:[%s2306 + $0x320] sm:$0xff]
    %v2408 = vld [vmem:[%s2306 + $0x328] sm:$0xff]
    %v2409 = vld [vmem:[%s2306 + $0x330] sm:$0xff]
    %v2410 = vld [vmem:[%s2306 + $0x338] sm:$0xff]
    %v2411 = vld [vmem:[%s2306 + $0x340] sm:$0xff]
    %v2412 = vld [vmem:[%s2306 + $0x348] sm:$0xff]
    %v2413 = vld [vmem:[%s2306 + $0x350] sm:$0xff]
    %v2414 = vld [vmem:[%s2306 + $0x358] sm:$0xff]
    %v2415 = vld [vmem:[%s2306 + $0x360] sm:$0xff]
    %v2416 = vld [vmem:[%s2306 + $0x368] sm:$0xff]
    %v2417 = vld [vmem:[%s2306 + $0x370] sm:$0xff]
    %v2418 = vld [vmem:[%s2306 + $0x378] sm:$0xff]
    %v2419 = vld [vmem:[%s2306 + $0x380] sm:$0xff]
    %v2420 = vld [vmem:[%s2306 + $0x388] sm:$0xff]
    %v2421 = vld [vmem:[%s2306 + $0x390] sm:$0xff]
    %v2422 = vld [vmem:[%s2306 + $0x398] sm:$0xff]
    %v2423 = vld [vmem:[%s2306 + $0x3a0] sm:$0xff]
    %v2424 = vld [vmem:[%s2306 + $0x3a8] sm:$0xff]
    %v2425 = vld [vmem:[%s2306 + $0x3b0] sm:$0xff]
    %v2426 = vld [vmem:[%s2306 + $0x3b8] sm:$0xff]
    %v2427 = vld [vmem:[%s2306 + $0x3c0] sm:$0xff]
    %v2428 = vld [vmem:[%s2306 + $0x3c8] sm:$0xff]
    %v2429 = vld [vmem:[%s2306 + $0x3d0] sm:$0xff]
    %v2430 = vld [vmem:[%s2306 + $0x3d8] sm:$0xff]
    %v2431 = vld [vmem:[%s2306 + $0x3e0] sm:$0xff]
    %v2432 = vld [vmem:[%s2306 + $0x3e8] sm:$0xff]
    %v2433 = vld [vmem:[%s2306 + $0x3f0] sm:$0xff]
    %v2434 = vld [vmem:[%s2306 + $0x3f8] sm:$0xff]
    %v2435 = vld [vmem:[%s2306 + $0x400] sm:$0xff]
    %v2436 = vld [vmem:[%s2306 + $0x408] sm:$0xff]
    %v2437 = vld [vmem:[%s2306 + $0x410] sm:$0xff]
    %v2438 = vld [vmem:[%s2306 + $0x418] sm:$0xff]
    %v2439 = vld [vmem:[%s2306 + $0x420] sm:$0xff]
    %v2440 = vld [vmem:[%s2306 + $0x428] sm:$0xff]
    %v2441 = vld [vmem:[%s2306 + $0x430] sm:$0xff]
    %v2442 = vld [vmem:[%s2306 + $0x438] sm:$0xff]
    %v2443 = vld [vmem:[%s2306 + $0x440] sm:$0xff]
    %v2444 = vld [vmem:[%s2306 + $0x448] sm:$0xff]
    %v2445 = vld [vmem:[%s2306 + $0x450] sm:$0xff]
    %v2446 = vld [vmem:[%s2306 + $0x458] sm:$0xff]
    %v2447 = vld [vmem:[%s2306 + $0x460] sm:$0xff]
    %v2448 = vld [vmem:[%s2306 + $0x468] sm:$0xff]
    %v2449 = vld [vmem:[%s2306 + $0x470] sm:$0xff]
    %v2450 = vld [vmem:[%s2306 + $0x478] sm:$0xff]
    %v2451 = vld [vmem:[%s2306 + $0x480] sm:$0xff]
    %v2452 = vld [vmem:[%s2306 + $0x488] sm:$0xff]
    %v2453 = vld [vmem:[%s2306 + $0x490] sm:$0xff]
    %v2454 = vld [vmem:[%s2306 + $0x498] sm:$0xff]
    %v2455 = vld [vmem:[%s2306 + $0x4a0] sm:$0xff]
    %v2456 = vld [vmem:[%s2306 + $0x4a8] sm:$0xff]
    %v2457 = vld [vmem:[%s2306 + $0x4b0] sm:$0xff]
    %v2458 = vld [vmem:[%s2306 + $0x4b8] sm:$0xff]
    %v2459 = vld [vmem:[%s2306 + $0x4c0] sm:$0xff]
    %v2460 = vld [vmem:[%s2306 + $0x4c8] sm:$0xff]
    %v2461 = vld [vmem:[%s2306 + $0x4d0] sm:$0xff]
    %v2462 = vld [vmem:[%s2306 + $0x4d8] sm:$0xff]
    %v2463 = vld [vmem:[%s2306 + $0x4e0] sm:$0xff]
    %v2464 = vld [vmem:[%s2306 + $0x4e8] sm:$0xff]
    %v2465 = vld [vmem:[%s2306 + $0x4f0] sm:$0xff]
    %v2466 = vld [vmem:[%s2306 + $0x4f8] sm:$0xff]
    %v2467 = vld [vmem:[%s2306 + $0x500] sm:$0xff]
    %v2468 = vld [vmem:[%s2306 + $0x508] sm:$0xff]
    %v2469 = vld [vmem:[%s2306 + $0x510] sm:$0xff]
    %v2470 = vld [vmem:[%s2306 + $0x518] sm:$0xff]
    %v2471 = vld [vmem:[%s2306 + $0x520] sm:$0xff]
    %v2472 = vld [vmem:[%s2306 + $0x528] sm:$0xff]
    %v2473 = vld [vmem:[%s2306 + $0x530] sm:$0xff]
    %v2474 = vld [vmem:[%s2306 + $0x538] sm:$0xff]
    %v2475 = vld [vmem:[%s2306 + $0x540] sm:$0xff]
    %v2476 = vld [vmem:[%s2306 + $0x548] sm:$0xff]
    %v2477 = vld [vmem:[%s2306 + $0x550] sm:$0xff]
    %v2478 = vld [vmem:[%s2306 + $0x558] sm:$0xff]
    %v2479 = vld [vmem:[%s2306 + $0x560] sm:$0xff]
    %v2480 = vld [vmem:[%s2306 + $0x568] sm:$0xff]
    %v2481 = vld [vmem:[%s2306 + $0x570] sm:$0xff]
    %v2482 = vld [vmem:[%s2306 + $0x578] sm:$0xff]
    %v2483 = vld [vmem:[%s2306 + $0x580] sm:$0xff]
    %v2484 = vld [vmem:[%s2306 + $0x588] sm:$0xff]
    %v2485 = vld [vmem:[%s2306 + $0x590] sm:$0xff]
    %v2486 = vld [vmem:[%s2306 + $0x598] sm:$0xff]
    %v2487 = vld [vmem:[%s2306 + $0x5a0] sm:$0xff]
    %v2488 = vld [vmem:[%s2306 + $0x5a8] sm:$0xff]
    %v2489 = vld [vmem:[%s2306 + $0x5b0] sm:$0xff]
    %v2490 = vld [vmem:[%s2306 + $0x5b8] sm:$0xff]
    %v2491 = vld [vmem:[%s2306 + $0x5c0] sm:$0xff]
    %v2492 = vld [vmem:[%s2306 + $0x5c8] sm:$0xff]
    %v2493 = vld [vmem:[%s2306 + $0x5d0] sm:$0xff]
    %v2494 = vld [vmem:[%s2306 + $0x5d8] sm:$0xff]
    %v2495 = vld [vmem:[%s2306 + $0x5e0] sm:$0xff]
    %v2496 = vld [vmem:[%s2306 + $0x5e8] sm:$0xff]
    %v2497 = vld [vmem:[%s2306 + $0x5f0] sm:$0xff]
    %v2498 = vld [vmem:[%s2306 + $0x5f8] sm:$0xff]
    %s2499 = scalar_lea.vmem [#allocation15], 12
    %v2500 = vld [vmem:[%s2499] sm:$0x3f]
    %v2502 = vlaneseq
    %v2503 = vshrl.u32 %v2502, 7
    %v2504 = vsub.s32 0, %v2503
    %v2505 = vrot.slane %v2500, %v2504
    %v2506 = vlaneseq
    %v2507 = vshrl.u32 %v2506, 7
    %v2508 = vsub.s32 1, %v2507
    %v2509 = vrot.slane %v2500, %v2508
    %v2510 = vlaneseq
    %v2511 = vshrl.u32 %v2510, 7
    %v2512 = vsub.s32 2, %v2511
    %v2513 = vrot.slane %v2500, %v2512
    %v2514 = vlaneseq
    %v2515 = vshrl.u32 %v2514, 7
    %v2516 = vsub.s32 3, %v2515
    %v2517 = vrot.slane %v2500, %v2516
    %v2518 = vlaneseq
    %v2519 = vshrl.u32 %v2518, 7
    %v2520 = vsub.s32 4, %v2519
    %v2521 = vrot.slane %v2500, %v2520
    %v2522 = vlaneseq
    %v2523 = vshrl.u32 %v2522, 7
    %v2524 = vsub.s32 5, %v2523
    %v2525 = vrot.slane %v2500, %v2524
    %2532 = vmatprep.subr.mxu0 %v2308
    %2533 = vmatpush1.msra.mxu0 %v2307
    %2534 = vmatprep.subr.mxu0 %v2314
    %2535 = vmatpush1.msra.mxu0 %v2313
    %2536 = vmatprep.subr.mxu0 %v2320
    %2537 = vmatpush1.msra.mxu0 %v2319
    %2538 = vmatprep.subr.mxu0 %v2326
    %2539 = vmatpush1.msra.mxu0 %v2325
    %2540 = vmatprep.subr.mxu0 %v2332
    %2541 = vmatpush1.msra.mxu0 %v2331
    %2542 = vmatprep.subr.mxu0 %v2338
    %2543 = vmatpush1.msra.mxu0 %v2337
    %2544 = vmatprep.subr.mxu0 %v2344
    %2545 = vmatpush1.msra.mxu0 %v2343
    %2546 = vmatprep.subr.mxu0 %v2350
    %2547 = vmatpush1.msra.mxu0 %v2349
    %2548 = vmatprep.subr.mxu0 %v2356
    %2549 = vmatpush1.msra.mxu0 %v2355
    %2550 = vmatprep.subr.mxu0 %v2362
    %2551 = vmatpush1.msra.mxu0 %v2361
    %2552 = vmatprep.subr.mxu0 %v2368
    %2553 = vmatpush1.msra.mxu0 %v2367
    %2554 = vmatprep.subr.mxu0 %v2374
    %2555 = vmatpush1.msra.mxu0 %v2373
    %2556 = vmatprep.subr.mxu0 %v2380
    %2557 = vmatpush1.msra.mxu0 %v2379
    %2558 = vmatprep.subr.mxu0 %v2386
    %2559 = vmatpush1.msra.mxu0 %v2385
    %2560 = vmatprep.subr.mxu0 %v2392
    %2561 = vmatpush1.msra.mxu0 %v2391
    %2562 = vmatprep.subr.mxu0 %v2398
    %2563 = vmatpush1.msra.mxu0 %v2397
    %2564 = vmatprep.subr.mxu0 %v2404
    %2565 = vmatpush1.msra.mxu0 %v2403
    %2566 = vmatprep.subr.mxu0 %v2410
    %2567 = vmatpush1.msra.mxu0 %v2409
    %2568 = vmatprep.subr.mxu0 %v2416
    %2569 = vmatpush1.msra.mxu0 %v2415
    %2570 = vmatprep.subr.mxu0 %v2422
    %2571 = vmatpush1.msra.mxu0 %v2421
    %2572 = vmatprep.subr.mxu0 %v2428
    %2573 = vmatpush1.msra.mxu0 %v2427
    %2574 = vmatprep.subr.mxu0 %v2434
    %2575 = vmatpush1.msra.mxu0 %v2433
    %2576 = vmatprep.subr.mxu0 %v2440
    %2577 = vmatpush1.msra.mxu0 %v2439
    %2578 = vmatprep.subr.mxu0 %v2446
    %2579 = vmatpush1.msra.mxu0 %v2445
    %2580 = vmatprep.subr.mxu0 %v2452
    %2581 = vmatpush1.msra.mxu0 %v2451
    %2582 = vmatprep.subr.mxu0 %v2458
    %2583 = vmatpush1.msra.mxu0 %v2457
    %2584 = vmatprep.subr.mxu0 %v2464
    %2585 = vmatpush1.msra.mxu0 %v2463
    %2586 = vmatprep.subr.mxu0 %v2470
    %2587 = vmatpush1.msra.mxu0 %v2469
    %2588 = vmatprep.subr.mxu0 %v2476
    %2589 = vmatpush1.msra.mxu0 %v2475
    %2590 = vmatprep.subr.mxu0 %v2482
    %2591 = vmatpush1.msra.mxu0 %v2481
    %2592 = vmatprep.subr.mxu0 %v2488
    %2593 = vmatpush1.msra.mxu0 %v2487
    %2594 = vmatprep.subr.mxu0 %v2494
    %2595 = vmatpush1.msra.mxu0 %v2493
    %2596 = vmatprep.mubr.f32.mxu0 %v2291
    %2597 = vmatmul.mubr.f32.gmra.mrb[0].mxu0 %v2290
    %v2598 = vpop.f32.mrb[0].mxu0
    %v2599 = vadd.f32 %v2505, %v2598
    %v2600 = vpop.f32.mrb[0].mxu0
    %v2601 = vadd.f32 %v2509, %v2600
    %2602 = vmatprep.mubr.f32.mxu0 %v2293
    %2603 = vmatmul.mubr.f32.gmra.mrb[0].mxu0 %v2292
    %v2604 = vpop.f32.mrb[0].mxu0
    %v2605 = vadd.f32 %v2505, %v2604
    %v2606 = vpop.f32.mrb[0].mxu0
    %v2607 = vadd.f32 %v2509, %v2606
    %2608 = vmatprep.mubr.f32.mxu0 %v2295
    %2609 = vmatmul.mubr.f32.gmra.mrb[0].mxu0 %v2294
    %v2610 = vpop.f32.mrb[0].mxu0
    %v2611 = vadd.f32 %v2505, %v2610
    %v2612 = vpop.f32.mrb[0].mxu0
    %v2613 = vadd.f32 %v2509, %v2612
    %2614 = vmatprep.mubr.f32.mxu0 %v2297
    %2615 = vmatmul.mubr.f32.gmra.mrb[0].mxu0 %v2296
    %v2616 = vpop.f32.mrb[0].mxu0
    %v2617 = vadd.f32 %v2505, %v2616
    %v2618 = vpop.f32.mrb[0].mxu0
    %v2619 = vadd.f32 %v2509, %v2618
    %2620 = vmatprep.mubr.f32.mxu0 %v2299
    %2621 = vmatmul.mubr.f32.gmra.mrb[0].mxu0 %v2298
    %v2622 = vpop.f32.mrb[0].mxu0
    %v2623 = vadd.f32 %v2505, %v2622
    %v2624 = vpop.f32.mrb[0].mxu0
    %v2625 = vadd.f32 %v2509, %v2624
    %2626 = vmatprep.mubr.f32.mxu0 %v2301
    %2627 = vmatmul.mubr.f32.gmra.mrb[0].mxu0 %v2300
    %v2628 = vpop.f32.mrb[0].mxu0
    %v2629 = vadd.f32 %v2505, %v2628
    %v2630 = vpop.f32.mrb[0].mxu0
    %v2631 = vadd.f32 %v2509, %v2630
    %2632 = vmatprep.mubr.f32.mxu0 %v2303
    %2633 = vmatmul.mubr.f32.gmra.mrb[0].mxu0 %v2302
    %v2634 = vpop.f32.mrb[0].mxu0
    %v2635 = vadd.f32 %v2505, %v2634
    %v2636 = vpop.f32.mrb[0].mxu0
    %v2637 = vadd.f32 %v2509, %v2636
    %2638 = vmatprep.mubr.f32.mxu0 %v2305
    %2639 = vmatmul.mubr.f32.gmra.mrb[0].mxu0 %v2304
    %v2640 = vpop.f32.mrb[0].mxu0
    %v2641 = vadd.f32 %v2505, %v2640
    %v2642 = vpop.f32.mrb[0].mxu0
    %v2643 = vadd.f32 %v2509, %v2642
    %2644 = vdwg.mxu0
    %2645 = vmatprep.subr.mxu0 %v2310
    %2646 = vmatpush1.msra.mxu0 %v2309
    %2647 = vmatprep.subr.mxu0 %v2316
    %2648 = vmatpush1.msra.mxu0 %v2315
    %2649 = vmatprep.subr.mxu0 %v2322
    %2650 = vmatpush1.msra.mxu0 %v2321
    %2651 = vmatprep.subr.mxu0 %v2328
    %2652 = vmatpush1.msra.mxu0 %v2327
    %2653 = vmatprep.subr.mxu0 %v2334
    %2654 = vmatpush1.msra.mxu0 %v2333
    %2655 = vmatprep.subr.mxu0 %v2340
    %2656 = vmatpush1.msra.mxu0 %v2339
    %2657 = vmatprep.subr.mxu0 %v2346
    %2658 = vmatpush1.msra.mxu0 %v2345
    %2659 = vmatprep.subr.mxu0 %v2352
    %2660 = vmatpush1.msra.mxu0 %v2351
    %2661 = vmatprep.subr.mxu0 %v2358
    %2662 = vmatpush1.msra.mxu0 %v2357
    %2663 = vmatprep.subr.mxu0 %v2364
    %2664 = vmatpush1.msra.mxu0 %v2363
    %2665 = vmatprep.subr.mxu0 %v2370
    %2666 = vmatpush1.msra.mxu0 %v2369
    %2667 = vmatprep.subr.mxu0 %v2376
    %2668 = vmatpush1.msra.mxu0 %v2375
    %2669 = vmatprep.subr.mxu0 %v2382
    %2670 = vmatpush1.msra.mxu0 %v2381
    %2671 = vmatprep.subr.mxu0 %v2388
    %2672 = vmatpush1.msra.mxu0 %v2387
    %2673 = vmatprep.subr.mxu0 %v2394
    %2674 = vmatpush1.msra.mxu0 %v2393
    %2675 = vmatprep.subr.mxu0 %v2400
    %2676 = vmatpush1.msra.mxu0 %v2399
    %2677 = vmatprep.subr.mxu0 %v2406
    %2678 = vmatpush1.msra.mxu0 %v2405
    %2679 = vmatprep.subr.mxu0 %v2412
    %2680 = vmatpush1.msra.mxu0 %v2411
    %2681 = vmatprep.subr.mxu0 %v2418
    %2682 = vmatpush1.msra.mxu0 %v2417
    %2683 = vmatprep.subr.mxu0 %v2424
    %2684 = vmatpush1.msra.mxu0 %v2423
    %2685 = vmatprep.subr.mxu0 %v2430
    %2686 = vmatpush1.msra.mxu0 %v2429
    %2687 = vmatprep.subr.mxu0 %v2436
    %2688 = vmatpush1.msra.mxu0 %v2435
    %2689 = vmatprep.subr.mxu0 %v2442
    %2690 = vmatpush1.msra.mxu0 %v2441
    %2691 = vmatprep.subr.mxu0 %v2448
    %2692 = vmatpush1.msra.mxu0 %v2447
    %2693 = vmatprep.subr.mxu0 %v2454
    %2694 = vmatpush1.msra.mxu0 %v2453
    %2695 = vmatprep.subr.mxu0 %v2460
    %2696 = vmatpush1.msra.mxu0 %v2459
    %2697 = vmatprep.subr.mxu0 %v2466
    %2698 = vmatpush1.msra.mxu0 %v2465
    %2699 = vmatprep.subr.mxu0 %v2472
    %2700 = vmatpush1.msra.mxu0 %v2471
    %2701 = vmatprep.subr.mxu0 %v2478
    %2702 = vmatpush1.msra.mxu0 %v2477
    %2703 = vmatprep.subr.mxu0 %v2484
    %2704 = vmatpush1.msra.mxu0 %v2483
    %2705 = vmatprep.subr.mxu0 %v2490
    %2706 = vmatpush1.msra.mxu0 %v2489
    %2707 = vmatprep.subr.mxu0 %v2496
    %2708 = vmatpush1.msra.mxu0 %v2495
    %2709 = vmatprep.mubr.f32.mxu0 %v2291
    %2710 = vmatmul.mubr.f32.gmra.mrb[0].mxu0 %v2290
    %v2711 = vpop.f32.mrb[0].mxu0
    %v2712 = vadd.f32 %v2513, %v2711
    %v2713 = vpop.f32.mrb[0].mxu0
    %v2714 = vadd.f32 %v2517, %v2713
    %2715 = vmatprep.mubr.f32.mxu0 %v2293
    %2716 = vmatmul.mubr.f32.gmra.mrb[0].mxu0 %v2292
    %v2717 = vpop.f32.mrb[0].mxu0
    %v2718 = vadd.f32 %v2513, %v2717
    %v2719 = vpop.f32.mrb[0].mxu0
    %v2720 = vadd.f32 %v2517, %v2719
    %2721 = vmatprep.mubr.f32.mxu0 %v2295
    %2722 = vmatmul.mubr.f32.gmra.mrb[0].mxu0 %v2294
    %v2723 = vpop.f32.mrb[0].mxu0
    %v2724 = vadd.f32 %v2513, %v2723
    %v2725 = vpop.f32.mrb[0].mxu0
    %v2726 = vadd.f32 %v2517, %v2725
    %2727 = vmatprep.mubr.f32.mxu0 %v2297
    %2728 = vmatmul.mubr.f32.gmra.mrb[0].mxu0 %v2296
    %v2729 = vpop.f32.mrb[0].mxu0
    %v2730 = vadd.f32 %v2513, %v2729
    %v2731 = vpop.f32.mrb[0].mxu0
    %v2732 = vadd.f32 %v2517, %v2731
    %2733 = vmatprep.mubr.f32.mxu0 %v2299
    %2734 = vmatmul.mubr.f32.gmra.mrb[0].mxu0 %v2298
    %v2735 = vpop.f32.mrb[0].mxu0
    %v2736 = vadd.f32 %v2513, %v2735
    %v2737 = vpop.f32.mrb[0].mxu0
    %v2738 = vadd.f32 %v2517, %v2737
    %2739 = vmatprep.mubr.f32.mxu0 %v2301
    %2740 = vmatmul.mubr.f32.gmra.mrb[0].mxu0 %v2300
    %v2741 = vpop.f32.mrb[0].mxu0
    %v2742 = vadd.f32 %v2513, %v2741
    %v2743 = vpop.f32.mrb[0].mxu0
    %v2744 = vadd.f32 %v2517, %v2743
    %2745 = vmatprep.mubr.f32.mxu0 %v2303
    %2746 = vmatmul.mubr.f32.gmra.mrb[0].mxu0 %v2302
    %v2747 = vpop.f32.mrb[0].mxu0
    %v2748 = vadd.f32 %v2513, %v2747
    %v2749 = vpop.f32.mrb[0].mxu0
    %v2750 = vadd.f32 %v2517, %v2749
    %2751 = vmatprep.mubr.f32.mxu0 %v2305
    %2752 = vmatmul.mubr.f32.gmra.mrb[0].mxu0 %v2304
    %v2753 = vpop.f32.mrb[0].mxu0
    %v2754 = vadd.f32 %v2513, %v2753
    %v2755 = vpop.f32.mrb[0].mxu0
    %v2756 = vadd.f32 %v2517, %v2755
    %2757 = vdwg.mxu0
    %2758 = vmatprep.subr.mxu0 %v2312
    %2759 = vmatpush1.msra.mxu0 %v2311
    %2760 = vmatprep.subr.mxu0 %v2318
    %2761 = vmatpush1.msra.mxu0 %v2317
    %2762 = vmatprep.subr.mxu0 %v2324
    %2763 = vmatpush1.msra.mxu0 %v2323
    %2764 = vmatprep.subr.mxu0 %v2330
    %2765 = vmatpush1.msra.mxu0 %v2329
    %2766 = vmatprep.subr.mxu0 %v2336
    %2767 = vmatpush1.msra.mxu0 %v2335
    %2768 = vmatprep.subr.mxu0 %v2342
    %2769 = vmatpush1.msra.mxu0 %v2341
    %2770 = vmatprep.subr.mxu0 %v2348
    %2771 = vmatpush1.msra.mxu0 %v2347
    %2772 = vmatprep.subr.mxu0 %v2354
    %2773 = vmatpush1.msra.mxu0 %v2353
    %2774 = vmatprep.subr.mxu0 %v2360
    %2775 = vmatpush1.msra.mxu0 %v2359
    %2776 = vmatprep.subr.mxu0 %v2366
    %2777 = vmatpush1.msra.mxu0 %v2365
    %2778 = vmatprep.subr.mxu0 %v2372
    %2779 = vmatpush1.msra.mxu0 %v2371
    %2780 = vmatprep.subr.mxu0 %v2378
    %2781 = vmatpush1.msra.mxu0 %v2377
    %2782 = vmatprep.subr.mxu0 %v2384
    %2783 = vmatpush1.msra.mxu0 %v2383
    %2784 = vmatprep.subr.mxu0 %v2390
    %2785 = vmatpush1.msra.mxu0 %v2389
    %2786 = vmatprep.subr.mxu0 %v2396
    %2787 = vmatpush1.msra.mxu0 %v2395
    %2788 = vmatprep.subr.mxu0 %v2402
    %2789 = vmatpush1.msra.mxu0 %v2401
    %2790 = vmatprep.subr.mxu0 %v2408
    %2791 = vmatpush1.msra.mxu0 %v2407
    %2792 = vmatprep.subr.mxu0 %v2414
    %2793 = vmatpush1.msra.mxu0 %v2413
    %2794 = vmatprep.subr.mxu0 %v2420
    %2795 = vmatpush1.msra.mxu0 %v2419
    %2796 = vmatprep.subr.mxu0 %v2426
    %2797 = vmatpush1.msra.mxu0 %v2425
    %2798 = vmatprep.subr.mxu0 %v2432
    %2799 = vmatpush1.msra.mxu0 %v2431
    %2800 = vmatprep.subr.mxu0 %v2438
    %2801 = vmatpush1.msra.mxu0 %v2437
    %2802 = vmatprep.subr.mxu0 %v2444
    %2803 = vmatpush1.msra.mxu0 %v2443
    %2804 = vmatprep.subr.mxu0 %v2450
    %2805 = vmatpush1.msra.mxu0 %v2449
    %2806 = vmatprep.subr.mxu0 %v2456
    %2807 = vmatpush1.msra.mxu0 %v2455
    %2808 = vmatprep.subr.mxu0 %v2462
    %2809 = vmatpush1.msra.mxu0 %v2461
    %2810 = vmatprep.subr.mxu0 %v2468
    %2811 = vmatpush1.msra.mxu0 %v2467
    %2812 = vmatprep.subr.mxu0 %v2474
    %2813 = vmatpush1.msra.mxu0 %v2473
    %2814 = vmatprep.subr.mxu0 %v2480
    %2815 = vmatpush1.msra.mxu0 %v2479
    %2816 = vmatprep.subr.mxu0 %v2486
    %2817 = vmatpush1.msra.mxu0 %v2485
    %2818 = vmatprep.subr.mxu0 %v2492
    %2819 = vmatpush1.msra.mxu0 %v2491
    %2820 = vmatprep.subr.mxu0 %v2498
    %2821 = vmatpush1.msra.mxu0 %v2497
    %2822 = vmatprep.mubr.f32.mxu0 %v2291
    %2823 = vmatmul.mubr.f32.gmra.mrb[0].mxu0 %v2290
    %v2824 = vpop.f32.mrb[0].mxu0
    %v2825 = vadd.f32 %v2521, %v2824
    %v2826 = vpop.f32.mrb[0].mxu0
    %v2827 = vadd.f32 %v2525, %v2826
    %2828 = vmatprep.mubr.f32.mxu0 %v2293
    %2829 = vmatmul.mubr.f32.gmra.mrb[0].mxu0 %v2292
    %v2830 = vpop.f32.mrb[0].mxu0
    %v2831 = vadd.f32 %v2521, %v2830
    %v2832 = vpop.f32.mrb[0].mxu0
    %v2833 = vadd.f32 %v2525, %v2832
    %2834 = vmatprep.mubr.f32.mxu0 %v2295
    %2835 = vmatmul.mubr.f32.gmra.mrb[0].mxu0 %v2294
    %v2836 = vpop.f32.mrb[0].mxu0
    %v2837 = vadd.f32 %v2521, %v2836
    %v2838 = vpop.f32.mrb[0].mxu0
    %v2839 = vadd.f32 %v2525, %v2838
    %2840 = vmatprep.mubr.f32.mxu0 %v2297
    %2841 = vmatmul.mubr.f32.gmra.mrb[0].mxu0 %v2296
    %v2842 = vpop.f32.mrb[0].mxu0
    %v2843 = vadd.f32 %v2521, %v2842
    %v2844 = vpop.f32.mrb[0].mxu0
    %v2845 = vadd.f32 %v2525, %v2844
    %2846 = vmatprep.mubr.f32.mxu0 %v2299
    %2847 = vmatmul.mubr.f32.gmra.mrb[0].mxu0 %v2298
    %v2848 = vpop.f32.mrb[0].mxu0
    %v2849 = vadd.f32 %v2521, %v2848
    %v2850 = vpop.f32.mrb[0].mxu0
    %v2851 = vadd.f32 %v2525, %v2850
    %2852 = vmatprep.mubr.f32.mxu0 %v2301
    %2853 = vmatmul.mubr.f32.gmra.mrb[0].mxu0 %v2300
    %v2854 = vpop.f32.mrb[0].mxu0
    %v2855 = vadd.f32 %v2521, %v2854
    %v2856 = vpop.f32.mrb[0].mxu0
    %v2857 = vadd.f32 %v2525, %v2856
    %2858 = vmatprep.mubr.f32.mxu0 %v2303
    %2859 = vmatmul.mubr.f32.gmra.mrb[0].mxu0 %v2302
    %v2860 = vpop.f32.mrb[0].mxu0
    %v2861 = vadd.f32 %v2521, %v2860
    %v2862 = vpop.f32.mrb[0].mxu0
    %v2863 = vadd.f32 %v2525, %v2862
    %2864 = vmatprep.mubr.f32.mxu0 %v2305
    %2865 = vmatmul.mubr.f32.gmra.mrb[0].mxu0 %v2304
    %v2866 = vpop.f32.mrb[0].mxu0
    %v2867 = vadd.f32 %v2521, %v2866
    %v2868 = vpop.f32.mrb[0].mxu0
    %v2869 = vadd.f32 %v2525, %v2868
    %2870 = vdwg.mxu0
    %2871 = vst [vmem:[#allocation3] sm:$0xff] %v2599
    %2872 = vst [vmem:[#allocation3 + $0x8] sm:$0xff] %v2601
    %2873 = vst [vmem:[#allocation3 + $0x10] sm:$0xff] %v2712
    %2874 = vst [vmem:[#allocation3 + $0x18] sm:$0xff] %v2714
    %2875 = vst [vmem:[#allocation3 + $0x20] sm:$0xff] %v2825
    %2876 = vst [vmem:[#allocation3 + $0x28] sm:$0xff] %v2827
    %2877 = vst [vmem:[#allocation3 + $0x30] sm:$0xff] %v2605
    %2878 = vst [vmem:[#allocation3 + $0x38] sm:$0xff] %v2607
    %2879 = vst [vmem:[#allocation3 + $0x40] sm:$0xff] %v2718
    %2880 = vst [vmem:[#allocation3 + $0x48] sm:$0xff] %v2720
    %2881 = vst [vmem:[#allocation3 + $0x50] sm:$0xff] %v2831
    %2882 = vst [vmem:[#allocation3 + $0x58] sm:$0xff] %v2833
    %2883 = vst [vmem:[#allocation3 + $0x60] sm:$0xff] %v2611
    %2884 = vst [vmem:[#allocation3 + $0x68] sm:$0xff] %v2613
    %2885 = vst [vmem:[#allocation3 + $0x70] sm:$0xff] %v2724
    %2886 = vst [vmem:[#allocation3 + $0x78] sm:$0xff] %v2726
    %2887 = vst [vmem:[#allocation3 + $0x80] sm:$0xff] %v2837
    %2888 = vst [vmem:[#allocation3 + $0x88] sm:$0xff] %v2839
    %2889 = vst [vmem:[#allocation3 + $0x90] sm:$0xff] %v2617
    %2890 = vst [vmem:[#allocation3 + $0x98] sm:$0xff] %v2619
    %2891 = vst [vmem:[#allocation3 + $0xa0] sm:$0xff] %v2730
    %2892 = vst [vmem:[#allocation3 + $0xa8] sm:$0xff] %v2732
    %2893 = vst [vmem:[#allocation3 + $0xb0] sm:$0xff] %v2843
    %2894 = vst [vmem:[#allocation3 + $0xb8] sm:$0xff] %v2845
    %2895 = vst [vmem:[#allocation3 + $0xc0] sm:$0xff] %v2623
    %2896 = vst [vmem:[#allocation3 + $0xc8] sm:$0xff] %v2625
    %2897 = vst [vmem:[#allocation3 + $0xd0] sm:$0xff] %v2736
    %2898 = vst [vmem:[#allocation3 + $0xd8] sm:$0xff] %v2738
    %2899 = vst [vmem:[#allocation3 + $0xe0] sm:$0xff] %v2849
    %2900 = vst [vmem:[#allocation3 + $0xe8] sm:$0xff] %v2851
    %2901 = vst [vmem:[#allocation3 + $0xf0] sm:$0xff] %v2629
    %2902 = vst [vmem:[#allocation3 + $0xf8] sm:$0xff] %v2631
    %2903 = vst [vmem:[#allocation3 + $0x100] sm:$0xff] %v2742
    %2904 = vst [vmem:[#allocation3 + $0x108] sm:$0xff] %v2744
    %2905 = vst [vmem:[#allocation3 + $0x110] sm:$0xff] %v2855
    %2906 = vst [vmem:[#allocation3 + $0x118] sm:$0xff] %v2857
    %2907 = vst [vmem:[#allocation3 + $0x120] sm:$0xff] %v2635
    %2908 = vst [vmem:[#allocation3 + $0x128] sm:$0xff] %v2637
    %2909 = vst [vmem:[#allocation3 + $0x130] sm:$0xff] %v2748
    %2910 = vst [vmem:[#allocation3 + $0x138] sm:$0xff] %v2750
    %2911 = vst [vmem:[#allocation3 + $0x140] sm:$0xff] %v2861
    %2912 = vst [vmem:[#allocation3 + $0x148] sm:$0xff] %v2863
    %2913 = vst [vmem:[#allocation3 + $0x150] sm:$0xff] %v2641
    %2914 = vst [vmem:[#allocation3 + $0x158] sm:$0xff] %v2643
    %2915 = vst [vmem:[#allocation3 + $0x160] sm:$0xff] %v2754
    %2916 = vst [vmem:[#allocation3 + $0x168] sm:$0xff] %v2756
    %2917 = vst [vmem:[#allocation3 + $0x170] sm:$0xff] %v2867
    %2918 = vst [vmem:[#allocation3 + $0x178] sm:$0xff] %v2869
    %2919 = vst [vmem:[#allocation4] sm:$0xff] 0.0
    %2920 = vst [vmem:[#allocation4 + $0x8] sm:$0xff] 0.0
    %s2921 = scalar_lea.vmem [#allocation16], 4
    %v2922 = vld [vmem:[%s2921] sm:$0x1]
    %v2924 = vlaneseq
    %v2925 = vshrl.u32 %v2924, 7
    %v2926 = vsub.s32 0, %v2925
    %v2927 = vrot.slane %v2922, %v2926
    %s2929 = scalar_lea.vmem [#allocation16], 5
    %v2930 = vld [vmem:[%s2929] sm:$0x1]
    %v2932 = vlaneseq
    %v2933 = vshrl.u32 %v2932, 7
    %v2934 = vsub.s32 0, %v2933
    %v2935 = vrot.slane %v2930, %v2934
    // While loop
    $region100: #{tpu_custom_call.1} parent=1 // loop_pre_header
      _
    $region101: #{tpu_custom_call.1} parent=1 // loop_header
      %s2938 = sphi 0, %s2940
      %p2939 = scmp.ge.s32.totalorder %s2938, %s174
    $region102: #{tpu_custom_call.1} parent=1 // loop_header_branch
      %2942 = sbr.rel (%p2939) target = $region106
    $region103: #{tpu_custom_call.1} parent=1 // loop_body
      %s2943 = ssub.s32 %s174, 1
      %s2944 = ssub.s32 %s2943, %s2938
      %v2945 = vld [vmem:[#allocation4] sm:$0xff]
      %s2946 = scalar_lea.vmem [#allocation4], 8
      %v2947 = vld [vmem:[%s2946] sm:$0xff]
      %s2948 = smul.u32 %s2938, 6
      %s2949 = smul.addr %s2948, 8
      %s2950 = scalar_lea.vmem [#allocation3], %s2949
      %v2951 = vld [vmem:[%s2950] sm:$0xff]
      %v2952 = vld [vmem:[%s2950 + $0x8] sm:$0xff]
      %v2953 = vld [vmem:[%s2950 + $0x10] sm:$0xff]
      %s2954 = smul.u32 %s2944, 6
      %s2955 = smul.addr %s2954, 8
      %s2956 = scalar_lea.vmem [#allocation3], %s2955
      %v2957 = vld [vmem:[%s2956 + $0x18] sm:$0xff]
      %v2958 = vld [vmem:[%s2956 + $0x20] sm:$0xff]
      %v2959 = vld [vmem:[%s2956 + $0x28] sm:$0xff]
      %s2960 = scalar_lea.vmem [#allocation13], 1536
      %v2961 = vld [vmem:[%s2960] sm:$0xff]
      %v2962 = vld [vmem:[%s2960 + $0x8] sm:$0xff]
      %v2963 = vld [vmem:[%s2960 + $0x10] sm:$0xff]
      %v2964 = vld [vmem:[%s2960 + $0x18] sm:$0xff]
      %v2965 = vld [vmem:[%s2960 + $0x20] sm:$0xff]
      %v2966 = vld [vmem:[%s2960 + $0x28] sm:$0xff]
      %v2967 = vld [vmem:[%s2960 + $0x30] sm:$0xff]
      %v2968 = vld [vmem:[%s2960 + $0x38] sm:$0xff]
      %v2969 = vld [vmem:[%s2960 + $0x40] sm:$0xff]
      %v2970 = vld [vmem:[%s2960 + $0x48] sm:$0xff]
      %v2971 = vld [vmem:[%s2960 + $0x50] sm:$0xff]
      %v2972 = vld [vmem:[%s2960 + $0x58] sm:$0xff]
      %v2973 = vld [vmem:[%s2960 + $0x60] sm:$0xff]
      %v2974 = vld [vmem:[%s2960 + $0x68] sm:$0xff]
      %v2975 = vld [vmem:[%s2960 + $0x70] sm:$0xff]
      %v2976 = vld [vmem:[%s2960 + $0x78] sm:$0xff]
      %v2977 = vld [vmem:[%s2960 + $0x80] sm:$0xff]
      %v2978 = vld [vmem:[%s2960 + $0x88] sm:$0xff]
      %v2979 = vld [vmem:[%s2960 + $0x90] sm:$0xff]
      %v2980 = vld [vmem:[%s2960 + $0x98] sm:$0xff]
      %v2981 = vld [vmem:[%s2960 + $0xa0] sm:$0xff]
      %v2982 = vld [vmem:[%s2960 + $0xa8] sm:$0xff]
      %v2983 = vld [vmem:[%s2960 + $0xb0] sm:$0xff]
      %v2984 = vld [vmem:[%s2960 + $0xb8] sm:$0xff]
      %v2985 = vld [vmem:[%s2960 + $0xc0] sm:$0xff]
      %v2986 = vld [vmem:[%s2960 + $0xc8] sm:$0xff]
      %v2987 = vld [vmem:[%s2960 + $0xd0] sm:$0xff]
      %v2988 = vld [vmem:[%s2960 + $0xd8] sm:$0xff]
      %v2989 = vld [vmem:[%s2960 + $0xe0] sm:$0xff]
      %v2990 = vld [vmem:[%s2960 + $0xe8] sm:$0xff]
      %v2991 = vld [vmem:[%s2960 + $0xf0] sm:$0xff]
      %v2992 = vld [vmem:[%s2960 + $0xf8] sm:$0xff]
      %v2993 = vld [vmem:[%s2960 + $0x100] sm:$0xff]
      %v2994 = vld [vmem:[%s2960 + $0x108] sm:$0xff]
      %v2995 = vld [vmem:[%s2960 + $0x110] sm:$0xff]
      %v2996 = vld [vmem:[%s2960 + $0x118] sm:$0xff]
      %v2997 = vld [vmem:[%s2960 + $0x120] sm:$0xff]
      %v2998 = vld [vmem:[%s2960 + $0x128] sm:$0xff]
      %v2999 = vld [vmem:[%s2960 + $0x130] sm:$0xff]
      %v3000 = vld [vmem:[%s2960 + $0x138] sm:$0xff]
      %v3001 = vld [vmem:[%s2960 + $0x140] sm:$0xff]
      %v3002 = vld [vmem:[%s2960 + $0x148] sm:$0xff]
      %v3003 = vld [vmem:[%s2960 + $0x150] sm:$0xff]
      %v3004 = vld [vmem:[%s2960 + $0x158] sm:$0xff]
      %v3005 = vld [vmem:[%s2960 + $0x160] sm:$0xff]
      %v3006 = vld [vmem:[%s2960 + $0x168] sm:$0xff]
      %v3007 = vld [vmem:[%s2960 + $0x170] sm:$0xff]
      %v3008 = vld [vmem:[%s2960 + $0x178] sm:$0xff]
      %3009 = vmatprep.subr.mxu0 %v2962
      %3010 = vmatpush1.msra.mxu0 %v2961
      %3011 = vmatprep.subr.mxu0 %v2965
      %3012 = vmatpush1.msra.mxu0 %v2964
      %3013 = vmatprep.subr.mxu0 %v2968
      %3014 = vmatpush1.msra.mxu0 %v2967
      %3015 = vmatprep.subr.mxu0 %v2971
      %3016 = vmatpush1.msra.mxu0 %v2970
      %3017 = vmatprep.subr.mxu0 %v2974
      %3018 = vmatpush1.msra.mxu0 %v2973
      %3019 = vmatprep.subr.mxu0 %v2977
      %3020 = vmatpush1.msra.mxu0 %v2976
      %3021 = vmatprep.subr.mxu0 %v2980
      %3022 = vmatpush1.msra.mxu0 %v2979
      %3023 = vmatprep.subr.mxu0 %v2983
      %3024 = vmatpush1.msra.mxu0 %v2982
      %3025 = vmatprep.subr.mxu0 %v2986
      %3026 = vmatpush1.msra.mxu0 %v2985
      %3027 = vmatprep.subr.mxu0 %v2989
      %3028 = vmatpush1.msra.mxu0 %v2988
      %3029 = vmatprep.subr.mxu0 %v2992
      %3030 = vmatpush1.msra.mxu0 %v2991
      %3031 = vmatprep.subr.mxu0 %v2995
      %3032 = vmatpush1.msra.mxu0 %v2994
      %3033 = vmatprep.subr.mxu0 %v2998
      %3034 = vmatpush1.msra.mxu0 %v2997
      %3035 = vmatprep.subr.mxu0 %v3001
      %3036 = vmatpush1.msra.mxu0 %v3000
      %3037 = vmatprep.subr.mxu0 %v3004
      %3038 = vmatpush1.msra.mxu0 %v3003
      %3039 = vmatprep.subr.mxu0 %v3007
      %3040 = vmatpush1.msra.mxu0 %v3006
      %3041 = vmatprep.subr.mxu0 0.0
      %3042 = vmatpush1.msra.mxu0 0.0
      %3043 = vmatprep.subr.mxu0 0.0
      %3044 = vmatpush1.msra.mxu0 0.0
      %3045 = vmatprep.subr.mxu0 0.0
      %3046 = vmatpush1.msra.mxu0 0.0
      %3047 = vmatprep.subr.mxu0 0.0
      %3048 = vmatpush1.msra.mxu0 0.0
      %3049 = vmatprep.subr.mxu0 0.0
      %3050 = vmatpush1.msra.mxu0 0.0
      %3051 = vmatprep.subr.mxu0 0.0
      %3052 = vmatpush1.msra.mxu0 0.0
      %3053 = vmatprep.subr.mxu0 0.0
      %3054 = vmatpush1.msra.mxu0 0.0
      %3055 = vmatprep.subr.mxu0 0.0
      %3056 = vmatpush1.msra.mxu0 0.0
      %3057 = vmatprep.subr.mxu0 0.0
      %3058 = vmatpush1.msra.mxu0 0.0
      %3059 = vmatprep.subr.mxu0 0.0
      %3060 = vmatpush1.msra.mxu0 0.0
      %3061 = vmatprep.subr.mxu0 0.0
      %3062 = vmatpush1.msra.mxu0 0.0
      %3063 = vmatprep.subr.mxu0 0.0
      %3064 = vmatpush1.msra.mxu0 0.0
      %3065 = vmatprep.subr.mxu0 0.0
      %3066 = vmatpush1.msra.mxu0 0.0
      %3067 = vmatprep.subr.mxu0 0.0
      %3068 = vmatpush1.msra.mxu0 0.0
      %3069 = vmatprep.subr.mxu0 0.0
      %3070 = vmatpush1.msra.mxu0 0.0
      %3071 = vmatprep.subr.mxu0 0.0
      %3072 = vmatpush1.msra.mxu0 0.0
      %3073 = vmatprep.mubr.f32.mxu0 0.0
      %3074 = vmatmul.mubr.f32.gmra.mrb[0].mxu0 %v2945
      %v3075 = vpop.f32.mrb[0].mxu0
      %v3076 = vadd.f32 0.0, %v3075
      %v3077 = vpop.f32.mrb[0].mxu0
      %v3078 = vadd.f32 0.0, %v3077
      %3079 = vdwg.mxu0
      %3080 = vmatprep.subr.mxu0 0.0
      %3081 = vmatpush1.msra.mxu0 %v2963
      %3082 = vmatprep.subr.mxu0 0.0
      %3083 = vmatpush1.msra.mxu0 %v2966
      %3084 = vmatprep.subr.mxu0 0.0
      %3085 = vmatpush1.msra.mxu0 %v2969
      %3086 = vmatprep.subr.mxu0 0.0
      %3087 = vmatpush1.msra.mxu0 %v2972
      %3088 = vmatprep.subr.mxu0 0.0
      %3089 = vmatpush1.msra.mxu0 %v2975
      %3090 = vmatprep.subr.mxu0 0.0
      %3091 = vmatpush1.msra.mxu0 %v2978
      %3092 = vmatprep.subr.mxu0 0.0
      %3093 = vmatpush1.msra.mxu0 %v2981
      %3094 = vmatprep.subr.mxu0 0.0
      %3095 = vmatpush1.msra.mxu0 %v2984
      %3096 = vmatprep.subr.mxu0 0.0
      %3097 = vmatpush1.msra.mxu0 %v2987
      %3098 = vmatprep.subr.mxu0 0.0
      %3099 = vmatpush1.msra.mxu0 %v2990
      %3100 = vmatprep.subr.mxu0 0.0
      %3101 = vmatpush1.msra.mxu0 %v2993
      %3102 = vmatprep.subr.mxu0 0.0
      %3103 = vmatpush1.msra.mxu0 %v2996
      %3104 = vmatprep.subr.mxu0 0.0
      %3105 = vmatpush1.msra.mxu0 %v2999
      %3106 = vmatprep.subr.mxu0 0.0
      %3107 = vmatpush1.msra.mxu0 %v3002
      %3108 = vmatprep.subr.mxu0 0.0
      %3109 = vmatpush1.msra.mxu0 %v3005
      %3110 = vmatprep.subr.mxu0 0.0
      %3111 = vmatpush1.msra.mxu0 %v3008
      %3112 = vmatprep.subr.mxu0 0.0
      %3113 = vmatpush1.msra.mxu0 0.0
      %3114 = vmatprep.subr.mxu0 0.0
      %3115 = vmatpush1.msra.mxu0 0.0
      %3116 = vmatprep.subr.mxu0 0.0
      %3117 = vmatpush1.msra.mxu0 0.0
      %3118 = vmatprep.subr.mxu0 0.0
      %3119 = vmatpush1.msra.mxu0 0.0
      %3120 = vmatprep.subr.mxu0 0.0
      %3121 = vmatpush1.msra.mxu0 0.0
      %3122 = vmatprep.subr.mxu0 0.0
      %3123 = vmatpush1.msra.mxu0 0.0
      %3124 = vmatprep.subr.mxu0 0.0
      %3125 = vmatpush1.msra.mxu0 0.0
      %3126 = vmatprep.subr.mxu0 0.0
      %3127 = vmatpush1.msra.mxu0 0.0
      %3128 = vmatprep.subr.mxu0 0.0
      %3129 = vmatpush1.msra.mxu0 0.0
      %3130 = vmatprep.subr.mxu0 0.0
      %3131 = vmatpush1.msra.mxu0 0.0
      %3132 = vmatprep.subr.mxu0 0.0
      %3133 = vmatpush1.msra.mxu0 0.0
      %3134 = vmatprep.subr.mxu0 0.0
      %3135 = vmatpush1.msra.mxu0 0.0
      %3136 = vmatprep.subr.mxu0 0.0
      %3137 = vmatpush1.msra.mxu0 0.0
      %3138 = vmatprep.subr.mxu0 0.0
      %3139 = vmatpush1.msra.mxu0 0.0
      %3140 = vmatprep.subr.mxu0 0.0
      %3141 = vmatpush1.msra.mxu0 0.0
      %3142 = vmatprep.subr.mxu0 0.0
      %3143 = vmatpush1.msra.mxu0 0.0
      %3144 = vmatprep.mubr.f32.mxu0 0.0
      %3145 = vmatmul.mubr.f32.gmra.mrb[0].mxu0 %v2945
      %v3146 = vpop.f32.mrb[0].mxu0
      %v3147 = vadd.f32 0.0, %v3146
      %v3148 = vpop.f32.mrb[0].mxu0
      %3149 = vdwg.mxu0
      %s3150 = scalar_lea.vmem [#allocation13], 1920
      %v3151 = vld [vmem:[%s3150] sm:$0xff]
      %v3152 = vld [vmem:[%s3150 + $0x8] sm:$0xff]
      %v3153 = vld [vmem:[%s3150 + $0x10] sm:$0xff]
      %v3154 = vld [vmem:[%s3150 + $0x18] sm:$0xff]
      %v3155 = vld [vmem:[%s3150 + $0x20] sm:$0xff]
      %v3156 = vld [vmem:[%s3150 + $0x28] sm:$0xff]
      %v3157 = vld [vmem:[%s3150 + $0x30] sm:$0xff]
      %v3158 = vld [vmem:[%s3150 + $0x38] sm:$0xff]
      %v3159 = vld [vmem:[%s3150 + $0x40] sm:$0xff]
      %v3160 = vld [vmem:[%s3150 + $0x48] sm:$0xff]
      %v3161 = vld [vmem:[%s3150 + $0x50] sm:$0xff]
      %v3162 = vld [vmem:[%s3150 + $0x58] sm:$0xff]
      %v3163 = vld [vmem:[%s3150 + $0x60] sm:$0xff]
      %v3164 = vld [vmem:[%s3150 + $0x68] sm:$0xff]
      %v3165 = vld [vmem:[%s3150 + $0x70] sm:$0xff]
      %v3166 = vld [vmem:[%s3150 + $0x78] sm:$0xff]
      %v3167 = vld [vmem:[%s3150 + $0x80] sm:$0xff]
      %v3168 = vld [vmem:[%s3150 + $0x88] sm:$0xff]
      %v3169 = vld [vmem:[%s3150 + $0x90] sm:$0xff]
      %v3170 = vld [vmem:[%s3150 + $0x98] sm:$0xff]
      %v3171 = vld [vmem:[%s3150 + $0xa0] sm:$0xff]
      %v3172 = vld [vmem:[%s3150 + $0xa8] sm:$0xff]
      %v3173 = vld [vmem:[%s3150 + $0xb0] sm:$0xff]
      %v3174 = vld [vmem:[%s3150 + $0xb8] sm:$0xff]
      %v3175 = vld [vmem:[%s3150 + $0xc0] sm:$0xff]
      %v3176 = vld [vmem:[%s3150 + $0xc8] sm:$0xff]
      %v3177 = vld [vmem:[%s3150 + $0xd0] sm:$0xff]
      %v3178 = vld [vmem:[%s3150 + $0xd8] sm:$0xff]
      %v3179 = vld [vmem:[%s3150 + $0xe0] sm:$0xff]
      %v3180 = vld [vmem:[%s3150 + $0xe8] sm:$0xff]
      %v3181 = vld [vmem:[%s3150 + $0xf0] sm:$0xff]
      %v3182 = vld [vmem:[%s3150 + $0xf8] sm:$0xff]
      %v3183 = vld [vmem:[%s3150 + $0x100] sm:$0xff]
      %v3184 = vld [vmem:[%s3150 + $0x108] sm:$0xff]
      %v3185 = vld [vmem:[%s3150 + $0x110] sm:$0xff]
      %v3186 = vld [vmem:[%s3150 + $0x118] sm:$0xff]
      %v3187 = vld [vmem:[%s3150 + $0x120] sm:$0xff]
      %v3188 = vld [vmem:[%s3150 + $0x128] sm:$0xff]
      %v3189 = vld [vmem:[%s3150 + $0x130] sm:$0xff]
      %v3190 = vld [vmem:[%s3150 + $0x138] sm:$0xff]
      %v3191 = vld [vmem:[%s3150 + $0x140] sm:$0xff]
      %v3192 = vld [vmem:[%s3150 + $0x148] sm:$0xff]
      %v3193 = vld [vmem:[%s3150 + $0x150] sm:$0xff]
      %v3194 = vld [vmem:[%s3150 + $0x158] sm:$0xff]
      %v3195 = vld [vmem:[%s3150 + $0x160] sm:$0xff]
      %v3196 = vld [vmem:[%s3150 + $0x168] sm:$0xff]
      %v3197 = vld [vmem:[%s3150 + $0x170] sm:$0xff]
      %v3198 = vld [vmem:[%s3150 + $0x178] sm:$0xff]
      %3199 = vmatprep.subr.mxu0 %v3152
      %3200 = vmatpush1.msra.mxu0 %v3151
      %3201 = vmatprep.subr.mxu0 %v3155
      %3202 = vmatpush1.msra.mxu0 %v3154
      %3203 = vmatprep.subr.mxu0 %v3158
      %3204 = vmatpush1.msra.mxu0 %v3157
      %3205 = vmatprep.subr.mxu0 %v3161
      %3206 = vmatpush1.msra.mxu0 %v3160
      %3207 = vmatprep.subr.mxu0 %v3164
      %3208 = vmatpush1.msra.mxu0 %v3163
      %3209 = vmatprep.subr.mxu0 %v3167
      %3210 = vmatpush1.msra.mxu0 %v3166
      %3211 = vmatprep.subr.mxu0 %v3170
      %3212 = vmatpush1.msra.mxu0 %v3169
      %3213 = vmatprep.subr.mxu0 %v3173
      %3214 = vmatpush1.msra.mxu0 %v3172
      %3215 = vmatprep.subr.mxu0 %v3176
      %3216 = vmatpush1.msra.mxu0 %v3175
      %3217 = vmatprep.subr.mxu0 %v3179
      %3218 = vmatpush1.msra.mxu0 %v3178
      %3219 = vmatprep.subr.mxu0 %v3182
      %3220 = vmatpush1.msra.mxu0 %v3181
      %3221 = vmatprep.subr.mxu0 %v3185
      %3222 = vmatpush1.msra.mxu0 %v3184
      %3223 = vmatprep.subr.mxu0 %v3188
      %3224 = vmatpush1.msra.mxu0 %v3187
      %3225 = vmatprep.subr.mxu0 %v3191
      %3226 = vmatpush1.msra.mxu0 %v3190
      %3227 = vmatprep.subr.mxu0 %v3194
      %3228 = vmatpush1.msra.mxu0 %v3193
      %3229 = vmatprep.subr.mxu0 %v3197
      %3230 = vmatpush1.msra.mxu0 %v3196
      %3231 = vmatprep.subr.mxu0 0.0
      %3232 = vmatpush1.msra.mxu0 0.0
      %3233 = vmatprep.subr.mxu0 0.0
      %3234 = vmatpush1.msra.mxu0 0.0
      %3235 = vmatprep.subr.mxu0 0.0
      %3236 = vmatpush1.msra.mxu0 0.0
      %3237 = vmatprep.subr.mxu0 0.0
      %3238 = vmatpush1.msra.mxu0 0.0
      %3239 = vmatprep.subr.mxu0 0.0
      %3240 = vmatpush1.msra.mxu0 0.0
      %3241 = vmatprep.subr.mxu0 0.0
      %3242 = vmatpush1.msra.mxu0 0.0
      %3243 = vmatprep.subr.mxu0 0.0
      %3244 = vmatpush1.msra.mxu0 0.0
      %3245 = vmatprep.subr.mxu0 0.0
      %3246 = vmatpush1.msra.mxu0 0.0
      %3247 = vmatprep.subr.mxu0 0.0
      %3248 = vmatpush1.msra.mxu0 0.0
      %3249 = vmatprep.subr.mxu0 0.0
      %3250 = vmatpush1.msra.mxu0 0.0
      %3251 = vmatprep.subr.mxu0 0.0
      %3252 = vmatpush1.msra.mxu0 0.0
      %3253 = vmatprep.subr.mxu0 0.0
      %3254 = vmatpush1.msra.mxu0 0.0
      %3255 = vmatprep.subr.mxu0 0.0
      %3256 = vmatpush1.msra.mxu0 0.0
      %3257 = vmatprep.subr.mxu0 0.0
      %3258 = vmatpush1.msra.mxu0 0.0
      %3259 = vmatprep.subr.mxu0 0.0
      %3260 = vmatpush1.msra.mxu0 0.0
      %3261 = vmatprep.subr.mxu0 0.0
      %3262 = vmatpush1.msra.mxu0 0.0
      %3263 = vmatprep.mubr.f32.mxu0 0.0
      %3264 = vmatmul.mubr.f32.gmra.mrb[0].mxu0 %v2947
      %v3265 = vpop.f32.mrb[0].mxu0
      %v3266 = vadd.f32 0.0, %v3265
      %v3267 = vpop.f32.mrb[0].mxu0
      %v3268 = vadd.f32 0.0, %v3267
      %3269 = vdwg.mxu0
      %3270 = vmatprep.subr.mxu0 0.0
      %3271 = vmatpush1.msra.mxu0 %v3153
      %3272 = vmatprep.subr.mxu0 0.0
      %3273 = vmatpush1.msra.mxu0 %v3156
      %3274 = vmatprep.subr.mxu0 0.0
      %3275 = vmatpush1.msra.mxu0 %v3159
      %3276 = vmatprep.subr.mxu0 0.0
      %3277 = vmatpush1.msra.mxu0 %v3162
      %3278 = vmatprep.subr.mxu0 0.0
      %3279 = vmatpush1.msra.mxu0 %v3165
      %3280 = vmatprep.subr.mxu0 0.0
      %3281 = vmatpush1.msra.mxu0 %v3168
      %3282 = vmatprep.subr.mxu0 0.0
      %3283 = vmatpush1.msra.mxu0 %v3171
      %3284 = vmatprep.subr.mxu0 0.0
      %3285 = vmatpush1.msra.mxu0 %v3174
      %3286 = vmatprep.subr.mxu0 0.0
      %3287 = vmatpush1.msra.mxu0 %v3177
      %3288 = vmatprep.subr.mxu0 0.0
      %3289 = vmatpush1.msra.mxu0 %v3180
      %3290 = vmatprep.subr.mxu0 0.0
      %3291 = vmatpush1.msra.mxu0 %v3183
      %3292 = vmatprep.subr.mxu0 0.0
      %3293 = vmatpush1.msra.mxu0 %v3186
      %3294 = vmatprep.subr.mxu0 0.0
      %3295 = vmatpush1.msra.mxu0 %v3189
      %3296 = vmatprep.subr.mxu0 0.0
      %3297 = vmatpush1.msra.mxu0 %v3192
      %3298 = vmatprep.subr.mxu0 0.0
      %3299 = vmatpush1.msra.mxu0 %v3195
      %3300 = vmatprep.subr.mxu0 0.0
      %3301 = vmatpush1.msra.mxu0 %v3198
      %3302 = vmatprep.subr.mxu0 0.0
      %3303 = vmatpush1.msra.mxu0 0.0
      %3304 = vmatprep.subr.mxu0 0.0
      %3305 = vmatpush1.msra.mxu0 0.0
      %3306 = vmatprep.subr.mxu0 0.0
      %3307 = vmatpush1.msra.mxu0 0.0
      %3308 = vmatprep.subr.mxu0 0.0
      %3309 = vmatpush1.msra.mxu0 0.0
      %3310 = vmatprep.subr.mxu0 0.0
      %3311 = vmatpush1.msra.mxu0 0.0
      %3312 = vmatprep.subr.mxu0 0.0
      %3313 = vmatpush1.msra.mxu0 0.0
      %3314 = vmatprep.subr.mxu0 0.0
      %3315 = vmatpush1.msra.mxu0 0.0
      %3316 = vmatprep.subr.mxu0 0.0
      %3317 = vmatpush1.msra.mxu0 0.0
      %3318 = vmatprep.subr.mxu0 0.0
      %3319 = vmatpush1.msra.mxu0 0.0
      %3320 = vmatprep.subr.mxu0 0.0
      %3321 = vmatpush1.msra.mxu0 0.0
      %3322 = vmatprep.subr.mxu0 0.0
      %3323 = vmatpush1.msra.mxu0 0.0
      %3324 = vmatprep.subr.mxu0 0.0
      %3325 = vmatpush1.msra.mxu0 0.0
      %3326 = vmatprep.subr.mxu0 0.0
      %3327 = vmatpush1.msra.mxu0 0.0
      %3328 = vmatprep.subr.mxu0 0.0
      %3329 = vmatpush1.msra.mxu0 0.0
      %3330 = vmatprep.subr.mxu0 0.0
      %3331 = vmatpush1.msra.mxu0 0.0
      %3332 = vmatprep.subr.mxu0 0.0
      %3333 = vmatpush1.msra.mxu0 0.0
      %3334 = vmatprep.mubr.f32.mxu0 0.0
      %3335 = vmatmul.mubr.f32.gmra.mrb[0].mxu0 %v2947
      %v3336 = vpop.f32.mrb[0].mxu0
      %v3337 = vadd.f32 0.0, %v3336
      %v3338 = vpop.f32.mrb[0].mxu0
      %3339 = vdwg.mxu0
      %v3340 = vadd.f32 %v2951, %v3076
      %v3341 = vadd.f32 %v2952, %v3078
      %v3342 = vmul.f32 %v3340, 0.5
      %v3343 = vmul.f32 %v3341, 0.5
      %v3344 = vtanh.pop %v3342
      %v3345 = vtanh.pop %v3343
      %v3346 = vadd.f32 %v3344, 1.0
      %v3347 = vadd.f32 %v3345, 1.0
      %v3348 = vmul.f32 %v3346, 0.5
      %v3349 = vmul.f32 %v3347, 0.5
      %v3350 = vadd.f32 %v3147, %v2927
      %v3351 = vmul.f32 %v3348, %v3350
      %v3352 = vadd.f32 %v2953, %v3351
      %v3353 = vtanh.pop %v3352
      %v3354 = vsub.f32 1.0, %v3349
      %v3355 = vmul.f32 %v3354, %v3353
      %v3356 = vmul.f32 %v3349, %v2945
      %v3357 = vadd.f32 %v3355, %v3356
      %v3358 = vadd.f32 %v2957, %v3266
      %v3359 = vadd.f32 %v2958, %v3268
      %v3360 = vmul.f32 %v3358, 0.5
      %v3361 = vmul.f32 %v3359, 0.5
      %v3362 = vtanh.pop %v3360
      %v3363 = vtanh.pop %v3361
      %v3364 = vadd.f32 %v3362, 1.0
      %v3365 = vadd.f32 %v3363, 1.0
      %v3366 = vmul.f32 %v3364, 0.5
      %v3367 = vmul.f32 %v3365, 0.5
      %v3368 = vadd.f32 %v3337, %v2935
      %v3369 = vmul.f32 %v3366, %v3368
      %v3370 = vadd.f32 %v2959, %v3369
      %v3371 = vtanh.pop %v3370
      %v3372 = vsub.f32 1.0, %v3367
      %v3373 = vmul.f32 %v3372, %v3371
      %v3374 = vmul.f32 %v3367, %v2947
      %v3375 = vadd.f32 %v3373, %v3374
      %v3376 = vstv %s2938
      %vm3377 = vcmp.lt.s32.totalorder %v3376, %v173
      %v3378 = vsel %vm3377, 1, 0
      %3379 = vset.pattern.permute.xlu0 0
      %3380 = vperm.xlu0 %3379, %v3378
      %v3381 = vpop.permute.xlu0 %3380
      %vm3382 = vcmp.eq.s32.totalorder %v3381, 1
      %v3383 = vsel %vm3382, %v3357, %v2945
      %v3384 = vstv %s2944
      %vm3385 = vcmp.lt.s32.totalorder %v3384, %v173
      %v3386 = vsel %vm3385, 1, 0
      %3387 = vset.pattern.permute.xlu0 0
      %3388 = vperm.xlu0 %3387, %v3386
      %v3389 = vpop.permute.xlu0 %3388
      %vm3390 = vcmp.eq.s32.totalorder %v3389, 1
      %v3391 = vsel %vm3390, %v3375, %v2947
      %3392 = vst [vmem:[#allocation4] sm:$0xff] %v3383
      %3393 = vst [vmem:[%s2946] sm:$0xff] %v3391
    $region104: #{tpu_custom_call.1} parent=1 // loop_footer
      %s2940 = sadd.s32 %s2938, 1
    $region105: #{tpu_custom_call.1} parent=1 // loop_footer_branch
      %2937 = sbr.rel target = $region101
    $region106: #{tpu_custom_call.1} parent=1 // loop_exit
      _
    %v3394 = vld [vmem:[#allocation4] sm:$0xff]
    %s3395 = scalar_lea.vmem [#allocation4], 8
    %v3396 = vld [vmem:[%s3395] sm:$0xff]
    %v3397 = vld [vmem:[#allocation18] sm:$0xff]
    %v3398 = vld [vmem:[#allocation18 + $0x8] sm:$0xff]
    %v3399 = vld [vmem:[#allocation18 + $0x10] sm:$0xff]
    %v3400 = vld [vmem:[#allocation18 + $0x18] sm:$0xff]
    %v3401 = vld [vmem:[#allocation18 + $0x20] sm:$0xff]
    %v3402 = vld [vmem:[#allocation18 + $0x28] sm:$0xff]
    %v3403 = vld [vmem:[#allocation18 + $0x30] sm:$0xff]
    %v3404 = vld [vmem:[#allocation18 + $0x38] sm:$0xff]
    %v3405 = vld [vmem:[#allocation18 + $0x40] sm:$0xff]
    %v3406 = vld [vmem:[#allocation18 + $0x48] sm:$0xff]
    %v3407 = vld [vmem:[#allocation18 + $0x50] sm:$0xff]
    %v3408 = vld [vmem:[#allocation18 + $0x58] sm:$0xff]
    %v3409 = vld [vmem:[#allocation18 + $0x60] sm:$0xff]
    %v3410 = vld [vmem:[#allocation18 + $0x68] sm:$0xff]
    %v3411 = vld [vmem:[#allocation18 + $0x70] sm:$0xff]
    %v3412 = vld [vmem:[#allocation18 + $0x78] sm:$0xff]
    %v3413 = vld [vmem:[#allocation18 + $0x80] sm:$0xff]
    %v3414 = vld [vmem:[#allocation18 + $0x88] sm:$0xff]
    %v3415 = vld [vmem:[#allocation18 + $0x90] sm:$0xff]
    %v3416 = vld [vmem:[#allocation18 + $0x98] sm:$0xff]
    %v3417 = vld [vmem:[#allocation18 + $0xa0] sm:$0xff]
    %v3418 = vld [vmem:[#allocation18 + $0xa8] sm:$0xff]
    %v3419 = vld [vmem:[#allocation18 + $0xb0] sm:$0xff]
    %v3420 = vld [vmem:[#allocation18 + $0xb8] sm:$0xff]
    %v3421 = vld [vmem:[#allocation18 + $0xc0] sm:$0xff]
    %v3422 = vld [vmem:[#allocation18 + $0xc8] sm:$0xff]
    %v3423 = vld [vmem:[#allocation18 + $0xd0] sm:$0xff]
    %v3424 = vld [vmem:[#allocation18 + $0xd8] sm:$0xff]
    %v3425 = vld [vmem:[#allocation18 + $0xe0] sm:$0xff]
    %v3426 = vld [vmem:[#allocation18 + $0xe8] sm:$0xff]
    %v3427 = vld [vmem:[#allocation18 + $0xf0] sm:$0xff]
    %v3428 = vld [vmem:[#allocation18 + $0xf8] sm:$0xff]
    %3429 = vmatprep.subr.mxu0 0.0
    %3430 = vmatpush1.msra.mxu0 %v3413
    %3431 = vmatprep.subr.mxu0 0.0
    %3432 = vmatpush1.msra.mxu0 %v3414
    %3433 = vmatprep.subr.mxu0 0.0
    %3434 = vmatpush1.msra.mxu0 %v3415
    %3435 = vmatprep.subr.mxu0 0.0
    %3436 = vmatpush1.msra.mxu0 %v3416
    %3437 = vmatprep.subr.mxu0 0.0
    %3438 = vmatpush1.msra.mxu0 %v3417
    %3439 = vmatprep.subr.mxu0 0.0
    %3440 = vmatpush1.msra.mxu0 %v3418
    %3441 = vmatprep.subr.mxu0 0.0
    %3442 = vmatpush1.msra.mxu0 %v3419
    %3443 = vmatprep.subr.mxu0 0.0
    %3444 = vmatpush1.msra.mxu0 %v3420
    %3445 = vmatprep.subr.mxu0 0.0
    %3446 = vmatpush1.msra.mxu0 %v3421
    %3447 = vmatprep.subr.mxu0 0.0
    %3448 = vmatpush1.msra.mxu0 %v3422
    %3449 = vmatprep.subr.mxu0 0.0
    %3450 = vmatpush1.msra.mxu0 %v3423
    %3451 = vmatprep.subr.mxu0 0.0
    %3452 = vmatpush1.msra.mxu0 %v3424
    %3453 = vmatprep.subr.mxu0 0.0
    %3454 = vmatpush1.msra.mxu0 %v3425
    %3455 = vmatprep.subr.mxu0 0.0
    %3456 = vmatpush1.msra.mxu0 %v3426
    %3457 = vmatprep.subr.mxu0 0.0
    %3458 = vmatpush1.msra.mxu0 %v3427
    %3459 = vmatprep.subr.mxu0 0.0
    %3460 = vmatpush1.msra.mxu0 %v3428
    %3461 = vmatprep.subr.mxu0 0.0
    %3462 = vmatpush1.msra.mxu0 0.0
    %3463 = vmatprep.subr.mxu0 0.0
    %3464 = vmatpush1.msra.mxu0 0.0
    %3465 = vmatprep.subr.mxu0 0.0
    %3466 = vmatpush1.msra.mxu0 0.0
    %3467 = vmatprep.subr.mxu0 0.0
    %3468 = vmatpush1.msra.mxu0 0.0
    %3469 = vmatprep.subr.mxu0 0.0
    %3470 = vmatpush1.msra.mxu0 0.0
    %3471 = vmatprep.subr.mxu0 0.0
    %3472 = vmatpush1.msra.mxu0 0.0
    %3473 = vmatprep.subr.mxu0 0.0
    %3474 = vmatpush1.msra.mxu0 0.0
    %3475 = vmatprep.subr.mxu0 0.0
    %3476 = vmatpush1.msra.mxu0 0.0
    %3477 = vmatprep.subr.mxu0 0.0
    %3478 = vmatpush1.msra.mxu0 0.0
    %3479 = vmatprep.subr.mxu0 0.0
    %3480 = vmatpush1.msra.mxu0 0.0
    %3481 = vmatprep.subr.mxu0 0.0
    %3482 = vmatpush1.msra.mxu0 0.0
    %3483 = vmatprep.subr.mxu0 0.0
    %3484 = vmatpush1.msra.mxu0 0.0
    %3485 = vmatprep.subr.mxu0 0.0
    %3486 = vmatpush1.msra.mxu0 0.0
    %3487 = vmatprep.subr.mxu0 0.0
    %3488 = vmatpush1.msra.mxu0 0.0
    %3489 = vmatprep.subr.mxu0 0.0
    %3490 = vmatpush1.msra.mxu0 0.0
    %3491 = vmatprep.subr.mxu0 0.0
    %3492 = vmatpush1.msra.mxu0 0.0
    %3493 = vmatprep.mubr.f32.mxu0 0.0
    %3494 = vmatmul.mubr.f32.gmra.mrb[0].mxu0 %v3396
    %v3495 = vpop.f32.mrb[0].mxu0
    %v3496 = vadd.f32 0.0, %v3495
    %v3497 = vpop.f32.mrb[0].mxu0
    %3498 = vdwg.mxu0
    %3499 = vmatprep.subr.mxu0 0.0
    %3500 = vmatpush1.msra.mxu0 %v3397
    %3501 = vmatprep.subr.mxu0 0.0
    %3502 = vmatpush1.msra.mxu0 %v3398
    %3503 = vmatprep.subr.mxu0 0.0
    %3504 = vmatpush1.msra.mxu0 %v3399
    %3505 = vmatprep.subr.mxu0 0.0
    %3506 = vmatpush1.msra.mxu0 %v3400
    %3507 = vmatprep.subr.mxu0 0.0
    %3508 = vmatpush1.msra.mxu0 %v3401
    %3509 = vmatprep.subr.mxu0 0.0
    %3510 = vmatpush1.msra.mxu0 %v3402
    %3511 = vmatprep.subr.mxu0 0.0
    %3512 = vmatpush1.msra.mxu0 %v3403
    %3513 = vmatprep.subr.mxu0 0.0
    %3514 = vmatpush1.msra.mxu0 %v3404
    %3515 = vmatprep.subr.mxu0 0.0
    %3516 = vmatpush1.msra.mxu0 %v3405
    %3517 = vmatprep.subr.mxu0 0.0
    %3518 = vmatpush1.msra.mxu0 %v3406
    %3519 = vmatprep.subr.mxu0 0.0
    %3520 = vmatpush1.msra.mxu0 %v3407
    %3521 = vmatprep.subr.mxu0 0.0
    %3522 = vmatpush1.msra.mxu0 %v3408
    %3523 = vmatprep.subr.mxu0 0.0
    %3524 = vmatpush1.msra.mxu0 %v3409
    %3525 = vmatprep.subr.mxu0 0.0
    %3526 = vmatpush1.msra.mxu0 %v3410
    %3527 = vmatprep.subr.mxu0 0.0
    %3528 = vmatpush1.msra.mxu0 %v3411
    %3529 = vmatprep.subr.mxu0 0.0
    %3530 = vmatpush1.msra.mxu0 %v3412
    %3531 = vmatprep.subr.mxu0 0.0
    %3532 = vmatpush1.msra.mxu0 0.0
    %3533 = vmatprep.subr.mxu0 0.0
    %3534 = vmatpush1.msra.mxu0 0.0
    %3535 = vmatprep.subr.mxu0 0.0
    %3536 = vmatpush1.msra.mxu0 0.0
    %3537 = vmatprep.subr.mxu0 0.0
    %3538 = vmatpush1.msra.mxu0 0.0
    %3539 = vmatprep.subr.mxu0 0.0
    %3540 = vmatpush1.msra.mxu0 0.0
    %3541 = vmatprep.subr.mxu0 0.0
    %3542 = vmatpush1.msra.mxu0 0.0
    %3543 = vmatprep.subr.mxu0 0.0
    %3544 = vmatpush1.msra.mxu0 0.0
    %3545 = vmatprep.subr.mxu0 0.0
    %3546 = vmatpush1.msra.mxu0 0.0
    %3547 = vmatprep.subr.mxu0 0.0
    %3548 = vmatpush1.msra.mxu0 0.0
    %3549 = vmatprep.subr.mxu0 0.0
    %3550 = vmatpush1.msra.mxu0 0.0
    %3551 = vmatprep.subr.mxu0 0.0
    %3552 = vmatpush1.msra.mxu0 0.0
    %3553 = vmatprep.subr.mxu0 0.0
    %3554 = vmatpush1.msra.mxu0 0.0
    %3555 = vmatprep.subr.mxu0 0.0
    %3556 = vmatpush1.msra.mxu0 0.0
    %3557 = vmatprep.subr.mxu0 0.0
    %3558 = vmatpush1.msra.mxu0 0.0
    %3559 = vmatprep.subr.mxu0 0.0
    %3560 = vmatpush1.msra.mxu0 0.0
    %3561 = vmatprep.subr.mxu0 0.0
    %3562 = vmatpush1.msra.mxu0 0.0
    %3563 = vmatprep.mubr.f32.mxu0 0.0
    %3564 = vmatmul.mubr.f32.gmra.mrb[0].mxu0 %v3394
    %v3565 = vpop.f32.mrb[0].mxu0
    %v3566 = vadd.f32 %v3496, %v3565
    %v3567 = vpop.f32.mrb[0].mxu0
    %3568 = vdwg.mxu0
    %v3569 = vld [vmem:[#allocation19] sm:$0x1]
    %v3571 = vlaneseq
    %v3572 = vshrl.u32 %v3571, 7
    %v3573 = vsub.s32 0, %v3572
    %v3574 = vrot.slane %v3569, %v3573
    %v3576 = vadd.f32 %v3566, %v3574
    %v3577 = vmax.f32 %v3576, 0.0
    %v3578 = vld [vmem:[#allocation21] sm:$0xff]
    %v3579 = vld [vmem:[#allocation21 + $0x8] sm:$0xff]
    %v3580 = vld [vmem:[#allocation21 + $0x10] sm:$0xff]
    %v3581 = vld [vmem:[#allocation21 + $0x18] sm:$0xff]
    %v3582 = vld [vmem:[#allocation21 + $0x20] sm:$0xff]
    %v3583 = vld [vmem:[#allocation21 + $0x28] sm:$0xff]
    %v3584 = vld [vmem:[#allocation21 + $0x30] sm:$0xff]
    %v3585 = vld [vmem:[#allocation21 + $0x38] sm:$0xff]
    %v3586 = vld [vmem:[#allocation21 + $0x40] sm:$0xff]
    %v3587 = vld [vmem:[#allocation21 + $0x48] sm:$0xff]
    %v3588 = vld [vmem:[#allocation21 + $0x50] sm:$0xff]
    %v3589 = vld [vmem:[#allocation21 + $0x58] sm:$0xff]
    %v3590 = vld [vmem:[#allocation21 + $0x60] sm:$0xff]
    %v3591 = vld [vmem:[#allocation21 + $0x68] sm:$0xff]
    %v3592 = vld [vmem:[#allocation21 + $0x70] sm:$0xff]
    %v3593 = vld [vmem:[#allocation21 + $0x78] sm:$0xff]
    %v3594 = vld [vmem:[#allocation22] sm:$0x1]
    %v3596 = vlaneseq
    %v3597 = vshrl.u32 %v3596, 7
    %v3598 = vsub.s32 0, %v3597
    %v3599 = vrot.slane %v3594, %v3598
    %3601 = vmatprep.subr.mxu0 0.0
    %3602 = vmatpush1.msra.mxu0 %v3578
    %3603 = vmatprep.subr.mxu0 0.0
    %3604 = vmatpush1.msra.mxu0 %v3579
    %3605 = vmatprep.subr.mxu0 0.0
    %3606 = vmatpush1.msra.mxu0 %v3580
    %3607 = vmatprep.subr.mxu0 0.0
    %3608 = vmatpush1.msra.mxu0 %v3581
    %3609 = vmatprep.subr.mxu0 0.0
    %3610 = vmatpush1.msra.mxu0 %v3582
    %3611 = vmatprep.subr.mxu0 0.0
    %3612 = vmatpush1.msra.mxu0 %v3583
    %3613 = vmatprep.subr.mxu0 0.0
    %3614 = vmatpush1.msra.mxu0 %v3584
    %3615 = vmatprep.subr.mxu0 0.0
    %3616 = vmatpush1.msra.mxu0 %v3585
    %3617 = vmatprep.subr.mxu0 0.0
    %3618 = vmatpush1.msra.mxu0 %v3586
    %3619 = vmatprep.subr.mxu0 0.0
    %3620 = vmatpush1.msra.mxu0 %v3587
    %3621 = vmatprep.subr.mxu0 0.0
    %3622 = vmatpush1.msra.mxu0 %v3588
    %3623 = vmatprep.subr.mxu0 0.0
    %3624 = vmatpush1.msra.mxu0 %v3589
    %3625 = vmatprep.subr.mxu0 0.0
    %3626 = vmatpush1.msra.mxu0 %v3590
    %3627 = vmatprep.subr.mxu0 0.0
    %3628 = vmatpush1.msra.mxu0 %v3591
    %3629 = vmatprep.subr.mxu0 0.0
    %3630 = vmatpush1.msra.mxu0 %v3592
    %3631 = vmatprep.subr.mxu0 0.0
    %3632 = vmatpush1.msra.mxu0 %v3593
    %3633 = vmatprep.subr.mxu0 0.0
    %3634 = vmatpush1.msra.mxu0 0.0
    %3635 = vmatprep.subr.mxu0 0.0
    %3636 = vmatpush1.msra.mxu0 0.0
    %3637 = vmatprep.subr.mxu0 0.0
    %3638 = vmatpush1.msra.mxu0 0.0
    %3639 = vmatprep.subr.mxu0 0.0
    %3640 = vmatpush1.msra.mxu0 0.0
    %3641 = vmatprep.subr.mxu0 0.0
    %3642 = vmatpush1.msra.mxu0 0.0
    %3643 = vmatprep.subr.mxu0 0.0
    %3644 = vmatpush1.msra.mxu0 0.0
    %3645 = vmatprep.subr.mxu0 0.0
    %3646 = vmatpush1.msra.mxu0 0.0
    %3647 = vmatprep.subr.mxu0 0.0
    %3648 = vmatpush1.msra.mxu0 0.0
    %3649 = vmatprep.subr.mxu0 0.0
    %3650 = vmatpush1.msra.mxu0 0.0
    %3651 = vmatprep.subr.mxu0 0.0
    %3652 = vmatpush1.msra.mxu0 0.0
    %3653 = vmatprep.subr.mxu0 0.0
    %3654 = vmatpush1.msra.mxu0 0.0
    %3655 = vmatprep.subr.mxu0 0.0
    %3656 = vmatpush1.msra.mxu0 0.0
    %3657 = vmatprep.subr.mxu0 0.0
    %3658 = vmatpush1.msra.mxu0 0.0
    %3659 = vmatprep.subr.mxu0 0.0
    %3660 = vmatpush1.msra.mxu0 0.0
    %3661 = vmatprep.subr.mxu0 0.0
    %3662 = vmatpush1.msra.mxu0 0.0
    %3663 = vmatprep.subr.mxu0 0.0
    %3664 = vmatpush1.msra.mxu0 0.0
    %3665 = vmatprep.mubr.f32.mxu0 0.0
    %3666 = vmatmul.mubr.f32.gmra.mrb[0].mxu0 %v3577
    %v3667 = vpop.f32.mrb[0].mxu0
    %v3668 = vadd.f32 %v3599, %v3667
    %v3669 = vpop.f32.mrb[0].mxu0
    %3670 = vdwg.mxu0
    %3671 = vst [vmem:[#allocation24] sm:$0xff] %v3668
    // Predicated region
    $region107: #{tpu_custom_call.1} parent=1 // pred_check
      _
    $region108: #{tpu_custom_call.1} parent=1 // pred_check_branch
      %3673 = sbr.rel (0) target = $region110
    $region109: #{tpu_custom_call.1} parent=1 // pred_region
      %s3675 = ssub.s32 128, 128
      %3676 = vsyncadd [#allocation9], %s3675
      %s3678 = sshll.u32 [#allocation24], 4
      %s3679 = int_to_ptr.vmem [resolvable:$true] %s3678
      %3681 = dma.vmem_to_hbm [thread:$0]  %s3679, 128, %s12, [#allocation9]
    $region110: #{tpu_custom_call.1} parent=1 // pred_fallthru
      _
    // Predicated region
    $region111: #{tpu_custom_call.1} parent=1 // pred_check
      _
    $region112: #{tpu_custom_call.1} parent=1 // pred_check_branch
      %3683 = sbr.rel (0) target = $region114
    $region113: #{tpu_custom_call.1} parent=1 // pred_region
      %3684 = dma.done [#allocation9], 128
    $region114: #{tpu_custom_call.1} parent=1 // pred_fallthru
      _
    %3685 = vsyncpa [#allocation8], 1
    %3686 = vsyncpa [#allocation11], 1
    %3687 = vsyncpa [#allocation14], 1
    %3688 = vsyncpa [#allocation17], 1
    %3689 = vsyncpa [#allocation20], 1
    %3690 = vsyncpa [#allocation23], 1
    %3691 = vsyncpa [#allocation9], 1

</llo_original>
